<compile_context>
chip_gen: v7x
topology: tpu7x:2x2x1
jax: 0.10.0
libtpu: 0.0.40
codegen_flags: <defaults>
</compile_context>

<pallas_src>
import functools

import jax
import jax.numpy as jnp
import numpy as np
from jax import lax
from jax.experimental import pallas as pl
from jax.experimental.pallas import tpu as pltpu


def _round_up(x, m):
    return (x + m - 1) // m * m


def _default_bag_tile():
    # v6e / v7x MXU is 2x256x256 -> 256-row LHS fills it; v5e (4x128^2) is
    # already full at 128 and 256 only adds vreg/VMEM pressure there.
    try:
        kind = jax.devices()[0].device_kind.lower()
    except Exception:
        return 256
    return 128 if "v5" in kind else 256


def _vmem_capacity_bytes():
    try:
        return int(pltpu.get_tpu_info().vmem_capacity_bytes)
    except Exception:
        return 64 * 1024 * 1024  # conservative: v7x per-TensorCore VMEM


def _embedding_bag_kernel(start_block_ref, nblocks_ref,    # SMEM scalar prefetch
                          starts_ref, ends_ref, rows_ref,  # VMEM inputs
                          out_ref,                         # VMEM output
                          acc_ref,                         # VMEM scratch
                          *, precision):
    """Sum-mode embedding bag: one mask(bag_tile, rows_tile) @ rows MXU step.

    start_block_ref : SMEM (num_bag_tiles,) int32  first rows-block of bag tile j
    nblocks_ref     : SMEM (num_bag_tiles,) int32  #rows-blocks spanned by tile j
    starts_ref      : VMEM (bag_tile, 1) int32     per-bag start position (global)
    ends_ref        : VMEM (bag_tile, 1) int32     per-bag end position (global)
    rows_ref        : VMEM (rows_tile, E)          pre-gathered embedding rows
    out_ref         : VMEM (bag_tile, E)           bag sums for this tile
    acc_ref         : VMEM (bag_tile, E) f32       accumulator across k
    """
    j = pl.program_id(0)
    k = pl.program_id(1)

    @pl.when(k == 0)
    def _():
        acc_ref[...] = jnp.zeros_like(acc_ref)

    # Skip rows-blocks this bag tile does not touch (their clamped DMA block is
    # simply ignored, so no double counting and no OOB fetch).
    @pl.when(k < nblocks_ref[j])
    def _():
        bag_tile = out_ref.shape[0]
        rows_tile = rows_ref.shape[0]
        base = (start_block_ref[j] + k) * rows_tile
        # Global index positions covered by this rows block.
        pos = base + lax.broadcasted_iota(jnp.int32, (bag_tile, rows_tile), 1)
        # mask[b, r] = 1 iff index position r belongs to bag b of this tile.
        mask = (pos >= starts_ref[...]) & (pos < ends_ref[...])
        # 0/1 mask is exact in any float dtype; accumulation is f32.
        acc_ref[...] += jnp.dot(mask.astype(rows_ref.dtype), rows_ref[...],
                                preferred_element_type=jnp.float32,
                                precision=precision)

    @pl.when(k == pl.num_programs(1) - 1)
    def _():
        out_ref[...] = acc_ref[...].astype(out_ref.dtype)


def embedding_bag_sum(indices, weight, offsets, batch_size, feature_count,
                      *, bag_tile=None, rows_tile=256, rows_dtype=None):
    """torch.nn.functional.embedding_bag(mode='sum') + reshape(batch, F*E).

    The host builds the per-bag-tile rows-block schedule (bags are contiguous
    in the index array), so `offsets` must be concrete (eager call), matching
    how the torch module is used.
    """
    num_embeddings, emb_size = weight.shape
    num_bags = int(offsets.shape[0])
    total = int(indices.shape[0])

    if bag_tile is None:
        bag_tile = _default_bag_tile()

    padded_bags = _round_up(num_bags, bag_tile)
    num_bag_tiles = padded_bags // bag_tile
    padded_total = _round_up(max(total, 1), rows_tile)
    num_row_blocks = padded_total // rows_tile
    last_block = num_row_blocks - 1

    # ---- host-side schedule (contiguous bags) ------------------------------
    off_h = np.asarray(jax.device_get(offsets), dtype=np.int64)
    starts_h = np.full((padded_bags,), total, dtype=np.int64)
    starts_h[:num_bags] = off_h
    ends_h = np.full((padded_bags,), total, dtype=np.int64)
    if num_bags > 1:
        ends_h[:num_bags - 1] = off_h[1:]
    ends_h[num_bags - 1] = total

    tile_start = starts_h[0::bag_tile]            # first bag's start per tile
    tile_end = ends_h[bag_tile - 1::bag_tile]     # last bag's end per tile
    start_block_h = tile_start // rows_tile
    nblocks_h = np.maximum(
        0, -(-(tile_end - start_block_h * rows_tile) // rows_tile))
    kmax = max(1, int(nblocks_h.max()))

    start_block = jnp.asarray(start_block_h, jnp.int32)
    nblocks = jnp.asarray(nblocks_h, jnp.int32)
    starts_col = jnp.asarray(starts_h, jnp.int32).reshape(padded_bags, 1)
    ends_col = jnp.asarray(ends_h, jnp.int32).reshape(padded_bags, 1)

    # ---- gather rows ONCE in the wrapper (hoisted out of the grid loop) ----
    idx = jnp.asarray(indices, jnp.int32)
    idx_pad = jnp.pad(idx, (0, padded_total - total), constant_values=0)
    rows = weight[idx_pad]                        # (padded_total, emb_size)
    if rows_dtype is not None:
        rows = rows.astype(rows_dtype)            # e.g. bf16 for native MXU rate

    if rows.dtype == jnp.float32:
        precision = lax.Precision.HIGHEST         # explicit torch-f32 parity
    else:
        precision = lax.Precision.DEFAULT         # native single-pass bf16 MXU

    # ---- generation-aware VMEM budget (everything is small now) ------------
    rows_blk = rows_tile * emb_size * jnp.dtype(rows.dtype).itemsize
    out_blk = bag_tile * emb_size * jnp.dtype(weight.dtype).itemsize
    acc_blk = bag_tile * emb_size * 4
    col_blk = bag_tile * 128 * 4                  # (bag_tile,1) int32 lane padding
    est = 2 * rows_blk + 2 * out_blk + acc_blk + 4 * col_blk + (1 << 20)
    vmem_cap = _vmem_capacity_bytes()
    vmem_limit = int(min(max(4 * est, 16 * 1024 * 1024),
                         max(vmem_cap - (16 << 20), 16 << 20)))

    grid = (num_bag_tiles, kmax)

    bag_sums = pl.pallas_call(
        functools.partial(_embedding_bag_kernel, precision=precision),
        out_shape=jax.ShapeDtypeStruct((padded_bags, emb_size), weight.dtype),
        grid_spec=pltpu.PrefetchScalarGridSpec(
            num_scalar_prefetch=2,               # start_block, nblocks in SMEM
            grid=grid,
            in_specs=[
                pl.BlockSpec((bag_tile, 1), lambda j, k, sb, nb: (j, 0)),   # starts
                pl.BlockSpec((bag_tile, 1), lambda j, k, sb, nb: (j, 0)),   # ends
                # Stream only the rows-blocks this bag tile spans; clamp keeps
                # the (skipped) trailing fetches in range.
                pl.BlockSpec(
                    (rows_tile, emb_size),
                    lambda j, k, sb, nb: (jnp.minimum(sb[j] + k, last_block), 0)),
            ],
            out_specs=pl.BlockSpec((bag_tile, emb_size),
                                   lambda j, k, sb, nb: (j, 0)),
            scratch_shapes=[pltpu.VMEM((bag_tile, emb_size), jnp.float32)],
        ),
        compiler_params=pltpu.CompilerParams(
            dimension_semantics=("parallel", "arbitrary"),  # bag tiles || , k = reduce
            vmem_limit_bytes=vmem_limit,
        ),
    )(start_block, nblocks, starts_col, ends_col, rows)

    return bag_sums[:num_bags].reshape(batch_size, feature_count * emb_size)


def _reference(indices, weight, offsets, batch_size, feature_count):
    num_bags = offsets.shape[0]
    total = indices.shape[0]
    ends = jnp.concatenate([offsets[1:], jnp.array([total], offsets.dtype)])
    pos = jnp.arange(total)
    rows = weight[indices]                                     # (total, E)
    out = []
    for b in range(num_bags):
        mask = ((pos >= offsets[b]) & (pos < ends[b]))[:, None]
        out.append(jnp.sum(jnp.where(mask, rows, 0.0), axis=0))
    out = jnp.stack(out)
    return out.reshape(batch_size, feature_count * weight.shape[1])


if __name__ == "__main__":
    # Small, deterministic problem consistent with the module:
    #   feature_count=4, emb_size=128, batch_size=2 -> num_bags = 8
    feature_count = 4
    emb_size = 128
    batch_size = 2
    num_bags = batch_size * feature_count
    num_embeddings = 16

    key = jax.random.PRNGKey(0)
    k_w, k_idx = jax.random.split(key)

    weight = jax.random.normal(k_w, (num_embeddings, emb_size), dtype=jnp.float32)

    # Variable-length bags (lengths sum to total index count).
    bag_lengths = jnp.array([3, 2, 4, 1, 2, 3, 2, 3], dtype=jnp.int32)
    total = int(jnp.sum(bag_lengths))
    offsets = jnp.concatenate([jnp.zeros((1,), jnp.int32),
                               jnp.cumsum(bag_lengths)[:-1].astype(jnp.int32)])
    indices = jax.random.randint(k_idx, (total,), 0, num_embeddings,
                                 dtype=jnp.int32)

    out = embedding_bag_sum(indices, weight, offsets, batch_size, feature_count)
    out = jax.block_until_ready(out)

    ref = _reference(indices, weight, offsets, batch_size, feature_count)
    assert out.shape == (batch_size, feature_count * emb_size)
    assert jnp.allclose(out, ref, atol=1e-5, rtol=1e-5)

    print("KERNEL_OK")
</pallas_src>

<mosaic_0001>
module attributes {stable_mosaic.version = 11 : i64} {
  func.func @_embedding_bag_kernel(%arg0: i32, %arg1: i32, %arg2: memref<1xi32, #tpu.memory_space<smem>>, %arg3: memref<1xi32, #tpu.memory_space<smem>>, %arg4: memref<256x1xi32, #tpu.memory_space<vmem>>, %arg5: memref<256x1xi32, #tpu.memory_space<vmem>>, %arg6: memref<256x128xf32, #tpu.memory_space<vmem>>, %arg7: memref<256x128xf32, #tpu.memory_space<vmem>>, %arg8: memref<256x128xf32, #tpu.memory_space<vmem>>) attributes {dimension_semantics = [#tpu.dimension_semantics<parallel>, #tpu.dimension_semantics<arbitrary>], iteration_bounds = array<i64: 1, 1>, scalar_prefetch = 2 : i64, scratch_operands = 1 : i64, tpu.core_type = #tpu.core_type<tc>, window_params = [{transform_indices = @transform_0, window_bounds = array<i64: 256, 1>}, {transform_indices = @transform_1, window_bounds = array<i64: 256, 1>}, {transform_indices = @transform_2, window_bounds = array<i64: 256, 128>}, {transform_indices = @transform_3, window_bounds = array<i64: 256, 128>}]} {
    %c0_i32 = arith.constant 0 : i32
    %0 = arith.cmpi eq, %arg1, %c0_i32 : i32
    %1 = arith.extui %0 : i1 to i32
    %c0_i32_0 = arith.constant 0 : i32
    %2 = arith.cmpi ne, %1, %c0_i32_0 : i32
    scf.if %2 {
      %cst = arith.constant 0.000000e+00 : f32
      %11 = vector.broadcast %cst : f32 to vector<256x128xf32>
      %c0 = arith.constant 0 : index
      %c0_4 = arith.constant 0 : index
      %12 = vector.load %arg8[%c0, %c0_4] : memref<256x128xf32, #tpu.memory_space<vmem>>, vector<256x128xf32>
      tpu.vector_store %arg8[%c0, %c0_4], %11 {strides = array<i32>} : memref<256x128xf32, #tpu.memory_space<vmem>>, vector<256x128xf32>,
    } else {
    }
    %3 = arith.index_cast %arg0 : i32 to index
    %4 = memref.load %arg3[%3] : memref<1xi32, #tpu.memory_space<smem>>
    %5 = arith.cmpi slt, %arg1, %4 : i32
    %6 = arith.extui %5 : i1 to i32
    %c0_i32_1 = arith.constant 0 : i32
    %7 = arith.cmpi ne, %6, %c0_i32_1 : i32
    scf.if %7 {
      %11 = arith.index_cast %arg0 : i32 to index
      %12 = memref.load %arg2[%11] : memref<1xi32, #tpu.memory_space<smem>>
      %13 = arith.addi %12, %arg1 : i32
      %c256_i32 = arith.constant 256 : i32
      %14 = arith.muli %13, %c256_i32 : i32
      %15 = tpu.iota {dimensions = array<i32: 1>} : vector<256x256xi32>
      %16 = vector.broadcast %14 : i32 to vector<256x256xi32>
      %17 = arith.addi %16, %15 : vector<256x256xi32>
      %c0 = arith.constant 0 : index
      %c0_4 = arith.constant 0 : index
      %18 = vector.load %arg4[%c0, %c0_4] : memref<256x1xi32, #tpu.memory_space<vmem>>, vector<256x1xi32>
      %19 = vector.broadcast %18 : vector<256x1xi32> to vector<256x256xi32>
      %20 = arith.cmpi sge, %17, %19 : vector<256x256xi32>
      %c0_5 = arith.constant 0 : index
      %c0_6 = arith.constant 0 : index
      %21 = vector.load %arg5[%c0_5, %c0_6] : memref<256x1xi32, #tpu.memory_space<vmem>>, vector<256x1xi32>
      %22 = vector.broadcast %21 : vector<256x1xi32> to vector<256x256xi32>
      %23 = arith.cmpi slt, %17, %22 : vector<256x256xi32>
      %24 = arith.andi %20, %23 : vector<256x256xi1>
      %c0_7 = arith.constant 0 : index
      %c0_8 = arith.constant 0 : index
      %25 = vector.load %arg8[%c0_7, %c0_8] : memref<256x128xf32, #tpu.memory_space<vmem>>, vector<256x128xf32>
      %26 = arith.extui %24 : vector<256x256xi1> to vector<256x256xi32>
      %27 = arith.sitofp %26 : vector<256x256xi32> to vector<256x256xf32>
      %c0_9 = arith.constant 0 : index
      %c0_10 = arith.constant 0 : index
      %28 = vector.load %arg6[%c0_9, %c0_10] : memref<256x128xf32, #tpu.memory_space<vmem>>, vector<256x128xf32>
      %cst = arith.constant dense<0.000000e+00> : vector<256x128xf32>
      %29 = tpu.matmul %27, %28, %cst {dimension_numbers = #tpu.dot_dimension_numbers<[1], [0], [0], [1], [0, 0, 1, 1], [], []>, precision = #tpu.contract_precision<fp32>} : vector<256x256xf32>, vector<256x128xf32>, vector<256x128xf32> -> vector<256x128xf32>
      %30 = arith.addf %25, %29 : vector<256x128xf32>
      %c0_11 = arith.constant 0 : index
      %c0_12 = arith.constant 0 : index
      %31 = vector.load %arg8[%c0_11, %c0_12] : memref<256x128xf32, #tpu.memory_space<vmem>>, vector<256x128xf32>
      tpu.vector_store %arg8[%c0_11, %c0_12], %30 {strides = array<i32>} : memref<256x128xf32, #tpu.memory_space<vmem>>, vector<256x128xf32>,
    } else {
    }
    %c0_i32_2 = arith.constant 0 : i32
    %8 = arith.cmpi eq, %arg1, %c0_i32_2 : i32
    %9 = arith.extui %8 : i1 to i32
    %c0_i32_3 = arith.constant 0 : i32
    %10 = arith.cmpi ne, %9, %c0_i32_3 : i32
    scf.if %10 {
      %c0 = arith.constant 0 : index
      %c0_4 = arith.constant 0 : index
      %11 = vector.load %arg8[%c0, %c0_4] : memref<256x128xf32, #tpu.memory_space<vmem>>, vector<256x128xf32>
      %c0_5 = arith.constant 0 : index
      %c0_6 = arith.constant 0 : index
      %12 = vector.load %arg7[%c0_5, %c0_6] : memref<256x128xf32, #tpu.memory_space<vmem>>, vector<256x128xf32>
      tpu.vector_store %arg7[%c0_5, %c0_6], %11 {strides = array<i32>} : memref<256x128xf32, #tpu.memory_space<vmem>>, vector<256x128xf32>,
    } else {
    }
    return
  }
  func.func @transform_0(%arg0: i32, %arg1: i32, %arg2: memref<1xi32, #tpu.memory_space<smem>>, %arg3: memref<1xi32, #tpu.memory_space<smem>>) -> (i32, i32) {
    %c0_i32 = arith.constant 0 : i32
    %c0_i32_0 = arith.constant 0 : i32
    return %arg0, %c0_i32 : i32, i32
  }
  func.func @transform_1(%arg0: i32, %arg1: i32, %arg2: memref<1xi32, #tpu.memory_space<smem>>, %arg3: memref<1xi32, #tpu.memory_space<smem>>) -> (i32, i32) {
    %c0_i32 = arith.constant 0 : i32
    %c0_i32_0 = arith.constant 0 : i32
    return %arg0, %c0_i32 : i32, i32
  }
  func.func @transform_2(%arg0: i32, %arg1: i32, %arg2: memref<1xi32, #tpu.memory_space<smem>>, %arg3: memref<1xi32, #tpu.memory_space<smem>>) -> (i32, i32) {
    %0 = arith.index_cast %arg0 : i32 to index
    %1 = memref.load %arg2[%0] : memref<1xi32, #tpu.memory_space<smem>>
    %2 = arith.addi %1, %arg1 : i32
    %c0_i32 = arith.constant 0 : i32
    %3 = arith.minsi %2, %c0_i32 : i32
    %c0_i32_0 = arith.constant 0 : i32
    %c0_i32_1 = arith.constant 0 : i32
    return %3, %c0_i32_0 : i32, i32
  }
  func.func @transform_3(%arg0: i32, %arg1: i32, %arg2: memref<1xi32, #tpu.memory_space<smem>>, %arg3: memref<1xi32, #tpu.memory_space<smem>>) -> (i32, i32) {
    %c0_i32 = arith.constant 0 : i32
    %c0_i32_0 = arith.constant 0 : i32
    return %arg0, %c0_i32 : i32, i32
  }
}

</mosaic_0001>

<llo_original>
// kernel: tpu_custom_call.1
$region0: #{tpu_custom_call.1}
  #allocation0 [shape = 'u32[]', space=smem, size = 0x4, offset = 0x4, fixed_abs, tag = 'smem constant byte address 0x4 - core index']
  #allocation1 [shape = 'u32[144,128]{1,0:T(1,128)}', space=vmem, size = 0x12000, scoped, tag = 'internal scratch']
  #allocation2 [shape = 'f32[256,128]{1,0:T(8,128)}', space=vmem, size = 0x20000, scoped, tag = 'scratch operand']
  #allocation3 [shape = 's32[1]{0}', space=sflag, size = 0x4, scoped, tag = 'scoped memory for tpu_custom_call.1']
  #allocation4 [shape = 's32[1]{0:T(128)S(6)}', space=smem, size = 0x200, scoped, tag = 'prefetched SMEM operand 0']
  #allocation5 [shape = 's32[1]{0:T(128)S(6)}', space=smem, size = 0x200, scoped, tag = 'prefetched SMEM operand 1']
  %s0 = inlined_call_operand.<no memory space> [shape: s32[1], index: 0, kind: input, shape index: {}]
  %s1 = inlined_call_operand.<no memory space> [shape: s32[1], index: 1, kind: input, shape index: {}]
  %s2 = inlined_call_operand.vmem [shape: s32[256,1], index: 2, kind: input, shape index: {}]
  %s3 = inlined_call_operand.vmem [shape: s32[256,1], index: 3, kind: input, shape index: {}]
  %s4 = inlined_call_operand.vmem [shape: f32[256,128], index: 4, kind: input, shape index: {}]
  %s5 = inlined_call_operand.hbm [shape: f32[256,128], index: 5, kind: output, shape index: {}]
  %s6 = sld [smem:[#allocation0]]
  $region34: #{tpu_custom_call.1} parent=0
    _
  %s8 = ssub.s32 1, %s6
  %s9 = scalar_select 0, %s8, %s6
  %10 = sst [smem:[#allocation4]] %s0
  %11 = sst [smem:[#allocation5]] %s1
  $region1: #{tpu_custom_call.1} parent=0
    #allocation6 [shape = 'u8[131072]{0}', space=vmem, size = 0x20000, scoped, tag = 'output window, operand 0, single buffered']
    #allocation7 [shape = 's32[1]{0}', space=sflag, size = 0x4, scoped, tag = 'scoped memory for tpu_custom_call.1']
    %12 = vsyncpa [#allocation7], 0
    // Predicated region
    $region2: #{tpu_custom_call.1} parent=1 // pred_check
      _
    $region3: #{tpu_custom_call.1} parent=1 // pred_check_branch
      %14 = sbr.rel (0) target = $region5
    $region4: #{tpu_custom_call.1} parent=1 // pred_region
      _
    $region5: #{tpu_custom_call.1} parent=1 // pred_fallthru
      _
    // Predicated region
    $region6: #{tpu_custom_call.1} parent=1 // pred_check
      _
    $region7: #{tpu_custom_call.1} parent=1 // pred_check_branch
      %16 = sbr.rel (0) target = $region9
    $region8: #{tpu_custom_call.1} parent=1 // pred_region
      _
    $region9: #{tpu_custom_call.1} parent=1 // pred_fallthru
      _
    // Predicated region
    $region10: #{tpu_custom_call.1} parent=1 // pred_check
      _
    $region11: #{tpu_custom_call.1} parent=1 // pred_check_branch
      %18 = sbr.rel (0) target = $region13
    $region12: #{tpu_custom_call.1} parent=1 // pred_region
      %s19 = sld [smem:[#allocation4]]
      %s20 = sadd.s32 %s19, 0
      %p21 = scmp.lt.s32.totalorder %s20, 0
      %s22 = scalar_select %p21, %s20, 0
      %s23 = smul.u32 32, %s22
      %p24 = scmp.lt.s32.totalorder %s23, 31
      %s25 = scalar_select %p24, %s23, 31
      %s26 = smul.addr %s25, 8
      %s27 = scalar_lea.vmem %s4, %s26
      %s28 = sld [smem:[#allocation4]]
      %s29 = sadd.s32 %s28, 0
      %p30 = scmp.lt.s32.totalorder %s29, 0
      %s31 = scalar_select %p30, %s29, 0
      %s32 = smul.u32 32, %s31
    $region13: #{tpu_custom_call.1} parent=1 // pred_fallthru
      _
    %s33 = sld [smem:[#allocation4]]
    %s34 = sadd.s32 %s33, 0
    %p35 = scmp.lt.s32.totalorder %s34, 0
    %s36 = scalar_select %p35, %s34, 0
    %s37 = smul.u32 32, %s36
    %p38 = scmp.lt.s32.totalorder %s37, 31
    %s39 = scalar_select %p38, %s37, 31
    %s40 = smul.addr %s39, 8
    %s41 = scalar_lea.vmem %s4, %s40
    %s42 = sld [smem:[#allocation4]]
    %s43 = sadd.s32 %s42, 0
    %p44 = scmp.lt.s32.totalorder %s43, 0
    %s45 = scalar_select %p44, %s43, 0
    %s46 = smul.u32 32, %s45
    %p47 = scmp.lt.s32.totalorder %s46, 31
    %s48 = scalar_select %p47, %s46, 31
    %s49 = smul.addr %s48, 8
    %s50 = scalar_lea.vmem %s4, %s49
    %s51 = sld [smem:[#allocation4]]
    %s52 = sadd.s32 %s51, 0
    %p53 = scmp.lt.s32.totalorder %s52, 0
    %s54 = scalar_select %p53, %s52, 0
    %s55 = smul.u32 32, %s54
    %p56 = scmp.eq.s32.totalorder 0, 0
    // Predicated region
    $region14: #{tpu_custom_call.1} parent=1 // pred_check
      %p57 = pneg %p56
    $region15: #{tpu_custom_call.1} parent=1 // pred_check_branch
      %59 = sbr.rel (%p57) target = $region17
    $region16: #{tpu_custom_call.1} parent=1 // pred_region
      %60 = vst [vmem:[#allocation2] sm:$0xff] 0.0
      %61 = vst [vmem:[#allocation2 + $0x8] sm:$0xff] 0.0
      %62 = vst [vmem:[#allocation2 + $0x10] sm:$0xff] 0.0
      %63 = vst [vmem:[#allocation2 + $0x18] sm:$0xff] 0.0
      %64 = vst [vmem:[#allocation2 + $0x20] sm:$0xff] 0.0
      %65 = vst [vmem:[#allocation2 + $0x28] sm:$0xff] 0.0
      %66 = vst [vmem:[#allocation2 + $0x30] sm:$0xff] 0.0
      %67 = vst [vmem:[#allocation2 + $0x38] sm:$0xff] 0.0
      %68 = vst [vmem:[#allocation2 + $0x40] sm:$0xff] 0.0
      %69 = vst [vmem:[#allocation2 + $0x48] sm:$0xff] 0.0
      %70 = vst [vmem:[#allocation2 + $0x50] sm:$0xff] 0.0
      %71 = vst [vmem:[#allocation2 + $0x58] sm:$0xff] 0.0
      %72 = vst [vmem:[#allocation2 + $0x60] sm:$0xff] 0.0
      %73 = vst [vmem:[#allocation2 + $0x68] sm:$0xff] 0.0
      %74 = vst [vmem:[#allocation2 + $0x70] sm:$0xff] 0.0
      %75 = vst [vmem:[#allocation2 + $0x78] sm:$0xff] 0.0
      %76 = vst [vmem:[#allocation2 + $0x80] sm:$0xff] 0.0
      %77 = vst [vmem:[#allocation2 + $0x88] sm:$0xff] 0.0
      %78 = vst [vmem:[#allocation2 + $0x90] sm:$0xff] 0.0
      %79 = vst [vmem:[#allocation2 + $0x98] sm:$0xff] 0.0
      %80 = vst [vmem:[#allocation2 + $0xa0] sm:$0xff] 0.0
      %81 = vst [vmem:[#allocation2 + $0xa8] sm:$0xff] 0.0
      %82 = vst [vmem:[#allocation2 + $0xb0] sm:$0xff] 0.0
      %83 = vst [vmem:[#allocation2 + $0xb8] sm:$0xff] 0.0
      %84 = vst [vmem:[#allocation2 + $0xc0] sm:$0xff] 0.0
      %85 = vst [vmem:[#allocation2 + $0xc8] sm:$0xff] 0.0
      %86 = vst [vmem:[#allocation2 + $0xd0] sm:$0xff] 0.0
      %87 = vst [vmem:[#allocation2 + $0xd8] sm:$0xff] 0.0
      %88 = vst [vmem:[#allocation2 + $0xe0] sm:$0xff] 0.0
      %89 = vst [vmem:[#allocation2 + $0xe8] sm:$0xff] 0.0
      %90 = vst [vmem:[#allocation2 + $0xf0] sm:$0xff] 0.0
      %91 = vst [vmem:[#allocation2 + $0xf8] sm:$0xff] 0.0
    $region17: #{tpu_custom_call.1} parent=1 // pred_fallthru
      _
    %s92 = sld [smem:[#allocation5]]
    %p93 = scmp.lt.s32.totalorder 0, %s92
    // Predicated region
    $region18: #{tpu_custom_call.1} parent=1 // pred_check
      %p94 = pneg %p93
    $region19: #{tpu_custom_call.1} parent=1 // pred_check_branch
      %96 = sbr.rel (%p94) target = $region21
    $region20: #{tpu_custom_call.1} parent=1 // pred_region
      %s97 = sld [smem:[#allocation4]]
      %s98 = sadd.s32 %s97, 0
      %s99 = smul.u32 %s98, 256
      %v100 = vlaneseq
      %v101 = vand.u32 %v100, 127
      %v102 = vadd.s32 %v101, 128
      %v103 = vstv %s99
      %v104 = vadd.s32 %v103, %v101
      %v105 = vadd.s32 %v103, %v102
      %v106 = vld [vmem:[%s2] sm:$0xff]
      %v107 = vld [vmem:[%s2 + $0x8] sm:$0xff]
      %v108 = vld [vmem:[%s2 + $0x10] sm:$0xff]
      %v109 = vld [vmem:[%s2 + $0x18] sm:$0xff]
      %v110 = vld [vmem:[%s2 + $0x20] sm:$0xff]
      %v111 = vld [vmem:[%s2 + $0x28] sm:$0xff]
      %v112 = vld [vmem:[%s2 + $0x30] sm:$0xff]
      %v113 = vld [vmem:[%s2 + $0x38] sm:$0xff]
      %v114 = vld [vmem:[%s2 + $0x40] sm:$0xff]
      %v115 = vld [vmem:[%s2 + $0x48] sm:$0xff]
      %v116 = vld [vmem:[%s2 + $0x50] sm:$0xff]
      %v117 = vld [vmem:[%s2 + $0x58] sm:$0xff]
      %v118 = vld [vmem:[%s2 + $0x60] sm:$0xff]
      %v119 = vld [vmem:[%s2 + $0x68] sm:$0xff]
      %v120 = vld [vmem:[%s2 + $0x70] sm:$0xff]
      %v121 = vld [vmem:[%s2 + $0x78] sm:$0xff]
      %v122 = vld [vmem:[%s2 + $0x80] sm:$0xff]
      %v123 = vld [vmem:[%s2 + $0x88] sm:$0xff]
      %v124 = vld [vmem:[%s2 + $0x90] sm:$0xff]
      %v125 = vld [vmem:[%s2 + $0x98] sm:$0xff]
      %v126 = vld [vmem:[%s2 + $0xa0] sm:$0xff]
      %v127 = vld [vmem:[%s2 + $0xa8] sm:$0xff]
      %v128 = vld [vmem:[%s2 + $0xb0] sm:$0xff]
      %v129 = vld [vmem:[%s2 + $0xb8] sm:$0xff]
      %v130 = vld [vmem:[%s2 + $0xc0] sm:$0xff]
      %v131 = vld [vmem:[%s2 + $0xc8] sm:$0xff]
      %v132 = vld [vmem:[%s2 + $0xd0] sm:$0xff]
      %v133 = vld [vmem:[%s2 + $0xd8] sm:$0xff]
      %v134 = vld [vmem:[%s2 + $0xe0] sm:$0xff]
      %v135 = vld [vmem:[%s2 + $0xe8] sm:$0xff]
      %v136 = vld [vmem:[%s2 + $0xf0] sm:$0xff]
      %v137 = vld [vmem:[%s2 + $0xf8] sm:$0xff]
      %138 = vset.pattern.permute.xlu0 0
      %139 = vperm.xlu0 %138, %v106
      %v140 = vpop.permute.xlu0 %139
      %141 = vset.pattern.permute.xlu0 0
      %142 = vperm.xlu0 %141, %v107
      %v143 = vpop.permute.xlu0 %142
      %144 = vset.pattern.permute.xlu0 0
      %145 = vperm.xlu0 %144, %v108
      %v146 = vpop.permute.xlu0 %145
      %147 = vset.pattern.permute.xlu0 0
      %148 = vperm.xlu0 %147, %v109
      %v149 = vpop.permute.xlu0 %148
      %150 = vset.pattern.permute.xlu0 0
      %151 = vperm.xlu0 %150, %v110
      %v152 = vpop.permute.xlu0 %151
      %153 = vset.pattern.permute.xlu0 0
      %154 = vperm.xlu0 %153, %v111
      %v155 = vpop.permute.xlu0 %154
      %156 = vset.pattern.permute.xlu0 0
      %157 = vperm.xlu0 %156, %v112
      %v158 = vpop.permute.xlu0 %157
      %159 = vset.pattern.permute.xlu0 0
      %160 = vperm.xlu0 %159, %v113
      %v161 = vpop.permute.xlu0 %160
      %162 = vset.pattern.permute.xlu0 0
      %163 = vperm.xlu0 %162, %v114
      %v164 = vpop.permute.xlu0 %163
      %165 = vset.pattern.permute.xlu0 0
      %166 = vperm.xlu0 %165, %v115
      %v167 = vpop.permute.xlu0 %166
      %168 = vset.pattern.permute.xlu0 0
      %169 = vperm.xlu0 %168, %v116
      %v170 = vpop.permute.xlu0 %169
      %171 = vset.pattern.permute.xlu0 0
      %172 = vperm.xlu0 %171, %v117
      %v173 = vpop.permute.xlu0 %172
      %174 = vset.pattern.permute.xlu0 0
      %175 = vperm.xlu0 %174, %v118
      %v176 = vpop.permute.xlu0 %175
      %177 = vset.pattern.permute.xlu0 0
      %178 = vperm.xlu0 %177, %v119
      %v179 = vpop.permute.xlu0 %178
      %180 = vset.pattern.permute.xlu0 0
      %181 = vperm.xlu0 %180, %v120
      %v182 = vpop.permute.xlu0 %181
      %183 = vset.pattern.permute.xlu0 0
      %184 = vperm.xlu0 %183, %v121
      %v185 = vpop.permute.xlu0 %184
      %186 = vset.pattern.permute.xlu0 0
      %187 = vperm.xlu0 %186, %v122
      %v188 = vpop.permute.xlu0 %187
      %189 = vset.pattern.permute.xlu0 0
      %190 = vperm.xlu0 %189, %v123
      %v191 = vpop.permute.xlu0 %190
      %192 = vset.pattern.permute.xlu0 0
      %193 = vperm.xlu0 %192, %v124
      %v194 = vpop.permute.xlu0 %193
      %195 = vset.pattern.permute.xlu0 0
      %196 = vperm.xlu0 %195, %v125
      %v197 = vpop.permute.xlu0 %196
      %198 = vset.pattern.permute.xlu0 0
      %199 = vperm.xlu0 %198, %v126
      %v200 = vpop.permute.xlu0 %199
      %201 = vset.pattern.permute.xlu0 0
      %202 = vperm.xlu0 %201, %v127
      %v203 = vpop.permute.xlu0 %202
      %204 = vset.pattern.permute.xlu0 0
      %205 = vperm.xlu0 %204, %v128
      %v206 = vpop.permute.xlu0 %205
      %207 = vset.pattern.permute.xlu0 0
      %208 = vperm.xlu0 %207, %v129
      %v209 = vpop.permute.xlu0 %208
      %210 = vset.pattern.permute.xlu0 0
      %211 = vperm.xlu0 %210, %v130
      %v212 = vpop.permute.xlu0 %211
      %213 = vset.pattern.permute.xlu0 0
      %214 = vperm.xlu0 %213, %v131
      %v215 = vpop.permute.xlu0 %214
      %216 = vset.pattern.permute.xlu0 0
      %217 = vperm.xlu0 %216, %v132
      %v218 = vpop.permute.xlu0 %217
      %219 = vset.pattern.permute.xlu0 0
      %220 = vperm.xlu0 %219, %v133
      %v221 = vpop.permute.xlu0 %220
      %222 = vset.pattern.permute.xlu0 0
      %223 = vperm.xlu0 %222, %v134
      %v224 = vpop.permute.xlu0 %223
      %225 = vset.pattern.permute.xlu0 0
      %226 = vperm.xlu0 %225, %v135
      %v227 = vpop.permute.xlu0 %226
      %228 = vset.pattern.permute.xlu0 0
      %229 = vperm.xlu0 %228, %v136
      %v230 = vpop.permute.xlu0 %229
      %231 = vset.pattern.permute.xlu0 0
      %232 = vperm.xlu0 %231, %v137
      %v233 = vpop.permute.xlu0 %232
      %vm234 = vcmp.ge.s32.totalorder %v104, %v140
      %vm235 = vcmp.ge.s32.totalorder %v105, %v140
      %vm236 = vcmp.ge.s32.totalorder %v104, %v143
      %vm237 = vcmp.ge.s32.totalorder %v105, %v143
      %vm238 = vcmp.ge.s32.totalorder %v104, %v146
      %vm239 = vcmp.ge.s32.totalorder %v105, %v146
      %vm240 = vcmp.ge.s32.totalorder %v104, %v149
      %vm241 = vcmp.ge.s32.totalorder %v105, %v149
      %vm242 = vcmp.ge.s32.totalorder %v104, %v152
      %vm243 = vcmp.ge.s32.totalorder %v105, %v152
      %vm244 = vcmp.ge.s32.totalorder %v104, %v155
      %vm245 = vcmp.ge.s32.totalorder %v105, %v155
      %vm246 = vcmp.ge.s32.totalorder %v104, %v158
      %vm247 = vcmp.ge.s32.totalorder %v105, %v158
      %vm248 = vcmp.ge.s32.totalorder %v104, %v161
      %vm249 = vcmp.ge.s32.totalorder %v105, %v161
      %vm250 = vcmp.ge.s32.totalorder %v104, %v164
      %vm251 = vcmp.ge.s32.totalorder %v105, %v164
      %vm252 = vcmp.ge.s32.totalorder %v104, %v167
      %vm253 = vcmp.ge.s32.totalorder %v105, %v167
      %vm254 = vcmp.ge.s32.totalorder %v104, %v170
      %vm255 = vcmp.ge.s32.totalorder %v105, %v170
      %vm256 = vcmp.ge.s32.totalorder %v104, %v173
      %vm257 = vcmp.ge.s32.totalorder %v105, %v173
      %vm258 = vcmp.ge.s32.totalorder %v104, %v176
      %vm259 = vcmp.ge.s32.totalorder %v105, %v176
      %vm260 = vcmp.ge.s32.totalorder %v104, %v179
      %vm261 = vcmp.ge.s32.totalorder %v105, %v179
      %vm262 = vcmp.ge.s32.totalorder %v104, %v182
      %vm263 = vcmp.ge.s32.totalorder %v105, %v182
      %vm264 = vcmp.ge.s32.totalorder %v104, %v185
      %vm265 = vcmp.ge.s32.totalorder %v105, %v185
      %vm266 = vcmp.ge.s32.totalorder %v104, %v188
      %vm267 = vcmp.ge.s32.totalorder %v105, %v188
      %vm268 = vcmp.ge.s32.totalorder %v104, %v191
      %vm269 = vcmp.ge.s32.totalorder %v105, %v191
      %vm270 = vcmp.ge.s32.totalorder %v104, %v194
      %vm271 = vcmp.ge.s32.totalorder %v105, %v194
      %vm272 = vcmp.ge.s32.totalorder %v104, %v197
      %vm273 = vcmp.ge.s32.totalorder %v105, %v197
      %vm274 = vcmp.ge.s32.totalorder %v104, %v200
      %vm275 = vcmp.ge.s32.totalorder %v105, %v200
      %vm276 = vcmp.ge.s32.totalorder %v104, %v203
      %vm277 = vcmp.ge.s32.totalorder %v105, %v203
      %vm278 = vcmp.ge.s32.totalorder %v104, %v206
      %vm279 = vcmp.ge.s32.totalorder %v105, %v206
      %vm280 = vcmp.ge.s32.totalorder %v104, %v209
      %vm281 = vcmp.ge.s32.totalorder %v105, %v209
      %vm282 = vcmp.ge.s32.totalorder %v104, %v212
      %vm283 = vcmp.ge.s32.totalorder %v105, %v212
      %vm284 = vcmp.ge.s32.totalorder %v104, %v215
      %vm285 = vcmp.ge.s32.totalorder %v105, %v215
      %vm286 = vcmp.ge.s32.totalorder %v104, %v218
      %vm287 = vcmp.ge.s32.totalorder %v105, %v218
      %vm288 = vcmp.ge.s32.totalorder %v104, %v221
      %vm289 = vcmp.ge.s32.totalorder %v105, %v221
      %vm290 = vcmp.ge.s32.totalorder %v104, %v224
      %vm291 = vcmp.ge.s32.totalorder %v105, %v224
      %vm292 = vcmp.ge.s32.totalorder %v104, %v227
      %vm293 = vcmp.ge.s32.totalorder %v105, %v227
      %vm294 = vcmp.ge.s32.totalorder %v104, %v230
      %vm295 = vcmp.ge.s32.totalorder %v105, %v230
      %vm296 = vcmp.ge.s32.totalorder %v104, %v233
      %vm297 = vcmp.ge.s32.totalorder %v105, %v233
      %v298 = vld [vmem:[%s3] sm:$0xff]
      %v299 = vld [vmem:[%s3 + $0x8] sm:$0xff]
      %v300 = vld [vmem:[%s3 + $0x10] sm:$0xff]
      %v301 = vld [vmem:[%s3 + $0x18] sm:$0xff]
      %v302 = vld [vmem:[%s3 + $0x20] sm:$0xff]
      %v303 = vld [vmem:[%s3 + $0x28] sm:$0xff]
      %v304 = vld [vmem:[%s3 + $0x30] sm:$0xff]
      %v305 = vld [vmem:[%s3 + $0x38] sm:$0xff]
      %v306 = vld [vmem:[%s3 + $0x40] sm:$0xff]
      %v307 = vld [vmem:[%s3 + $0x48] sm:$0xff]
      %v308 = vld [vmem:[%s3 + $0x50] sm:$0xff]
      %v309 = vld [vmem:[%s3 + $0x58] sm:$0xff]
      %v310 = vld [vmem:[%s3 + $0x60] sm:$0xff]
      %v311 = vld [vmem:[%s3 + $0x68] sm:$0xff]
      %v312 = vld [vmem:[%s3 + $0x70] sm:$0xff]
      %v313 = vld [vmem:[%s3 + $0x78] sm:$0xff]
      %v314 = vld [vmem:[%s3 + $0x80] sm:$0xff]
      %v315 = vld [vmem:[%s3 + $0x88] sm:$0xff]
      %v316 = vld [vmem:[%s3 + $0x90] sm:$0xff]
      %v317 = vld [vmem:[%s3 + $0x98] sm:$0xff]
      %v318 = vld [vmem:[%s3 + $0xa0] sm:$0xff]
      %v319 = vld [vmem:[%s3 + $0xa8] sm:$0xff]
      %v320 = vld [vmem:[%s3 + $0xb0] sm:$0xff]
      %v321 = vld [vmem:[%s3 + $0xb8] sm:$0xff]
      %v322 = vld [vmem:[%s3 + $0xc0] sm:$0xff]
      %v323 = vld [vmem:[%s3 + $0xc8] sm:$0xff]
      %v324 = vld [vmem:[%s3 + $0xd0] sm:$0xff]
      %v325 = vld [vmem:[%s3 + $0xd8] sm:$0xff]
      %v326 = vld [vmem:[%s3 + $0xe0] sm:$0xff]
      %v327 = vld [vmem:[%s3 + $0xe8] sm:$0xff]
      %v328 = vld [vmem:[%s3 + $0xf0] sm:$0xff]
      %v329 = vld [vmem:[%s3 + $0xf8] sm:$0xff]
      %330 = vset.pattern.permute.xlu0 0
      %331 = vperm.xlu0 %330, %v298
      %v332 = vpop.permute.xlu0 %331
      %333 = vset.pattern.permute.xlu0 0
      %334 = vperm.xlu0 %333, %v299
      %v335 = vpop.permute.xlu0 %334
      %336 = vset.pattern.permute.xlu0 0
      %337 = vperm.xlu0 %336, %v300
      %v338 = vpop.permute.xlu0 %337
      %339 = vset.pattern.permute.xlu0 0
      %340 = vperm.xlu0 %339, %v301
      %v341 = vpop.permute.xlu0 %340
      %342 = vset.pattern.permute.xlu0 0
      %343 = vperm.xlu0 %342, %v302
      %v344 = vpop.permute.xlu0 %343
      %345 = vset.pattern.permute.xlu0 0
      %346 = vperm.xlu0 %345, %v303
      %v347 = vpop.permute.xlu0 %346
      %348 = vset.pattern.permute.xlu0 0
      %349 = vperm.xlu0 %348, %v304
      %v350 = vpop.permute.xlu0 %349
      %351 = vset.pattern.permute.xlu0 0
      %352 = vperm.xlu0 %351, %v305
      %v353 = vpop.permute.xlu0 %352
      %354 = vset.pattern.permute.xlu0 0
      %355 = vperm.xlu0 %354, %v306
      %v356 = vpop.permute.xlu0 %355
      %357 = vset.pattern.permute.xlu0 0
      %358 = vperm.xlu0 %357, %v307
      %v359 = vpop.permute.xlu0 %358
      %360 = vset.pattern.permute.xlu0 0
      %361 = vperm.xlu0 %360, %v308
      %v362 = vpop.permute.xlu0 %361
      %363 = vset.pattern.permute.xlu0 0
      %364 = vperm.xlu0 %363, %v309
      %v365 = vpop.permute.xlu0 %364
      %366 = vset.pattern.permute.xlu0 0
      %367 = vperm.xlu0 %366, %v310
      %v368 = vpop.permute.xlu0 %367
      %369 = vset.pattern.permute.xlu0 0
      %370 = vperm.xlu0 %369, %v311
      %v371 = vpop.permute.xlu0 %370
      %372 = vset.pattern.permute.xlu0 0
      %373 = vperm.xlu0 %372, %v312
      %v374 = vpop.permute.xlu0 %373
      %375 = vset.pattern.permute.xlu0 0
      %376 = vperm.xlu0 %375, %v313
      %v377 = vpop.permute.xlu0 %376
      %378 = vset.pattern.permute.xlu0 0
      %379 = vperm.xlu0 %378, %v314
      %v380 = vpop.permute.xlu0 %379
      %381 = vset.pattern.permute.xlu0 0
      %382 = vperm.xlu0 %381, %v315
      %v383 = vpop.permute.xlu0 %382
      %384 = vset.pattern.permute.xlu0 0
      %385 = vperm.xlu0 %384, %v316
      %v386 = vpop.permute.xlu0 %385
      %387 = vset.pattern.permute.xlu0 0
      %388 = vperm.xlu0 %387, %v317
      %v389 = vpop.permute.xlu0 %388
      %390 = vset.pattern.permute.xlu0 0
      %391 = vperm.xlu0 %390, %v318
      %v392 = vpop.permute.xlu0 %391
      %393 = vset.pattern.permute.xlu0 0
      %394 = vperm.xlu0 %393, %v319
      %v395 = vpop.permute.xlu0 %394
      %396 = vset.pattern.permute.xlu0 0
      %397 = vperm.xlu0 %396, %v320
      %v398 = vpop.permute.xlu0 %397
      %399 = vset.pattern.permute.xlu0 0
      %400 = vperm.xlu0 %399, %v321
      %v401 = vpop.permute.xlu0 %400
      %402 = vset.pattern.permute.xlu0 0
      %403 = vperm.xlu0 %402, %v322
      %v404 = vpop.permute.xlu0 %403
      %405 = vset.pattern.permute.xlu0 0
      %406 = vperm.xlu0 %405, %v323
      %v407 = vpop.permute.xlu0 %406
      %408 = vset.pattern.permute.xlu0 0
      %409 = vperm.xlu0 %408, %v324
      %v410 = vpop.permute.xlu0 %409
      %411 = vset.pattern.permute.xlu0 0
      %412 = vperm.xlu0 %411, %v325
      %v413 = vpop.permute.xlu0 %412
      %414 = vset.pattern.permute.xlu0 0
      %415 = vperm.xlu0 %414, %v326
      %v416 = vpop.permute.xlu0 %415
      %417 = vset.pattern.permute.xlu0 0
      %418 = vperm.xlu0 %417, %v327
      %v419 = vpop.permute.xlu0 %418
      %420 = vset.pattern.permute.xlu0 0
      %421 = vperm.xlu0 %420, %v328
      %v422 = vpop.permute.xlu0 %421
      %423 = vset.pattern.permute.xlu0 0
      %424 = vperm.xlu0 %423, %v329
      %v425 = vpop.permute.xlu0 %424
      %vm426 = vcmp.lt.s32.totalorder %v104, %v332
      %vm427 = vcmp.lt.s32.totalorder %v105, %v332
      %vm428 = vcmp.lt.s32.totalorder %v104, %v335
      %vm429 = vcmp.lt.s32.totalorder %v105, %v335
      %vm430 = vcmp.lt.s32.totalorder %v104, %v338
      %vm431 = vcmp.lt.s32.totalorder %v105, %v338
      %vm432 = vcmp.lt.s32.totalorder %v104, %v341
      %vm433 = vcmp.lt.s32.totalorder %v105, %v341
      %vm434 = vcmp.lt.s32.totalorder %v104, %v344
      %vm435 = vcmp.lt.s32.totalorder %v105, %v344
      %vm436 = vcmp.lt.s32.totalorder %v104, %v347
      %vm437 = vcmp.lt.s32.totalorder %v105, %v347
      %vm438 = vcmp.lt.s32.totalorder %v104, %v350
      %vm439 = vcmp.lt.s32.totalorder %v105, %v350
      %vm440 = vcmp.lt.s32.totalorder %v104, %v353
      %vm441 = vcmp.lt.s32.totalorder %v105, %v353
      %vm442 = vcmp.lt.s32.totalorder %v104, %v356
      %vm443 = vcmp.lt.s32.totalorder %v105, %v356
      %vm444 = vcmp.lt.s32.totalorder %v104, %v359
      %vm445 = vcmp.lt.s32.totalorder %v105, %v359
      %vm446 = vcmp.lt.s32.totalorder %v104, %v362
      %vm447 = vcmp.lt.s32.totalorder %v105, %v362
      %vm448 = vcmp.lt.s32.totalorder %v104, %v365
      %vm449 = vcmp.lt.s32.totalorder %v105, %v365
      %vm450 = vcmp.lt.s32.totalorder %v104, %v368
      %vm451 = vcmp.lt.s32.totalorder %v105, %v368
      %vm452 = vcmp.lt.s32.totalorder %v104, %v371
      %vm453 = vcmp.lt.s32.totalorder %v105, %v371
      %vm454 = vcmp.lt.s32.totalorder %v104, %v374
      %vm455 = vcmp.lt.s32.totalorder %v105, %v374
      %vm456 = vcmp.lt.s32.totalorder %v104, %v377
      %vm457 = vcmp.lt.s32.totalorder %v105, %v377
      %vm458 = vcmp.lt.s32.totalorder %v104, %v380
      %vm459 = vcmp.lt.s32.totalorder %v105, %v380
      %vm460 = vcmp.lt.s32.totalorder %v104, %v383
      %vm461 = vcmp.lt.s32.totalorder %v105, %v383
      %vm462 = vcmp.lt.s32.totalorder %v104, %v386
      %vm463 = vcmp.lt.s32.totalorder %v105, %v386
      %vm464 = vcmp.lt.s32.totalorder %v104, %v389
      %vm465 = vcmp.lt.s32.totalorder %v105, %v389
      %vm466 = vcmp.lt.s32.totalorder %v104, %v392
      %vm467 = vcmp.lt.s32.totalorder %v105, %v392
      %vm468 = vcmp.lt.s32.totalorder %v104, %v395
      %vm469 = vcmp.lt.s32.totalorder %v105, %v395
      %vm470 = vcmp.lt.s32.totalorder %v104, %v398
      %vm471 = vcmp.lt.s32.totalorder %v105, %v398
      %vm472 = vcmp.lt.s32.totalorder %v104, %v401
      %vm473 = vcmp.lt.s32.totalorder %v105, %v401
      %vm474 = vcmp.lt.s32.totalorder %v104, %v404
      %vm475 = vcmp.lt.s32.totalorder %v105, %v404
      %vm476 = vcmp.lt.s32.totalorder %v104, %v407
      %vm477 = vcmp.lt.s32.totalorder %v105, %v407
      %vm478 = vcmp.lt.s32.totalorder %v104, %v410
      %vm479 = vcmp.lt.s32.totalorder %v105, %v410
      %vm480 = vcmp.lt.s32.totalorder %v104, %v413
      %vm481 = vcmp.lt.s32.totalorder %v105, %v413
      %vm482 = vcmp.lt.s32.totalorder %v104, %v416
      %vm483 = vcmp.lt.s32.totalorder %v105, %v416
      %vm484 = vcmp.lt.s32.totalorder %v104, %v419
      %vm485 = vcmp.lt.s32.totalorder %v105, %v419
      %vm486 = vcmp.lt.s32.totalorder %v104, %v422
      %vm487 = vcmp.lt.s32.totalorder %v105, %v422
      %vm488 = vcmp.lt.s32.totalorder %v104, %v425
      %vm489 = vcmp.lt.s32.totalorder %v105, %v425
      %vm490 = vmand %vm234, %vm426
      %vm491 = vmand %vm235, %vm427
      %vm492 = vmand %vm236, %vm428
      %vm493 = vmand %vm237, %vm429
      %vm494 = vmand %vm238, %vm430
      %vm495 = vmand %vm239, %vm431
      %vm496 = vmand %vm240, %vm432
      %vm497 = vmand %vm241, %vm433
      %vm498 = vmand %vm242, %vm434
      %vm499 = vmand %vm243, %vm435
      %vm500 = vmand %vm244, %vm436
      %vm501 = vmand %vm245, %vm437
      %vm502 = vmand %vm246, %vm438
      %vm503 = vmand %vm247, %vm439
      %vm504 = vmand %vm248, %vm440
      %vm505 = vmand %vm249, %vm441
      %vm506 = vmand %vm250, %vm442
      %vm507 = vmand %vm251, %vm443
      %vm508 = vmand %vm252, %vm444
      %vm509 = vmand %vm253, %vm445
      %vm510 = vmand %vm254, %vm446
      %vm511 = vmand %vm255, %vm447
      %vm512 = vmand %vm256, %vm448
      %vm513 = vmand %vm257, %vm449
      %vm514 = vmand %vm258, %vm450
      %vm515 = vmand %vm259, %vm451
      %vm516 = vmand %vm260, %vm452
      %vm517 = vmand %vm261, %vm453
      %vm518 = vmand %vm262, %vm454
      %vm519 = vmand %vm263, %vm455
      %vm520 = vmand %vm264, %vm456
      %vm521 = vmand %vm265, %vm457
      %vm522 = vmand %vm266, %vm458
      %vm523 = vmand %vm267, %vm459
      %vm524 = vmand %vm268, %vm460
      %vm525 = vmand %vm269, %vm461
      %vm526 = vmand %vm270, %vm462
      %vm527 = vmand %vm271, %vm463
      %vm528 = vmand %vm272, %vm464
      %vm529 = vmand %vm273, %vm465
      %vm530 = vmand %vm274, %vm466
      %vm531 = vmand %vm275, %vm467
      %vm532 = vmand %vm276, %vm468
      %vm533 = vmand %vm277, %vm469
      %vm534 = vmand %vm278, %vm470
      %vm535 = vmand %vm279, %vm471
      %vm536 = vmand %vm280, %vm472
      %vm537 = vmand %vm281, %vm473
      %vm538 = vmand %vm282, %vm474
      %vm539 = vmand %vm283, %vm475
      %vm540 = vmand %vm284, %vm476
      %vm541 = vmand %vm285, %vm477
      %vm542 = vmand %vm286, %vm478
      %vm543 = vmand %vm287, %vm479
      %vm544 = vmand %vm288, %vm480
      %vm545 = vmand %vm289, %vm481
      %vm546 = vmand %vm290, %vm482
      %vm547 = vmand %vm291, %vm483
      %vm548 = vmand %vm292, %vm484
      %vm549 = vmand %vm293, %vm485
      %vm550 = vmand %vm294, %vm486
      %vm551 = vmand %vm295, %vm487
      %vm552 = vmand %vm296, %vm488
      %vm553 = vmand %vm297, %vm489
      %v554 = vld [vmem:[#allocation2] sm:$0xff]
      %v555 = vld [vmem:[#allocation2 + $0x8] sm:$0xff]
      %v556 = vld [vmem:[#allocation2 + $0x10] sm:$0xff]
      %v557 = vld [vmem:[#allocation2 + $0x18] sm:$0xff]
      %v558 = vld [vmem:[#allocation2 + $0x20] sm:$0xff]
      %v559 = vld [vmem:[#allocation2 + $0x28] sm:$0xff]
      %v560 = vld [vmem:[#allocation2 + $0x30] sm:$0xff]
      %v561 = vld [vmem:[#allocation2 + $0x38] sm:$0xff]
      %v562 = vld [vmem:[#allocation2 + $0x40] sm:$0xff]
      %v563 = vld [vmem:[#allocation2 + $0x48] sm:$0xff]
      %v564 = vld [vmem:[#allocation2 + $0x50] sm:$0xff]
      %v565 = vld [vmem:[#allocation2 + $0x58] sm:$0xff]
      %v566 = vld [vmem:[#allocation2 + $0x60] sm:$0xff]
      %v567 = vld [vmem:[#allocation2 + $0x68] sm:$0xff]
      %v568 = vld [vmem:[#allocation2 + $0x70] sm:$0xff]
      %v569 = vld [vmem:[#allocation2 + $0x78] sm:$0xff]
      %v570 = vld [vmem:[#allocation2 + $0x80] sm:$0xff]
      %v571 = vld [vmem:[#allocation2 + $0x88] sm:$0xff]
      %v572 = vld [vmem:[#allocation2 + $0x90] sm:$0xff]
      %v573 = vld [vmem:[#allocation2 + $0x98] sm:$0xff]
      %v574 = vld [vmem:[#allocation2 + $0xa0] sm:$0xff]
      %v575 = vld [vmem:[#allocation2 + $0xa8] sm:$0xff]
      %v576 = vld [vmem:[#allocation2 + $0xb0] sm:$0xff]
      %v577 = vld [vmem:[#allocation2 + $0xb8] sm:$0xff]
      %v578 = vld [vmem:[#allocation2 + $0xc0] sm:$0xff]
      %v579 = vld [vmem:[#allocation2 + $0xc8] sm:$0xff]
      %v580 = vld [vmem:[#allocation2 + $0xd0] sm:$0xff]
      %v581 = vld [vmem:[#allocation2 + $0xd8] sm:$0xff]
      %v582 = vld [vmem:[#allocation2 + $0xe0] sm:$0xff]
      %v583 = vld [vmem:[#allocation2 + $0xe8] sm:$0xff]
      %v584 = vld [vmem:[#allocation2 + $0xf0] sm:$0xff]
      %v585 = vld [vmem:[#allocation2 + $0xf8] sm:$0xff]
      %v586 = vsel %vm490, 1, 0
      %v587 = vsel %vm491, 1, 0
      %v588 = vsel %vm492, 1, 0
      %v589 = vsel %vm493, 1, 0
      %v590 = vsel %vm494, 1, 0
      %v591 = vsel %vm495, 1, 0
      %v592 = vsel %vm496, 1, 0
      %v593 = vsel %vm497, 1, 0
      %v594 = vsel %vm498, 1, 0
      %v595 = vsel %vm499, 1, 0
      %v596 = vsel %vm500, 1, 0
      %v597 = vsel %vm501, 1, 0
      %v598 = vsel %vm502, 1, 0
      %v599 = vsel %vm503, 1, 0
      %v600 = vsel %vm504, 1, 0
      %v601 = vsel %vm505, 1, 0
      %v602 = vsel %vm506, 1, 0
      %v603 = vsel %vm507, 1, 0
      %v604 = vsel %vm508, 1, 0
      %v605 = vsel %vm509, 1, 0
      %v606 = vsel %vm510, 1, 0
      %v607 = vsel %vm511, 1, 0
      %v608 = vsel %vm512, 1, 0
      %v609 = vsel %vm513, 1, 0
      %v610 = vsel %vm514, 1, 0
      %v611 = vsel %vm515, 1, 0
      %v612 = vsel %vm516, 1, 0
      %v613 = vsel %vm517, 1, 0
      %v614 = vsel %vm518, 1, 0
      %v615 = vsel %vm519, 1, 0
      %v616 = vsel %vm520, 1, 0
      %v617 = vsel %vm521, 1, 0
      %v618 = vsel %vm522, 1, 0
      %v619 = vsel %vm523, 1, 0
      %v620 = vsel %vm524, 1, 0
      %v621 = vsel %vm525, 1, 0
      %v622 = vsel %vm526, 1, 0
      %v623 = vsel %vm527, 1, 0
      %v624 = vsel %vm528, 1, 0
      %v625 = vsel %vm529, 1, 0
      %v626 = vsel %vm530, 1, 0
      %v627 = vsel %vm531, 1, 0
      %v628 = vsel %vm532, 1, 0
      %v629 = vsel %vm533, 1, 0
      %v630 = vsel %vm534, 1, 0
      %v631 = vsel %vm535, 1, 0
      %v632 = vsel %vm536, 1, 0
      %v633 = vsel %vm537, 1, 0
      %v634 = vsel %vm538, 1, 0
      %v635 = vsel %vm539, 1, 0
      %v636 = vsel %vm540, 1, 0
      %v637 = vsel %vm541, 1, 0
      %v638 = vsel %vm542, 1, 0
      %v639 = vsel %vm543, 1, 0
      %v640 = vsel %vm544, 1, 0
      %v641 = vsel %vm545, 1, 0
      %v642 = vsel %vm546, 1, 0
      %v643 = vsel %vm547, 1, 0
      %v644 = vsel %vm548, 1, 0
      %v645 = vsel %vm549, 1, 0
      %v646 = vsel %vm550, 1, 0
      %v647 = vsel %vm551, 1, 0
      %v648 = vsel %vm552, 1, 0
      %v649 = vsel %vm553, 1, 0
      %v650 = vcvt.s32.f32 %v586
      %v651 = vcvt.s32.f32 %v587
      %v652 = vcvt.s32.f32 %v588
      %v653 = vcvt.s32.f32 %v589
      %v654 = vcvt.s32.f32 %v590
      %v655 = vcvt.s32.f32 %v591
      %v656 = vcvt.s32.f32 %v592
      %v657 = vcvt.s32.f32 %v593
      %v658 = vcvt.s32.f32 %v594
      %v659 = vcvt.s32.f32 %v595
      %v660 = vcvt.s32.f32 %v596
      %v661 = vcvt.s32.f32 %v597
      %v662 = vcvt.s32.f32 %v598
      %v663 = vcvt.s32.f32 %v599
      %v664 = vcvt.s32.f32 %v600
      %v665 = vcvt.s32.f32 %v601
      %v666 = vcvt.s32.f32 %v602
      %v667 = vcvt.s32.f32 %v603
      %v668 = vcvt.s32.f32 %v604
      %v669 = vcvt.s32.f32 %v605
      %v670 = vcvt.s32.f32 %v606
      %v671 = vcvt.s32.f32 %v607
      %v672 = vcvt.s32.f32 %v608
      %v673 = vcvt.s32.f32 %v609
      %v674 = vcvt.s32.f32 %v610
      %v675 = vcvt.s32.f32 %v611
      %v676 = vcvt.s32.f32 %v612
      %v677 = vcvt.s32.f32 %v613
      %v678 = vcvt.s32.f32 %v614
      %v679 = vcvt.s32.f32 %v615
      %v680 = vcvt.s32.f32 %v616
      %v681 = vcvt.s32.f32 %v617
      %v682 = vcvt.s32.f32 %v618
      %v683 = vcvt.s32.f32 %v619
      %v684 = vcvt.s32.f32 %v620
      %v685 = vcvt.s32.f32 %v621
      %v686 = vcvt.s32.f32 %v622
      %v687 = vcvt.s32.f32 %v623
      %v688 = vcvt.s32.f32 %v624
      %v689 = vcvt.s32.f32 %v625
      %v690 = vcvt.s32.f32 %v626
      %v691 = vcvt.s32.f32 %v627
      %v692 = vcvt.s32.f32 %v628
      %v693 = vcvt.s32.f32 %v629
      %v694 = vcvt.s32.f32 %v630
      %v695 = vcvt.s32.f32 %v631
      %v696 = vcvt.s32.f32 %v632
      %v697 = vcvt.s32.f32 %v633
      %v698 = vcvt.s32.f32 %v634
      %v699 = vcvt.s32.f32 %v635
      %v700 = vcvt.s32.f32 %v636
      %v701 = vcvt.s32.f32 %v637
      %v702 = vcvt.s32.f32 %v638
      %v703 = vcvt.s32.f32 %v639
      %v704 = vcvt.s32.f32 %v640
      %v705 = vcvt.s32.f32 %v641
      %v706 = vcvt.s32.f32 %v642
      %v707 = vcvt.s32.f32 %v643
      %v708 = vcvt.s32.f32 %v644
      %v709 = vcvt.s32.f32 %v645
      %v710 = vcvt.s32.f32 %v646
      %v711 = vcvt.s32.f32 %v647
      %v712 = vcvt.s32.f32 %v648
      %v713 = vcvt.s32.f32 %v649
      %v714 = vld [vmem:[%s50] sm:$0xff]
      %v715 = vld [vmem:[%s50 + $0x8] sm:$0xff]
      %v716 = vld [vmem:[%s50 + $0x10] sm:$0xff]
      %v717 = vld [vmem:[%s50 + $0x18] sm:$0xff]
      %v718 = vld [vmem:[%s50 + $0x20] sm:$0xff]
      %v719 = vld [vmem:[%s50 + $0x28] sm:$0xff]
      %v720 = vld [vmem:[%s50 + $0x30] sm:$0xff]
      %v721 = vld [vmem:[%s50 + $0x38] sm:$0xff]
      %v722 = vld [vmem:[%s50 + $0x40] sm:$0xff]
      %v723 = vld [vmem:[%s50 + $0x48] sm:$0xff]
      %v724 = vld [vmem:[%s50 + $0x50] sm:$0xff]
      %v725 = vld [vmem:[%s50 + $0x58] sm:$0xff]
      %v726 = vld [vmem:[%s50 + $0x60] sm:$0xff]
      %v727 = vld [vmem:[%s50 + $0x68] sm:$0xff]
      %v728 = vld [vmem:[%s50 + $0x70] sm:$0xff]
      %v729 = vld [vmem:[%s50 + $0x78] sm:$0xff]
      %v730 = vld [vmem:[%s50 + $0x80] sm:$0xff]
      %v731 = vld [vmem:[%s50 + $0x88] sm:$0xff]
      %v732 = vld [vmem:[%s50 + $0x90] sm:$0xff]
      %v733 = vld [vmem:[%s50 + $0x98] sm:$0xff]
      %v734 = vld [vmem:[%s50 + $0xa0] sm:$0xff]
      %v735 = vld [vmem:[%s50 + $0xa8] sm:$0xff]
      %v736 = vld [vmem:[%s50 + $0xb0] sm:$0xff]
      %v737 = vld [vmem:[%s50 + $0xb8] sm:$0xff]
      %v738 = vld [vmem:[%s50 + $0xc0] sm:$0xff]
      %v739 = vld [vmem:[%s50 + $0xc8] sm:$0xff]
      %v740 = vld [vmem:[%s50 + $0xd0] sm:$0xff]
      %v741 = vld [vmem:[%s50 + $0xd8] sm:$0xff]
      %v742 = vld [vmem:[%s50 + $0xe0] sm:$0xff]
      %v743 = vld [vmem:[%s50 + $0xe8] sm:$0xff]
      %v744 = vld [vmem:[%s50 + $0xf0] sm:$0xff]
      %v745 = vld [vmem:[%s50 + $0xf8] sm:$0xff]
      %746 = vmatprep.subr.mxu0 0.0
      %v747 = vand.u32 %v714, 4294901760
      %748 = vmatpush1.msra.mxu0 %v747
      %749 = vmatprep.subr.mxu0 0.0
      %v750 = vand.u32 %v715, 4294901760
      %751 = vmatpush1.msra.mxu0 %v750
      %752 = vmatprep.subr.mxu0 0.0
      %v753 = vand.u32 %v716, 4294901760
      %754 = vmatpush1.msra.mxu0 %v753
      %755 = vmatprep.subr.mxu0 0.0
      %v756 = vand.u32 %v717, 4294901760
      %757 = vmatpush1.msra.mxu0 %v756
      %758 = vmatprep.subr.mxu0 0.0
      %v759 = vand.u32 %v718, 4294901760
      %760 = vmatpush1.msra.mxu0 %v759
      %761 = vmatprep.subr.mxu0 0.0
      %v762 = vand.u32 %v719, 4294901760
      %763 = vmatpush1.msra.mxu0 %v762
      %764 = vmatprep.subr.mxu0 0.0
      %v765 = vand.u32 %v720, 4294901760
      %766 = vmatpush1.msra.mxu0 %v765
      %767 = vmatprep.subr.mxu0 0.0
      %v768 = vand.u32 %v721, 4294901760
      %769 = vmatpush1.msra.mxu0 %v768
      %770 = vmatprep.subr.mxu0 0.0
      %v771 = vand.u32 %v722, 4294901760
      %772 = vmatpush1.msra.mxu0 %v771
      %773 = vmatprep.subr.mxu0 0.0
      %v774 = vand.u32 %v723, 4294901760
      %775 = vmatpush1.msra.mxu0 %v774
      %776 = vmatprep.subr.mxu0 0.0
      %v777 = vand.u32 %v724, 4294901760
      %778 = vmatpush1.msra.mxu0 %v777
      %779 = vmatprep.subr.mxu0 0.0
      %v780 = vand.u32 %v725, 4294901760
      %781 = vmatpush1.msra.mxu0 %v780
      %782 = vmatprep.subr.mxu0 0.0
      %v783 = vand.u32 %v726, 4294901760
      %784 = vmatpush1.msra.mxu0 %v783
      %785 = vmatprep.subr.mxu0 0.0
      %v786 = vand.u32 %v727, 4294901760
      %787 = vmatpush1.msra.mxu0 %v786
      %788 = vmatprep.subr.mxu0 0.0
      %v789 = vand.u32 %v728, 4294901760
      %790 = vmatpush1.msra.mxu0 %v789
      %791 = vmatprep.subr.mxu0 0.0
      %v792 = vand.u32 %v729, 4294901760
      %793 = vmatpush1.msra.mxu0 %v792
      %794 = vmatprep.subr.mxu0 0.0
      %v795 = vand.u32 %v730, 4294901760
      %796 = vmatpush1.msra.mxu0 %v795
      %797 = vmatprep.subr.mxu0 0.0
      %v798 = vand.u32 %v731, 4294901760
      %799 = vmatpush1.msra.mxu0 %v798
      %800 = vmatprep.subr.mxu0 0.0
      %v801 = vand.u32 %v732, 4294901760
      %802 = vmatpush1.msra.mxu0 %v801
      %803 = vmatprep.subr.mxu0 0.0
      %v804 = vand.u32 %v733, 4294901760
      %805 = vmatpush1.msra.mxu0 %v804
      %806 = vmatprep.subr.mxu0 0.0
      %v807 = vand.u32 %v734, 4294901760
      %808 = vmatpush1.msra.mxu0 %v807
      %809 = vmatprep.subr.mxu0 0.0
      %v810 = vand.u32 %v735, 4294901760
      %811 = vmatpush1.msra.mxu0 %v810
      %812 = vmatprep.subr.mxu0 0.0
      %v813 = vand.u32 %v736, 4294901760
      %814 = vmatpush1.msra.mxu0 %v813
      %815 = vmatprep.subr.mxu0 0.0
      %v816 = vand.u32 %v737, 4294901760
      %817 = vmatpush1.msra.mxu0 %v816
      %818 = vmatprep.subr.mxu0 0.0
      %v819 = vand.u32 %v738, 4294901760
      %820 = vmatpush1.msra.mxu0 %v819
      %821 = vmatprep.subr.mxu0 0.0
      %v822 = vand.u32 %v739, 4294901760
      %823 = vmatpush1.msra.mxu0 %v822
      %824 = vmatprep.subr.mxu0 0.0
      %v825 = vand.u32 %v740, 4294901760
      %826 = vmatpush1.msra.mxu0 %v825
      %827 = vmatprep.subr.mxu0 0.0
      %v828 = vand.u32 %v741, 4294901760
      %829 = vmatpush1.msra.mxu0 %v828
      %830 = vmatprep.subr.mxu0 0.0
      %v831 = vand.u32 %v742, 4294901760
      %832 = vmatpush1.msra.mxu0 %v831
      %833 = vmatprep.subr.mxu0 0.0
      %v834 = vand.u32 %v743, 4294901760
      %835 = vmatpush1.msra.mxu0 %v834
      %836 = vmatprep.subr.mxu0 0.0
      %v837 = vand.u32 %v744, 4294901760
      %838 = vmatpush1.msra.mxu0 %v837
      %839 = vmatprep.subr.mxu0 0.0
      %v840 = vand.u32 %v745, 4294901760
      %841 = vmatpush1.msra.mxu0 %v840
      %v842 = vand.u32 %v651, 4294901760
      %v843 = vsub.f32 %v651, %v842
      %v844 = vand.u32 %v843, 4294901760
      %v845 = vsub.f32 %v843, %v844
      %v846 = vand.u32 %v845, 4294901760
      %847 = vmatprep.mubr.f32.mxu0 %v846
      %v848 = vand.u32 %v650, 4294901760
      %v849 = vsub.f32 %v650, %v848
      %v850 = vand.u32 %v849, 4294901760
      %v851 = vsub.f32 %v849, %v850
      %v852 = vand.u32 %v851, 4294901760
      %853 = vmatmul.mubr.f32.gmra.mrb[0].mxu0 %v852
      %v854 = vpop.f32.mrb[0].mxu0
      %v855 = vadd.f32 0.0, %v854
      %v856 = vpop.f32.mrb[0].mxu0
      %v857 = vand.u32 %v653, 4294901760
      %v858 = vsub.f32 %v653, %v857
      %v859 = vand.u32 %v858, 4294901760
      %v860 = vsub.f32 %v858, %v859
      %v861 = vand.u32 %v860, 4294901760
      %862 = vmatprep.mubr.f32.mxu0 %v861
      %v863 = vand.u32 %v652, 4294901760
      %v864 = vsub.f32 %v652, %v863
      %v865 = vand.u32 %v864, 4294901760
      %v866 = vsub.f32 %v864, %v865
      %v867 = vand.u32 %v866, 4294901760
      %868 = vmatmul.mubr.f32.gmra.mrb[0].mxu0 %v867
      %v869 = vpop.f32.mrb[0].mxu0
      %v870 = vadd.f32 0.0, %v869
      %v871 = vpop.f32.mrb[0].mxu0
      %v872 = vand.u32 %v655, 4294901760
      %v873 = vsub.f32 %v655, %v872
      %v874 = vand.u32 %v873, 4294901760
      %v875 = vsub.f32 %v873, %v874
      %v876 = vand.u32 %v875, 4294901760
      %877 = vmatprep.mubr.f32.mxu0 %v876
      %v878 = vand.u32 %v654, 4294901760
      %v879 = vsub.f32 %v654, %v878
      %v880 = vand.u32 %v879, 4294901760
      %v881 = vsub.f32 %v879, %v880
      %v882 = vand.u32 %v881, 4294901760
      %883 = vmatmul.mubr.f32.gmra.mrb[0].mxu0 %v882
      %v884 = vpop.f32.mrb[0].mxu0
      %v885 = vadd.f32 0.0, %v884
      %v886 = vpop.f32.mrb[0].mxu0
      %v887 = vand.u32 %v657, 4294901760
      %v888 = vsub.f32 %v657, %v887
      %v889 = vand.u32 %v888, 4294901760
      %v890 = vsub.f32 %v888, %v889
      %v891 = vand.u32 %v890, 4294901760
      %892 = vmatprep.mubr.f32.mxu0 %v891
      %v893 = vand.u32 %v656, 4294901760
      %v894 = vsub.f32 %v656, %v893
      %v895 = vand.u32 %v894, 4294901760
      %v896 = vsub.f32 %v894, %v895
      %v897 = vand.u32 %v896, 4294901760
      %898 = vmatmul.mubr.f32.gmra.mrb[0].mxu0 %v897
      %v899 = vpop.f32.mrb[0].mxu0
      %v900 = vadd.f32 0.0, %v899
      %v901 = vpop.f32.mrb[0].mxu0
      %v902 = vand.u32 %v659, 4294901760
      %v903 = vsub.f32 %v659, %v902
      %v904 = vand.u32 %v903, 4294901760
      %v905 = vsub.f32 %v903, %v904
      %v906 = vand.u32 %v905, 4294901760
      %907 = vmatprep.mubr.f32.mxu0 %v906
      %v908 = vand.u32 %v658, 4294901760
      %v909 = vsub.f32 %v658, %v908
      %v910 = vand.u32 %v909, 4294901760
      %v911 = vsub.f32 %v909, %v910
      %v912 = vand.u32 %v911, 4294901760
      %913 = vmatmul.mubr.f32.gmra.mrb[0].mxu0 %v912
      %v914 = vpop.f32.mrb[0].mxu0
      %v915 = vadd.f32 0.0, %v914
      %v916 = vpop.f32.mrb[0].mxu0
      %v917 = vand.u32 %v661, 4294901760
      %v918 = vsub.f32 %v661, %v917
      %v919 = vand.u32 %v918, 4294901760
      %v920 = vsub.f32 %v918, %v919
      %v921 = vand.u32 %v920, 4294901760
      %922 = vmatprep.mubr.f32.mxu0 %v921
      %v923 = vand.u32 %v660, 4294901760
      %v924 = vsub.f32 %v660, %v923
      %v925 = vand.u32 %v924, 4294901760
      %v926 = vsub.f32 %v924, %v925
      %v927 = vand.u32 %v926, 4294901760
      %928 = vmatmul.mubr.f32.gmra.mrb[0].mxu0 %v927
      %v929 = vpop.f32.mrb[0].mxu0
      %v930 = vadd.f32 0.0, %v929
      %v931 = vpop.f32.mrb[0].mxu0
      %v932 = vand.u32 %v663, 4294901760
      %v933 = vsub.f32 %v663, %v932
      %v934 = vand.u32 %v933, 4294901760
      %v935 = vsub.f32 %v933, %v934
      %v936 = vand.u32 %v935, 4294901760
      %937 = vmatprep.mubr.f32.mxu0 %v936
      %v938 = vand.u32 %v662, 4294901760
      %v939 = vsub.f32 %v662, %v938
      %v940 = vand.u32 %v939, 4294901760
      %v941 = vsub.f32 %v939, %v940
      %v942 = vand.u32 %v941, 4294901760
      %943 = vmatmul.mubr.f32.gmra.mrb[0].mxu0 %v942
      %v944 = vpop.f32.mrb[0].mxu0
      %v945 = vadd.f32 0.0, %v944
      %v946 = vpop.f32.mrb[0].mxu0
      %v947 = vand.u32 %v665, 4294901760
      %v948 = vsub.f32 %v665, %v947
      %v949 = vand.u32 %v948, 4294901760
      %v950 = vsub.f32 %v948, %v949
      %v951 = vand.u32 %v950, 4294901760
      %952 = vmatprep.mubr.f32.mxu0 %v951
      %v953 = vand.u32 %v664, 4294901760
      %v954 = vsub.f32 %v664, %v953
      %v955 = vand.u32 %v954, 4294901760
      %v956 = vsub.f32 %v954, %v955
      %v957 = vand.u32 %v956, 4294901760
      %958 = vmatmul.mubr.f32.gmra.mrb[0].mxu0 %v957
      %v959 = vpop.f32.mrb[0].mxu0
      %v960 = vadd.f32 0.0, %v959
      %v961 = vpop.f32.mrb[0].mxu0
      %v962 = vand.u32 %v667, 4294901760
      %v963 = vsub.f32 %v667, %v962
      %v964 = vand.u32 %v963, 4294901760
      %v965 = vsub.f32 %v963, %v964
      %v966 = vand.u32 %v965, 4294901760
      %967 = vmatprep.mubr.f32.mxu0 %v966
      %v968 = vand.u32 %v666, 4294901760
      %v969 = vsub.f32 %v666, %v968
      %v970 = vand.u32 %v969, 4294901760
      %v971 = vsub.f32 %v969, %v970
      %v972 = vand.u32 %v971, 4294901760
      %973 = vmatmul.mubr.f32.gmra.mrb[0].mxu0 %v972
      %v974 = vpop.f32.mrb[0].mxu0
      %v975 = vadd.f32 0.0, %v974
      %v976 = vpop.f32.mrb[0].mxu0
      %v977 = vand.u32 %v669, 4294901760
      %v978 = vsub.f32 %v669, %v977
      %v979 = vand.u32 %v978, 4294901760
      %v980 = vsub.f32 %v978, %v979
      %v981 = vand.u32 %v980, 4294901760
      %982 = vmatprep.mubr.f32.mxu0 %v981
      %v983 = vand.u32 %v668, 4294901760
      %v984 = vsub.f32 %v668, %v983
      %v985 = vand.u32 %v984, 4294901760
      %v986 = vsub.f32 %v984, %v985
      %v987 = vand.u32 %v986, 4294901760
      %988 = vmatmul.mubr.f32.gmra.mrb[0].mxu0 %v987
      %v989 = vpop.f32.mrb[0].mxu0
      %v990 = vadd.f32 0.0, %v989
      %v991 = vpop.f32.mrb[0].mxu0
      %v992 = vand.u32 %v671, 4294901760
      %v993 = vsub.f32 %v671, %v992
      %v994 = vand.u32 %v993, 4294901760
      %v995 = vsub.f32 %v993, %v994
      %v996 = vand.u32 %v995, 4294901760
      %997 = vmatprep.mubr.f32.mxu0 %v996
      %v998 = vand.u32 %v670, 4294901760
      %v999 = vsub.f32 %v670, %v998
      %v1000 = vand.u32 %v999, 4294901760
      %v1001 = vsub.f32 %v999, %v1000
      %v1002 = vand.u32 %v1001, 4294901760
      %1003 = vmatmul.mubr.f32.gmra.mrb[0].mxu0 %v1002
      %v1004 = vpop.f32.mrb[0].mxu0
      %v1005 = vadd.f32 0.0, %v1004
      %v1006 = vpop.f32.mrb[0].mxu0
      %v1007 = vand.u32 %v673, 4294901760
      %v1008 = vsub.f32 %v673, %v1007
      %v1009 = vand.u32 %v1008, 4294901760
      %v1010 = vsub.f32 %v1008, %v1009
      %v1011 = vand.u32 %v1010, 4294901760
      %1012 = vmatprep.mubr.f32.mxu0 %v1011
      %v1013 = vand.u32 %v672, 4294901760
      %v1014 = vsub.f32 %v672, %v1013
      %v1015 = vand.u32 %v1014, 4294901760
      %v1016 = vsub.f32 %v1014, %v1015
      %v1017 = vand.u32 %v1016, 4294901760
      %1018 = vmatmul.mubr.f32.gmra.mrb[0].mxu0 %v1017
      %v1019 = vpop.f32.mrb[0].mxu0
      %v1020 = vadd.f32 0.0, %v1019
      %v1021 = vpop.f32.mrb[0].mxu0
      %v1022 = vand.u32 %v675, 4294901760
      %v1023 = vsub.f32 %v675, %v1022
      %v1024 = vand.u32 %v1023, 4294901760
      %v1025 = vsub.f32 %v1023, %v1024
      %v1026 = vand.u32 %v1025, 4294901760
      %1027 = vmatprep.mubr.f32.mxu0 %v1026
      %v1028 = vand.u32 %v674, 4294901760
      %v1029 = vsub.f32 %v674, %v1028
      %v1030 = vand.u32 %v1029, 4294901760
      %v1031 = vsub.f32 %v1029, %v1030
      %v1032 = vand.u32 %v1031, 4294901760
      %1033 = vmatmul.mubr.f32.gmra.mrb[0].mxu0 %v1032
      %v1034 = vpop.f32.mrb[0].mxu0
      %v1035 = vadd.f32 0.0, %v1034
      %v1036 = vpop.f32.mrb[0].mxu0
      %v1037 = vand.u32 %v677, 4294901760
      %v1038 = vsub.f32 %v677, %v1037
      %v1039 = vand.u32 %v1038, 4294901760
      %v1040 = vsub.f32 %v1038, %v1039
      %v1041 = vand.u32 %v1040, 4294901760
      %1042 = vmatprep.mubr.f32.mxu0 %v1041
      %v1043 = vand.u32 %v676, 4294901760
      %v1044 = vsub.f32 %v676, %v1043
      %v1045 = vand.u32 %v1044, 4294901760
      %v1046 = vsub.f32 %v1044, %v1045
      %v1047 = vand.u32 %v1046, 4294901760
      %1048 = vmatmul.mubr.f32.gmra.mrb[0].mxu0 %v1047
      %v1049 = vpop.f32.mrb[0].mxu0
      %v1050 = vadd.f32 0.0, %v1049
      %v1051 = vpop.f32.mrb[0].mxu0
      %v1052 = vand.u32 %v679, 4294901760
      %v1053 = vsub.f32 %v679, %v1052
      %v1054 = vand.u32 %v1053, 4294901760
      %v1055 = vsub.f32 %v1053, %v1054
      %v1056 = vand.u32 %v1055, 4294901760
      %1057 = vmatprep.mubr.f32.mxu0 %v1056
      %v1058 = vand.u32 %v678, 4294901760
      %v1059 = vsub.f32 %v678, %v1058
      %v1060 = vand.u32 %v1059, 4294901760
      %v1061 = vsub.f32 %v1059, %v1060
      %v1062 = vand.u32 %v1061, 4294901760
      %1063 = vmatmul.mubr.f32.gmra.mrb[0].mxu0 %v1062
      %v1064 = vpop.f32.mrb[0].mxu0
      %v1065 = vadd.f32 0.0, %v1064
      %v1066 = vpop.f32.mrb[0].mxu0
      %v1067 = vand.u32 %v681, 4294901760
      %v1068 = vsub.f32 %v681, %v1067
      %v1069 = vand.u32 %v1068, 4294901760
      %v1070 = vsub.f32 %v1068, %v1069
      %v1071 = vand.u32 %v1070, 4294901760
      %1072 = vmatprep.mubr.f32.mxu0 %v1071
      %v1073 = vand.u32 %v680, 4294901760
      %v1074 = vsub.f32 %v680, %v1073
      %v1075 = vand.u32 %v1074, 4294901760
      %v1076 = vsub.f32 %v1074, %v1075
      %v1077 = vand.u32 %v1076, 4294901760
      %1078 = vmatmul.mubr.f32.gmra.mrb[0].mxu0 %v1077
      %v1079 = vpop.f32.mrb[0].mxu0
      %v1080 = vadd.f32 0.0, %v1079
      %v1081 = vpop.f32.mrb[0].mxu0
      %v1082 = vand.u32 %v683, 4294901760
      %v1083 = vsub.f32 %v683, %v1082
      %v1084 = vand.u32 %v1083, 4294901760
      %v1085 = vsub.f32 %v1083, %v1084
      %v1086 = vand.u32 %v1085, 4294901760
      %1087 = vmatprep.mubr.f32.mxu0 %v1086
      %v1088 = vand.u32 %v682, 4294901760
      %v1089 = vsub.f32 %v682, %v1088
      %v1090 = vand.u32 %v1089, 4294901760
      %v1091 = vsub.f32 %v1089, %v1090
      %v1092 = vand.u32 %v1091, 4294901760
      %1093 = vmatmul.mubr.f32.gmra.mrb[0].mxu0 %v1092
      %v1094 = vpop.f32.mrb[0].mxu0
      %v1095 = vadd.f32 0.0, %v1094
      %v1096 = vpop.f32.mrb[0].mxu0
      %v1097 = vand.u32 %v685, 4294901760
      %v1098 = vsub.f32 %v685, %v1097
      %v1099 = vand.u32 %v1098, 4294901760
      %v1100 = vsub.f32 %v1098, %v1099
      %v1101 = vand.u32 %v1100, 4294901760
      %1102 = vmatprep.mubr.f32.mxu0 %v1101
      %v1103 = vand.u32 %v684, 4294901760
      %v1104 = vsub.f32 %v684, %v1103
      %v1105 = vand.u32 %v1104, 4294901760
      %v1106 = vsub.f32 %v1104, %v1105
      %v1107 = vand.u32 %v1106, 4294901760
      %1108 = vmatmul.mubr.f32.gmra.mrb[0].mxu0 %v1107
      %v1109 = vpop.f32.mrb[0].mxu0
      %v1110 = vadd.f32 0.0, %v1109
      %v1111 = vpop.f32.mrb[0].mxu0
      %v1112 = vand.u32 %v687, 4294901760
      %v1113 = vsub.f32 %v687, %v1112
      %v1114 = vand.u32 %v1113, 4294901760
      %v1115 = vsub.f32 %v1113, %v1114
      %v1116 = vand.u32 %v1115, 4294901760
      %1117 = vmatprep.mubr.f32.mxu0 %v1116
      %v1118 = vand.u32 %v686, 4294901760
      %v1119 = vsub.f32 %v686, %v1118
      %v1120 = vand.u32 %v1119, 4294901760
      %v1121 = vsub.f32 %v1119, %v1120
      %v1122 = vand.u32 %v1121, 4294901760
      %1123 = vmatmul.mubr.f32.gmra.mrb[0].mxu0 %v1122
      %v1124 = vpop.f32.mrb[0].mxu0
      %v1125 = vadd.f32 0.0, %v1124
      %v1126 = vpop.f32.mrb[0].mxu0
      %v1127 = vand.u32 %v689, 4294901760
      %v1128 = vsub.f32 %v689, %v1127
      %v1129 = vand.u32 %v1128, 4294901760
      %v1130 = vsub.f32 %v1128, %v1129
      %v1131 = vand.u32 %v1130, 4294901760
      %1132 = vmatprep.mubr.f32.mxu0 %v1131
      %v1133 = vand.u32 %v688, 4294901760
      %v1134 = vsub.f32 %v688, %v1133
      %v1135 = vand.u32 %v1134, 4294901760
      %v1136 = vsub.f32 %v1134, %v1135
      %v1137 = vand.u32 %v1136, 4294901760
      %1138 = vmatmul.mubr.f32.gmra.mrb[0].mxu0 %v1137
      %v1139 = vpop.f32.mrb[0].mxu0
      %v1140 = vadd.f32 0.0, %v1139
      %v1141 = vpop.f32.mrb[0].mxu0
      %v1142 = vand.u32 %v691, 4294901760
      %v1143 = vsub.f32 %v691, %v1142
      %v1144 = vand.u32 %v1143, 4294901760
      %v1145 = vsub.f32 %v1143, %v1144
      %v1146 = vand.u32 %v1145, 4294901760
      %1147 = vmatprep.mubr.f32.mxu0 %v1146
      %v1148 = vand.u32 %v690, 4294901760
      %v1149 = vsub.f32 %v690, %v1148
      %v1150 = vand.u32 %v1149, 4294901760
      %v1151 = vsub.f32 %v1149, %v1150
      %v1152 = vand.u32 %v1151, 4294901760
      %1153 = vmatmul.mubr.f32.gmra.mrb[0].mxu0 %v1152
      %v1154 = vpop.f32.mrb[0].mxu0
      %v1155 = vadd.f32 0.0, %v1154
      %v1156 = vpop.f32.mrb[0].mxu0
      %v1157 = vand.u32 %v693, 4294901760
      %v1158 = vsub.f32 %v693, %v1157
      %v1159 = vand.u32 %v1158, 4294901760
      %v1160 = vsub.f32 %v1158, %v1159
      %v1161 = vand.u32 %v1160, 4294901760
      %1162 = vmatprep.mubr.f32.mxu0 %v1161
      %v1163 = vand.u32 %v692, 4294901760
      %v1164 = vsub.f32 %v692, %v1163
      %v1165 = vand.u32 %v1164, 4294901760
      %v1166 = vsub.f32 %v1164, %v1165
      %v1167 = vand.u32 %v1166, 4294901760
      %1168 = vmatmul.mubr.f32.gmra.mrb[0].mxu0 %v1167
      %v1169 = vpop.f32.mrb[0].mxu0
      %v1170 = vadd.f32 0.0, %v1169
      %v1171 = vpop.f32.mrb[0].mxu0
      %v1172 = vand.u32 %v695, 4294901760
      %v1173 = vsub.f32 %v695, %v1172
      %v1174 = vand.u32 %v1173, 4294901760
      %v1175 = vsub.f32 %v1173, %v1174
      %v1176 = vand.u32 %v1175, 4294901760
      %1177 = vmatprep.mubr.f32.mxu0 %v1176
      %v1178 = vand.u32 %v694, 4294901760
      %v1179 = vsub.f32 %v694, %v1178
      %v1180 = vand.u32 %v1179, 4294901760
      %v1181 = vsub.f32 %v1179, %v1180
      %v1182 = vand.u32 %v1181, 4294901760
      %1183 = vmatmul.mubr.f32.gmra.mrb[0].mxu0 %v1182
      %v1184 = vpop.f32.mrb[0].mxu0
      %v1185 = vadd.f32 0.0, %v1184
      %v1186 = vpop.f32.mrb[0].mxu0
      %v1187 = vand.u32 %v697, 4294901760
      %v1188 = vsub.f32 %v697, %v1187
      %v1189 = vand.u32 %v1188, 4294901760
      %v1190 = vsub.f32 %v1188, %v1189
      %v1191 = vand.u32 %v1190, 4294901760
      %1192 = vmatprep.mubr.f32.mxu0 %v1191
      %v1193 = vand.u32 %v696, 4294901760
      %v1194 = vsub.f32 %v696, %v1193
      %v1195 = vand.u32 %v1194, 4294901760
      %v1196 = vsub.f32 %v1194, %v1195
      %v1197 = vand.u32 %v1196, 4294901760
      %1198 = vmatmul.mubr.f32.gmra.mrb[0].mxu0 %v1197
      %v1199 = vpop.f32.mrb[0].mxu0
      %v1200 = vadd.f32 0.0, %v1199
      %v1201 = vpop.f32.mrb[0].mxu0
      %v1202 = vand.u32 %v699, 4294901760
      %v1203 = vsub.f32 %v699, %v1202
      %v1204 = vand.u32 %v1203, 4294901760
      %v1205 = vsub.f32 %v1203, %v1204
      %v1206 = vand.u32 %v1205, 4294901760
      %1207 = vmatprep.mubr.f32.mxu0 %v1206
      %v1208 = vand.u32 %v698, 4294901760
      %v1209 = vsub.f32 %v698, %v1208
      %v1210 = vand.u32 %v1209, 4294901760
      %v1211 = vsub.f32 %v1209, %v1210
      %v1212 = vand.u32 %v1211, 4294901760
      %1213 = vmatmul.mubr.f32.gmra.mrb[0].mxu0 %v1212
      %v1214 = vpop.f32.mrb[0].mxu0
      %v1215 = vadd.f32 0.0, %v1214
      %v1216 = vpop.f32.mrb[0].mxu0
      %v1217 = vand.u32 %v701, 4294901760
      %v1218 = vsub.f32 %v701, %v1217
      %v1219 = vand.u32 %v1218, 4294901760
      %v1220 = vsub.f32 %v1218, %v1219
      %v1221 = vand.u32 %v1220, 4294901760
      %1222 = vmatprep.mubr.f32.mxu0 %v1221
      %v1223 = vand.u32 %v700, 4294901760
      %v1224 = vsub.f32 %v700, %v1223
      %v1225 = vand.u32 %v1224, 4294901760
      %v1226 = vsub.f32 %v1224, %v1225
      %v1227 = vand.u32 %v1226, 4294901760
      %1228 = vmatmul.mubr.f32.gmra.mrb[0].mxu0 %v1227
      %v1229 = vpop.f32.mrb[0].mxu0
      %v1230 = vadd.f32 0.0, %v1229
      %v1231 = vpop.f32.mrb[0].mxu0
      %v1232 = vand.u32 %v703, 4294901760
      %v1233 = vsub.f32 %v703, %v1232
      %v1234 = vand.u32 %v1233, 4294901760
      %v1235 = vsub.f32 %v1233, %v1234
      %v1236 = vand.u32 %v1235, 4294901760
      %1237 = vmatprep.mubr.f32.mxu0 %v1236
      %v1238 = vand.u32 %v702, 4294901760
      %v1239 = vsub.f32 %v702, %v1238
      %v1240 = vand.u32 %v1239, 4294901760
      %v1241 = vsub.f32 %v1239, %v1240
      %v1242 = vand.u32 %v1241, 4294901760
      %1243 = vmatmul.mubr.f32.gmra.mrb[0].mxu0 %v1242
      %v1244 = vpop.f32.mrb[0].mxu0
      %v1245 = vadd.f32 0.0, %v1244
      %v1246 = vpop.f32.mrb[0].mxu0
      %v1247 = vand.u32 %v705, 4294901760
      %v1248 = vsub.f32 %v705, %v1247
      %v1249 = vand.u32 %v1248, 4294901760
      %v1250 = vsub.f32 %v1248, %v1249
      %v1251 = vand.u32 %v1250, 4294901760
      %1252 = vmatprep.mubr.f32.mxu0 %v1251
      %v1253 = vand.u32 %v704, 4294901760
      %v1254 = vsub.f32 %v704, %v1253
      %v1255 = vand.u32 %v1254, 4294901760
      %v1256 = vsub.f32 %v1254, %v1255
      %v1257 = vand.u32 %v1256, 4294901760
      %1258 = vmatmul.mubr.f32.gmra.mrb[0].mxu0 %v1257
      %v1259 = vpop.f32.mrb[0].mxu0
      %v1260 = vadd.f32 0.0, %v1259
      %v1261 = vpop.f32.mrb[0].mxu0
      %v1262 = vand.u32 %v707, 4294901760
      %v1263 = vsub.f32 %v707, %v1262
      %v1264 = vand.u32 %v1263, 4294901760
      %v1265 = vsub.f32 %v1263, %v1264
      %v1266 = vand.u32 %v1265, 4294901760
      %1267 = vmatprep.mubr.f32.mxu0 %v1266
      %v1268 = vand.u32 %v706, 4294901760
      %v1269 = vsub.f32 %v706, %v1268
      %v1270 = vand.u32 %v1269, 4294901760
      %v1271 = vsub.f32 %v1269, %v1270
      %v1272 = vand.u32 %v1271, 4294901760
      %1273 = vmatmul.mubr.f32.gmra.mrb[0].mxu0 %v1272
      %v1274 = vpop.f32.mrb[0].mxu0
      %v1275 = vadd.f32 0.0, %v1274
      %v1276 = vpop.f32.mrb[0].mxu0
      %v1277 = vand.u32 %v709, 4294901760
      %v1278 = vsub.f32 %v709, %v1277
      %v1279 = vand.u32 %v1278, 4294901760
      %v1280 = vsub.f32 %v1278, %v1279
      %v1281 = vand.u32 %v1280, 4294901760
      %1282 = vmatprep.mubr.f32.mxu0 %v1281
      %v1283 = vand.u32 %v708, 4294901760
      %v1284 = vsub.f32 %v708, %v1283
      %v1285 = vand.u32 %v1284, 4294901760
      %v1286 = vsub.f32 %v1284, %v1285
      %v1287 = vand.u32 %v1286, 4294901760
      %1288 = vmatmul.mubr.f32.gmra.mrb[0].mxu0 %v1287
      %v1289 = vpop.f32.mrb[0].mxu0
      %v1290 = vadd.f32 0.0, %v1289
      %v1291 = vpop.f32.mrb[0].mxu0
      %v1292 = vand.u32 %v711, 4294901760
      %v1293 = vsub.f32 %v711, %v1292
      %v1294 = vand.u32 %v1293, 4294901760
      %v1295 = vsub.f32 %v1293, %v1294
      %v1296 = vand.u32 %v1295, 4294901760
      %1297 = vmatprep.mubr.f32.mxu0 %v1296
      %v1298 = vand.u32 %v710, 4294901760
      %v1299 = vsub.f32 %v710, %v1298
      %v1300 = vand.u32 %v1299, 4294901760
      %v1301 = vsub.f32 %v1299, %v1300
      %v1302 = vand.u32 %v1301, 4294901760
      %1303 = vmatmul.mubr.f32.gmra.mrb[0].mxu0 %v1302
      %v1304 = vpop.f32.mrb[0].mxu0
      %v1305 = vadd.f32 0.0, %v1304
      %v1306 = vpop.f32.mrb[0].mxu0
      %v1307 = vand.u32 %v713, 4294901760
      %v1308 = vsub.f32 %v713, %v1307
      %v1309 = vand.u32 %v1308, 4294901760
      %v1310 = vsub.f32 %v1308, %v1309
      %v1311 = vand.u32 %v1310, 4294901760
      %1312 = vmatprep.mubr.f32.mxu0 %v1311
      %v1313 = vand.u32 %v712, 4294901760
      %v1314 = vsub.f32 %v712, %v1313
      %v1315 = vand.u32 %v1314, 4294901760
      %v1316 = vsub.f32 %v1314, %v1315
      %v1317 = vand.u32 %v1316, 4294901760
      %1318 = vmatmul.mubr.f32.gmra.mrb[0].mxu0 %v1317
      %v1319 = vpop.f32.mrb[0].mxu0
      %v1320 = vadd.f32 0.0, %v1319
      %v1321 = vpop.f32.mrb[0].mxu0
      %1322 = vdwg.mxu0
      %1323 = vmatprep.subr.mxu0 0.0
      %v1324 = vand.u32 %v714, 4294901760
      %v1325 = vsub.f32 %v714, %v1324
      %v1326 = vand.u32 %v1325, 4294901760
      %v1327 = vsub.f32 %v1325, %v1326
      %v1328 = vand.u32 %v1327, 4294901760
      %1329 = vmatpush1.msra.mxu0 %v1328
      %1330 = vmatprep.subr.mxu0 0.0
      %v1331 = vand.u32 %v715, 4294901760
      %v1332 = vsub.f32 %v715, %v1331
      %v1333 = vand.u32 %v1332, 4294901760
      %v1334 = vsub.f32 %v1332, %v1333
      %v1335 = vand.u32 %v1334, 4294901760
      %1336 = vmatpush1.msra.mxu0 %v1335
      %1337 = vmatprep.subr.mxu0 0.0
      %v1338 = vand.u32 %v716, 4294901760
      %v1339 = vsub.f32 %v716, %v1338
      %v1340 = vand.u32 %v1339, 4294901760
      %v1341 = vsub.f32 %v1339, %v1340
      %v1342 = vand.u32 %v1341, 4294901760
      %1343 = vmatpush1.msra.mxu0 %v1342
      %1344 = vmatprep.subr.mxu0 0.0
      %v1345 = vand.u32 %v717, 4294901760
      %v1346 = vsub.f32 %v717, %v1345
      %v1347 = vand.u32 %v1346, 4294901760
      %v1348 = vsub.f32 %v1346, %v1347
      %v1349 = vand.u32 %v1348, 4294901760
      %1350 = vmatpush1.msra.mxu0 %v1349
      %1351 = vmatprep.subr.mxu0 0.0
      %v1352 = vand.u32 %v718, 4294901760
      %v1353 = vsub.f32 %v718, %v1352
      %v1354 = vand.u32 %v1353, 4294901760
      %v1355 = vsub.f32 %v1353, %v1354
      %v1356 = vand.u32 %v1355, 4294901760
      %1357 = vmatpush1.msra.mxu0 %v1356
      %1358 = vmatprep.subr.mxu0 0.0
      %v1359 = vand.u32 %v719, 4294901760
      %v1360 = vsub.f32 %v719, %v1359
      %v1361 = vand.u32 %v1360, 4294901760
      %v1362 = vsub.f32 %v1360, %v1361
      %v1363 = vand.u32 %v1362, 4294901760
      %1364 = vmatpush1.msra.mxu0 %v1363
      %1365 = vmatprep.subr.mxu0 0.0
      %v1366 = vand.u32 %v720, 4294901760
      %v1367 = vsub.f32 %v720, %v1366
      %v1368 = vand.u32 %v1367, 4294901760
      %v1369 = vsub.f32 %v1367, %v1368
      %v1370 = vand.u32 %v1369, 4294901760
      %1371 = vmatpush1.msra.mxu0 %v1370
      %1372 = vmatprep.subr.mxu0 0.0
      %v1373 = vand.u32 %v721, 4294901760
      %v1374 = vsub.f32 %v721, %v1373
      %v1375 = vand.u32 %v1374, 4294901760
      %v1376 = vsub.f32 %v1374, %v1375
      %v1377 = vand.u32 %v1376, 4294901760
      %1378 = vmatpush1.msra.mxu0 %v1377
      %1379 = vmatprep.subr.mxu0 0.0
      %v1380 = vand.u32 %v722, 4294901760
      %v1381 = vsub.f32 %v722, %v1380
      %v1382 = vand.u32 %v1381, 4294901760
      %v1383 = vsub.f32 %v1381, %v1382
      %v1384 = vand.u32 %v1383, 4294901760
      %1385 = vmatpush1.msra.mxu0 %v1384
      %1386 = vmatprep.subr.mxu0 0.0
      %v1387 = vand.u32 %v723, 4294901760
      %v1388 = vsub.f32 %v723, %v1387
      %v1389 = vand.u32 %v1388, 4294901760
      %v1390 = vsub.f32 %v1388, %v1389
      %v1391 = vand.u32 %v1390, 4294901760
      %1392 = vmatpush1.msra.mxu0 %v1391
      %1393 = vmatprep.subr.mxu0 0.0
      %v1394 = vand.u32 %v724, 4294901760
      %v1395 = vsub.f32 %v724, %v1394
      %v1396 = vand.u32 %v1395, 4294901760
      %v1397 = vsub.f32 %v1395, %v1396
      %v1398 = vand.u32 %v1397, 4294901760
      %1399 = vmatpush1.msra.mxu0 %v1398
      %1400 = vmatprep.subr.mxu0 0.0
      %v1401 = vand.u32 %v725, 4294901760
      %v1402 = vsub.f32 %v725, %v1401
      %v1403 = vand.u32 %v1402, 4294901760
      %v1404 = vsub.f32 %v1402, %v1403
      %v1405 = vand.u32 %v1404, 4294901760
      %1406 = vmatpush1.msra.mxu0 %v1405
      %1407 = vmatprep.subr.mxu0 0.0
      %v1408 = vand.u32 %v726, 4294901760
      %v1409 = vsub.f32 %v726, %v1408
      %v1410 = vand.u32 %v1409, 4294901760
      %v1411 = vsub.f32 %v1409, %v1410
      %v1412 = vand.u32 %v1411, 4294901760
      %1413 = vmatpush1.msra.mxu0 %v1412
      %1414 = vmatprep.subr.mxu0 0.0
      %v1415 = vand.u32 %v727, 4294901760
      %v1416 = vsub.f32 %v727, %v1415
      %v1417 = vand.u32 %v1416, 4294901760
      %v1418 = vsub.f32 %v1416, %v1417
      %v1419 = vand.u32 %v1418, 4294901760
      %1420 = vmatpush1.msra.mxu0 %v1419
      %1421 = vmatprep.subr.mxu0 0.0
      %v1422 = vand.u32 %v728, 4294901760
      %v1423 = vsub.f32 %v728, %v1422
      %v1424 = vand.u32 %v1423, 4294901760
      %v1425 = vsub.f32 %v1423, %v1424
      %v1426 = vand.u32 %v1425, 4294901760
      %1427 = vmatpush1.msra.mxu0 %v1426
      %1428 = vmatprep.subr.mxu0 0.0
      %v1429 = vand.u32 %v729, 4294901760
      %v1430 = vsub.f32 %v729, %v1429
      %v1431 = vand.u32 %v1430, 4294901760
      %v1432 = vsub.f32 %v1430, %v1431
      %v1433 = vand.u32 %v1432, 4294901760
      %1434 = vmatpush1.msra.mxu0 %v1433
      %1435 = vmatprep.subr.mxu0 0.0
      %v1436 = vand.u32 %v730, 4294901760
      %v1437 = vsub.f32 %v730, %v1436
      %v1438 = vand.u32 %v1437, 4294901760
      %v1439 = vsub.f32 %v1437, %v1438
      %v1440 = vand.u32 %v1439, 4294901760
      %1441 = vmatpush1.msra.mxu0 %v1440
      %1442 = vmatprep.subr.mxu0 0.0
      %v1443 = vand.u32 %v731, 4294901760
      %v1444 = vsub.f32 %v731, %v1443
      %v1445 = vand.u32 %v1444, 4294901760
      %v1446 = vsub.f32 %v1444, %v1445
      %v1447 = vand.u32 %v1446, 4294901760
      %1448 = vmatpush1.msra.mxu0 %v1447
      %1449 = vmatprep.subr.mxu0 0.0
      %v1450 = vand.u32 %v732, 4294901760
      %v1451 = vsub.f32 %v732, %v1450
      %v1452 = vand.u32 %v1451, 4294901760
      %v1453 = vsub.f32 %v1451, %v1452
      %v1454 = vand.u32 %v1453, 4294901760
      %1455 = vmatpush1.msra.mxu0 %v1454
      %1456 = vmatprep.subr.mxu0 0.0
      %v1457 = vand.u32 %v733, 4294901760
      %v1458 = vsub.f32 %v733, %v1457
      %v1459 = vand.u32 %v1458, 4294901760
      %v1460 = vsub.f32 %v1458, %v1459
      %v1461 = vand.u32 %v1460, 4294901760
      %1462 = vmatpush1.msra.mxu0 %v1461
      %1463 = vmatprep.subr.mxu0 0.0
      %v1464 = vand.u32 %v734, 4294901760
      %v1465 = vsub.f32 %v734, %v1464
      %v1466 = vand.u32 %v1465, 4294901760
      %v1467 = vsub.f32 %v1465, %v1466
      %v1468 = vand.u32 %v1467, 4294901760
      %1469 = vmatpush1.msra.mxu0 %v1468
      %1470 = vmatprep.subr.mxu0 0.0
      %v1471 = vand.u32 %v735, 4294901760
      %v1472 = vsub.f32 %v735, %v1471
      %v1473 = vand.u32 %v1472, 4294901760
      %v1474 = vsub.f32 %v1472, %v1473
      %v1475 = vand.u32 %v1474, 4294901760
      %1476 = vmatpush1.msra.mxu0 %v1475
      %1477 = vmatprep.subr.mxu0 0.0
      %v1478 = vand.u32 %v736, 4294901760
      %v1479 = vsub.f32 %v736, %v1478
      %v1480 = vand.u32 %v1479, 4294901760
      %v1481 = vsub.f32 %v1479, %v1480
      %v1482 = vand.u32 %v1481, 4294901760
      %1483 = vmatpush1.msra.mxu0 %v1482
      %1484 = vmatprep.subr.mxu0 0.0
      %v1485 = vand.u32 %v737, 4294901760
      %v1486 = vsub.f32 %v737, %v1485
      %v1487 = vand.u32 %v1486, 4294901760
      %v1488 = vsub.f32 %v1486, %v1487
      %v1489 = vand.u32 %v1488, 4294901760
      %1490 = vmatpush1.msra.mxu0 %v1489
      %1491 = vmatprep.subr.mxu0 0.0
      %v1492 = vand.u32 %v738, 4294901760
      %v1493 = vsub.f32 %v738, %v1492
      %v1494 = vand.u32 %v1493, 4294901760
      %v1495 = vsub.f32 %v1493, %v1494
      %v1496 = vand.u32 %v1495, 4294901760
      %1497 = vmatpush1.msra.mxu0 %v1496
      %1498 = vmatprep.subr.mxu0 0.0
      %v1499 = vand.u32 %v739, 4294901760
      %v1500 = vsub.f32 %v739, %v1499
      %v1501 = vand.u32 %v1500, 4294901760
      %v1502 = vsub.f32 %v1500, %v1501
      %v1503 = vand.u32 %v1502, 4294901760
      %1504 = vmatpush1.msra.mxu0 %v1503
      %1505 = vmatprep.subr.mxu0 0.0
      %v1506 = vand.u32 %v740, 4294901760
      %v1507 = vsub.f32 %v740, %v1506
      %v1508 = vand.u32 %v1507, 4294901760
      %v1509 = vsub.f32 %v1507, %v1508
      %v1510 = vand.u32 %v1509, 4294901760
      %1511 = vmatpush1.msra.mxu0 %v1510
      %1512 = vmatprep.subr.mxu0 0.0
      %v1513 = vand.u32 %v741, 4294901760
      %v1514 = vsub.f32 %v741, %v1513
      %v1515 = vand.u32 %v1514, 4294901760
      %v1516 = vsub.f32 %v1514, %v1515
      %v1517 = vand.u32 %v1516, 4294901760
      %1518 = vmatpush1.msra.mxu0 %v1517
      %1519 = vmatprep.subr.mxu0 0.0
      %v1520 = vand.u32 %v742, 4294901760
      %v1521 = vsub.f32 %v742, %v1520
      %v1522 = vand.u32 %v1521, 4294901760
      %v1523 = vsub.f32 %v1521, %v1522
      %v1524 = vand.u32 %v1523, 4294901760
      %1525 = vmatpush1.msra.mxu0 %v1524
      %1526 = vmatprep.subr.mxu0 0.0
      %v1527 = vand.u32 %v743, 4294901760
      %v1528 = vsub.f32 %v743, %v1527
      %v1529 = vand.u32 %v1528, 4294901760
      %v1530 = vsub.f32 %v1528, %v1529
      %v1531 = vand.u32 %v1530, 4294901760
      %1532 = vmatpush1.msra.mxu0 %v1531
      %1533 = vmatprep.subr.mxu0 0.0
      %v1534 = vand.u32 %v744, 4294901760
      %v1535 = vsub.f32 %v744, %v1534
      %v1536 = vand.u32 %v1535, 4294901760
      %v1537 = vsub.f32 %v1535, %v1536
      %v1538 = vand.u32 %v1537, 4294901760
      %1539 = vmatpush1.msra.mxu0 %v1538
      %1540 = vmatprep.subr.mxu0 0.0
      %v1541 = vand.u32 %v745, 4294901760
      %v1542 = vsub.f32 %v745, %v1541
      %v1543 = vand.u32 %v1542, 4294901760
      %v1544 = vsub.f32 %v1542, %v1543
      %v1545 = vand.u32 %v1544, 4294901760
      %1546 = vmatpush1.msra.mxu0 %v1545
      %v1547 = vand.u32 %v651, 4294901760
      %1548 = vmatprep.mubr.f32.mxu0 %v1547
      %v1549 = vand.u32 %v650, 4294901760
      %1550 = vmatmul.mubr.f32.gmra.mrb[0].mxu0 %v1549
      %v1551 = vpop.f32.mrb[0].mxu0
      %v1552 = vadd.f32 %v855, %v1551
      %v1553 = vpop.f32.mrb[0].mxu0
      %v1554 = vand.u32 %v653, 4294901760
      %1555 = vmatprep.mubr.f32.mxu0 %v1554
      %v1556 = vand.u32 %v652, 4294901760
      %1557 = vmatmul.mubr.f32.gmra.mrb[0].mxu0 %v1556
      %v1558 = vpop.f32.mrb[0].mxu0
      %v1559 = vadd.f32 %v870, %v1558
      %v1560 = vpop.f32.mrb[0].mxu0
      %v1561 = vand.u32 %v655, 4294901760
      %1562 = vmatprep.mubr.f32.mxu0 %v1561
      %v1563 = vand.u32 %v654, 4294901760
      %1564 = vmatmul.mubr.f32.gmra.mrb[0].mxu0 %v1563
      %v1565 = vpop.f32.mrb[0].mxu0
      %v1566 = vadd.f32 %v885, %v1565
      %v1567 = vpop.f32.mrb[0].mxu0
      %v1568 = vand.u32 %v657, 4294901760
      %1569 = vmatprep.mubr.f32.mxu0 %v1568
      %v1570 = vand.u32 %v656, 4294901760
      %1571 = vmatmul.mubr.f32.gmra.mrb[0].mxu0 %v1570
      %v1572 = vpop.f32.mrb[0].mxu0
      %v1573 = vadd.f32 %v900, %v1572
      %v1574 = vpop.f32.mrb[0].mxu0
      %v1575 = vand.u32 %v659, 4294901760
      %1576 = vmatprep.mubr.f32.mxu0 %v1575
      %v1577 = vand.u32 %v658, 4294901760
      %1578 = vmatmul.mubr.f32.gmra.mrb[0].mxu0 %v1577
      %v1579 = vpop.f32.mrb[0].mxu0
      %v1580 = vadd.f32 %v915, %v1579
      %v1581 = vpop.f32.mrb[0].mxu0
      %v1582 = vand.u32 %v661, 4294901760
      %1583 = vmatprep.mubr.f32.mxu0 %v1582
      %v1584 = vand.u32 %v660, 4294901760
      %1585 = vmatmul.mubr.f32.gmra.mrb[0].mxu0 %v1584
      %v1586 = vpop.f32.mrb[0].mxu0
      %v1587 = vadd.f32 %v930, %v1586
      %v1588 = vpop.f32.mrb[0].mxu0
      %v1589 = vand.u32 %v663, 4294901760
      %1590 = vmatprep.mubr.f32.mxu0 %v1589
      %v1591 = vand.u32 %v662, 4294901760
      %1592 = vmatmul.mubr.f32.gmra.mrb[0].mxu0 %v1591
      %v1593 = vpop.f32.mrb[0].mxu0
      %v1594 = vadd.f32 %v945, %v1593
      %v1595 = vpop.f32.mrb[0].mxu0
      %v1596 = vand.u32 %v665, 4294901760
      %1597 = vmatprep.mubr.f32.mxu0 %v1596
      %v1598 = vand.u32 %v664, 4294901760
      %1599 = vmatmul.mubr.f32.gmra.mrb[0].mxu0 %v1598
      %v1600 = vpop.f32.mrb[0].mxu0
      %v1601 = vadd.f32 %v960, %v1600
      %v1602 = vpop.f32.mrb[0].mxu0
      %v1603 = vand.u32 %v667, 4294901760
      %1604 = vmatprep.mubr.f32.mxu0 %v1603
      %v1605 = vand.u32 %v666, 4294901760
      %1606 = vmatmul.mubr.f32.gmra.mrb[0].mxu0 %v1605
      %v1607 = vpop.f32.mrb[0].mxu0
      %v1608 = vadd.f32 %v975, %v1607
      %v1609 = vpop.f32.mrb[0].mxu0
      %v1610 = vand.u32 %v669, 4294901760
      %1611 = vmatprep.mubr.f32.mxu0 %v1610
      %v1612 = vand.u32 %v668, 4294901760
      %1613 = vmatmul.mubr.f32.gmra.mrb[0].mxu0 %v1612
      %v1614 = vpop.f32.mrb[0].mxu0
      %v1615 = vadd.f32 %v990, %v1614
      %v1616 = vpop.f32.mrb[0].mxu0
      %v1617 = vand.u32 %v671, 4294901760
      %1618 = vmatprep.mubr.f32.mxu0 %v1617
      %v1619 = vand.u32 %v670, 4294901760
      %1620 = vmatmul.mubr.f32.gmra.mrb[0].mxu0 %v1619
      %v1621 = vpop.f32.mrb[0].mxu0
      %v1622 = vadd.f32 %v1005, %v1621
      %v1623 = vpop.f32.mrb[0].mxu0
      %v1624 = vand.u32 %v673, 4294901760
      %1625 = vmatprep.mubr.f32.mxu0 %v1624
      %v1626 = vand.u32 %v672, 4294901760
      %1627 = vmatmul.mubr.f32.gmra.mrb[0].mxu0 %v1626
      %v1628 = vpop.f32.mrb[0].mxu0
      %v1629 = vadd.f32 %v1020, %v1628
      %v1630 = vpop.f32.mrb[0].mxu0
      %v1631 = vand.u32 %v675, 4294901760
      %1632 = vmatprep.mubr.f32.mxu0 %v1631
      %v1633 = vand.u32 %v674, 4294901760
      %1634 = vmatmul.mubr.f32.gmra.mrb[0].mxu0 %v1633
      %v1635 = vpop.f32.mrb[0].mxu0
      %v1636 = vadd.f32 %v1035, %v1635
      %v1637 = vpop.f32.mrb[0].mxu0
      %v1638 = vand.u32 %v677, 4294901760
      %1639 = vmatprep.mubr.f32.mxu0 %v1638
      %v1640 = vand.u32 %v676, 4294901760
      %1641 = vmatmul.mubr.f32.gmra.mrb[0].mxu0 %v1640
      %v1642 = vpop.f32.mrb[0].mxu0
      %v1643 = vadd.f32 %v1050, %v1642
      %v1644 = vpop.f32.mrb[0].mxu0
      %v1645 = vand.u32 %v679, 4294901760
      %1646 = vmatprep.mubr.f32.mxu0 %v1645
      %v1647 = vand.u32 %v678, 4294901760
      %1648 = vmatmul.mubr.f32.gmra.mrb[0].mxu0 %v1647
      %v1649 = vpop.f32.mrb[0].mxu0
      %v1650 = vadd.f32 %v1065, %v1649
      %v1651 = vpop.f32.mrb[0].mxu0
      %v1652 = vand.u32 %v681, 4294901760
      %1653 = vmatprep.mubr.f32.mxu0 %v1652
      %v1654 = vand.u32 %v680, 4294901760
      %1655 = vmatmul.mubr.f32.gmra.mrb[0].mxu0 %v1654
      %v1656 = vpop.f32.mrb[0].mxu0
      %v1657 = vadd.f32 %v1080, %v1656
      %v1658 = vpop.f32.mrb[0].mxu0
      %v1659 = vand.u32 %v683, 4294901760
      %1660 = vmatprep.mubr.f32.mxu0 %v1659
      %v1661 = vand.u32 %v682, 4294901760
      %1662 = vmatmul.mubr.f32.gmra.mrb[0].mxu0 %v1661
      %v1663 = vpop.f32.mrb[0].mxu0
      %v1664 = vadd.f32 %v1095, %v1663
      %v1665 = vpop.f32.mrb[0].mxu0
      %v1666 = vand.u32 %v685, 4294901760
      %1667 = vmatprep.mubr.f32.mxu0 %v1666
      %v1668 = vand.u32 %v684, 4294901760
      %1669 = vmatmul.mubr.f32.gmra.mrb[0].mxu0 %v1668
      %v1670 = vpop.f32.mrb[0].mxu0
      %v1671 = vadd.f32 %v1110, %v1670
      %v1672 = vpop.f32.mrb[0].mxu0
      %v1673 = vand.u32 %v687, 4294901760
      %1674 = vmatprep.mubr.f32.mxu0 %v1673
      %v1675 = vand.u32 %v686, 4294901760
      %1676 = vmatmul.mubr.f32.gmra.mrb[0].mxu0 %v1675
      %v1677 = vpop.f32.mrb[0].mxu0
      %v1678 = vadd.f32 %v1125, %v1677
      %v1679 = vpop.f32.mrb[0].mxu0
      %v1680 = vand.u32 %v689, 4294901760
      %1681 = vmatprep.mubr.f32.mxu0 %v1680
      %v1682 = vand.u32 %v688, 4294901760
      %1683 = vmatmul.mubr.f32.gmra.mrb[0].mxu0 %v1682
      %v1684 = vpop.f32.mrb[0].mxu0
      %v1685 = vadd.f32 %v1140, %v1684
      %v1686 = vpop.f32.mrb[0].mxu0
      %v1687 = vand.u32 %v691, 4294901760
      %1688 = vmatprep.mubr.f32.mxu0 %v1687
      %v1689 = vand.u32 %v690, 4294901760
      %1690 = vmatmul.mubr.f32.gmra.mrb[0].mxu0 %v1689
      %v1691 = vpop.f32.mrb[0].mxu0
      %v1692 = vadd.f32 %v1155, %v1691
      %v1693 = vpop.f32.mrb[0].mxu0
      %v1694 = vand.u32 %v693, 4294901760
      %1695 = vmatprep.mubr.f32.mxu0 %v1694
      %v1696 = vand.u32 %v692, 4294901760
      %1697 = vmatmul.mubr.f32.gmra.mrb[0].mxu0 %v1696
      %v1698 = vpop.f32.mrb[0].mxu0
      %v1699 = vadd.f32 %v1170, %v1698
      %v1700 = vpop.f32.mrb[0].mxu0
      %v1701 = vand.u32 %v695, 4294901760
      %1702 = vmatprep.mubr.f32.mxu0 %v1701
      %v1703 = vand.u32 %v694, 4294901760
      %1704 = vmatmul.mubr.f32.gmra.mrb[0].mxu0 %v1703
      %v1705 = vpop.f32.mrb[0].mxu0
      %v1706 = vadd.f32 %v1185, %v1705
      %v1707 = vpop.f32.mrb[0].mxu0
      %v1708 = vand.u32 %v697, 4294901760
      %1709 = vmatprep.mubr.f32.mxu0 %v1708
      %v1710 = vand.u32 %v696, 4294901760
      %1711 = vmatmul.mubr.f32.gmra.mrb[0].mxu0 %v1710
      %v1712 = vpop.f32.mrb[0].mxu0
      %v1713 = vadd.f32 %v1200, %v1712
      %v1714 = vpop.f32.mrb[0].mxu0
      %v1715 = vand.u32 %v699, 4294901760
      %1716 = vmatprep.mubr.f32.mxu0 %v1715
      %v1717 = vand.u32 %v698, 4294901760
      %1718 = vmatmul.mubr.f32.gmra.mrb[0].mxu0 %v1717
      %v1719 = vpop.f32.mrb[0].mxu0
      %v1720 = vadd.f32 %v1215, %v1719
      %v1721 = vpop.f32.mrb[0].mxu0
      %v1722 = vand.u32 %v701, 4294901760
      %1723 = vmatprep.mubr.f32.mxu0 %v1722
      %v1724 = vand.u32 %v700, 4294901760
      %1725 = vmatmul.mubr.f32.gmra.mrb[0].mxu0 %v1724
      %v1726 = vpop.f32.mrb[0].mxu0
      %v1727 = vadd.f32 %v1230, %v1726
      %v1728 = vpop.f32.mrb[0].mxu0
      %v1729 = vand.u32 %v703, 4294901760
      %1730 = vmatprep.mubr.f32.mxu0 %v1729
      %v1731 = vand.u32 %v702, 4294901760
      %1732 = vmatmul.mubr.f32.gmra.mrb[0].mxu0 %v1731
      %v1733 = vpop.f32.mrb[0].mxu0
      %v1734 = vadd.f32 %v1245, %v1733
      %v1735 = vpop.f32.mrb[0].mxu0
      %v1736 = vand.u32 %v705, 4294901760
      %1737 = vmatprep.mubr.f32.mxu0 %v1736
      %v1738 = vand.u32 %v704, 4294901760
      %1739 = vmatmul.mubr.f32.gmra.mrb[0].mxu0 %v1738
      %v1740 = vpop.f32.mrb[0].mxu0
      %v1741 = vadd.f32 %v1260, %v1740
      %v1742 = vpop.f32.mrb[0].mxu0
      %v1743 = vand.u32 %v707, 4294901760
      %1744 = vmatprep.mubr.f32.mxu0 %v1743
      %v1745 = vand.u32 %v706, 4294901760
      %1746 = vmatmul.mubr.f32.gmra.mrb[0].mxu0 %v1745
      %v1747 = vpop.f32.mrb[0].mxu0
      %v1748 = vadd.f32 %v1275, %v1747
      %v1749 = vpop.f32.mrb[0].mxu0
      %v1750 = vand.u32 %v709, 4294901760
      %1751 = vmatprep.mubr.f32.mxu0 %v1750
      %v1752 = vand.u32 %v708, 4294901760
      %1753 = vmatmul.mubr.f32.gmra.mrb[0].mxu0 %v1752
      %v1754 = vpop.f32.mrb[0].mxu0
      %v1755 = vadd.f32 %v1290, %v1754
      %v1756 = vpop.f32.mrb[0].mxu0
      %v1757 = vand.u32 %v711, 4294901760
      %1758 = vmatprep.mubr.f32.mxu0 %v1757
      %v1759 = vand.u32 %v710, 4294901760
      %1760 = vmatmul.mubr.f32.gmra.mrb[0].mxu0 %v1759
      %v1761 = vpop.f32.mrb[0].mxu0
      %v1762 = vadd.f32 %v1305, %v1761
      %v1763 = vpop.f32.mrb[0].mxu0
      %v1764 = vand.u32 %v713, 4294901760
      %1765 = vmatprep.mubr.f32.mxu0 %v1764
      %v1766 = vand.u32 %v712, 4294901760
      %1767 = vmatmul.mubr.f32.gmra.mrb[0].mxu0 %v1766
      %v1768 = vpop.f32.mrb[0].mxu0
      %v1769 = vadd.f32 %v1320, %v1768
      %v1770 = vpop.f32.mrb[0].mxu0
      %1771 = vdwg.mxu0
      %1772 = vmatprep.subr.mxu0 0.0
      %v1773 = vand.u32 %v714, 4294901760
      %v1774 = vsub.f32 %v714, %v1773
      %1775 = vmatpush1.msra.mxu0 %v1774
      %1776 = vmatprep.subr.mxu0 0.0
      %v1777 = vand.u32 %v715, 4294901760
      %v1778 = vsub.f32 %v715, %v1777
      %1779 = vmatpush1.msra.mxu0 %v1778
      %1780 = vmatprep.subr.mxu0 0.0
      %v1781 = vand.u32 %v716, 4294901760
      %v1782 = vsub.f32 %v716, %v1781
      %1783 = vmatpush1.msra.mxu0 %v1782
      %1784 = vmatprep.subr.mxu0 0.0
      %v1785 = vand.u32 %v717, 4294901760
      %v1786 = vsub.f32 %v717, %v1785
      %1787 = vmatpush1.msra.mxu0 %v1786
      %1788 = vmatprep.subr.mxu0 0.0
      %v1789 = vand.u32 %v718, 4294901760
      %v1790 = vsub.f32 %v718, %v1789
      %1791 = vmatpush1.msra.mxu0 %v1790
      %1792 = vmatprep.subr.mxu0 0.0
      %v1793 = vand.u32 %v719, 4294901760
      %v1794 = vsub.f32 %v719, %v1793
      %1795 = vmatpush1.msra.mxu0 %v1794
      %1796 = vmatprep.subr.mxu0 0.0
      %v1797 = vand.u32 %v720, 4294901760
      %v1798 = vsub.f32 %v720, %v1797
      %1799 = vmatpush1.msra.mxu0 %v1798
      %1800 = vmatprep.subr.mxu0 0.0
      %v1801 = vand.u32 %v721, 4294901760
      %v1802 = vsub.f32 %v721, %v1801
      %1803 = vmatpush1.msra.mxu0 %v1802
      %1804 = vmatprep.subr.mxu0 0.0
      %v1805 = vand.u32 %v722, 4294901760
      %v1806 = vsub.f32 %v722, %v1805
      %1807 = vmatpush1.msra.mxu0 %v1806
      %1808 = vmatprep.subr.mxu0 0.0
      %v1809 = vand.u32 %v723, 4294901760
      %v1810 = vsub.f32 %v723, %v1809
      %1811 = vmatpush1.msra.mxu0 %v1810
      %1812 = vmatprep.subr.mxu0 0.0
      %v1813 = vand.u32 %v724, 4294901760
      %v1814 = vsub.f32 %v724, %v1813
      %1815 = vmatpush1.msra.mxu0 %v1814
      %1816 = vmatprep.subr.mxu0 0.0
      %v1817 = vand.u32 %v725, 4294901760
      %v1818 = vsub.f32 %v725, %v1817
      %1819 = vmatpush1.msra.mxu0 %v1818
      %1820 = vmatprep.subr.mxu0 0.0
      %v1821 = vand.u32 %v726, 4294901760
      %v1822 = vsub.f32 %v726, %v1821
      %1823 = vmatpush1.msra.mxu0 %v1822
      %1824 = vmatprep.subr.mxu0 0.0
      %v1825 = vand.u32 %v727, 4294901760
      %v1826 = vsub.f32 %v727, %v1825
      %1827 = vmatpush1.msra.mxu0 %v1826
      %1828 = vmatprep.subr.mxu0 0.0
      %v1829 = vand.u32 %v728, 4294901760
      %v1830 = vsub.f32 %v728, %v1829
      %1831 = vmatpush1.msra.mxu0 %v1830
      %1832 = vmatprep.subr.mxu0 0.0
      %v1833 = vand.u32 %v729, 4294901760
      %v1834 = vsub.f32 %v729, %v1833
      %1835 = vmatpush1.msra.mxu0 %v1834
      %1836 = vmatprep.subr.mxu0 0.0
      %v1837 = vand.u32 %v730, 4294901760
      %v1838 = vsub.f32 %v730, %v1837
      %1839 = vmatpush1.msra.mxu0 %v1838
      %1840 = vmatprep.subr.mxu0 0.0
      %v1841 = vand.u32 %v731, 4294901760
      %v1842 = vsub.f32 %v731, %v1841
      %1843 = vmatpush1.msra.mxu0 %v1842
      %1844 = vmatprep.subr.mxu0 0.0
      %v1845 = vand.u32 %v732, 4294901760
      %v1846 = vsub.f32 %v732, %v1845
      %1847 = vmatpush1.msra.mxu0 %v1846
      %1848 = vmatprep.subr.mxu0 0.0
      %v1849 = vand.u32 %v733, 4294901760
      %v1850 = vsub.f32 %v733, %v1849
      %1851 = vmatpush1.msra.mxu0 %v1850
      %1852 = vmatprep.subr.mxu0 0.0
      %v1853 = vand.u32 %v734, 4294901760
      %v1854 = vsub.f32 %v734, %v1853
      %1855 = vmatpush1.msra.mxu0 %v1854
      %1856 = vmatprep.subr.mxu0 0.0
      %v1857 = vand.u32 %v735, 4294901760
      %v1858 = vsub.f32 %v735, %v1857
      %1859 = vmatpush1.msra.mxu0 %v1858
      %1860 = vmatprep.subr.mxu0 0.0
      %v1861 = vand.u32 %v736, 4294901760
      %v1862 = vsub.f32 %v736, %v1861
      %1863 = vmatpush1.msra.mxu0 %v1862
      %1864 = vmatprep.subr.mxu0 0.0
      %v1865 = vand.u32 %v737, 4294901760
      %v1866 = vsub.f32 %v737, %v1865
      %1867 = vmatpush1.msra.mxu0 %v1866
      %1868 = vmatprep.subr.mxu0 0.0
      %v1869 = vand.u32 %v738, 4294901760
      %v1870 = vsub.f32 %v738, %v1869
      %1871 = vmatpush1.msra.mxu0 %v1870
      %1872 = vmatprep.subr.mxu0 0.0
      %v1873 = vand.u32 %v739, 4294901760
      %v1874 = vsub.f32 %v739, %v1873
      %1875 = vmatpush1.msra.mxu0 %v1874
      %1876 = vmatprep.subr.mxu0 0.0
      %v1877 = vand.u32 %v740, 4294901760
      %v1878 = vsub.f32 %v740, %v1877
      %1879 = vmatpush1.msra.mxu0 %v1878
      %1880 = vmatprep.subr.mxu0 0.0
      %v1881 = vand.u32 %v741, 4294901760
      %v1882 = vsub.f32 %v741, %v1881
      %1883 = vmatpush1.msra.mxu0 %v1882
      %1884 = vmatprep.subr.mxu0 0.0
      %v1885 = vand.u32 %v742, 4294901760
      %v1886 = vsub.f32 %v742, %v1885
      %1887 = vmatpush1.msra.mxu0 %v1886
      %1888 = vmatprep.subr.mxu0 0.0
      %v1889 = vand.u32 %v743, 4294901760
      %v1890 = vsub.f32 %v743, %v1889
      %1891 = vmatpush1.msra.mxu0 %v1890
      %1892 = vmatprep.subr.mxu0 0.0
      %v1893 = vand.u32 %v744, 4294901760
      %v1894 = vsub.f32 %v744, %v1893
      %1895 = vmatpush1.msra.mxu0 %v1894
      %1896 = vmatprep.subr.mxu0 0.0
      %v1897 = vand.u32 %v745, 4294901760
      %v1898 = vsub.f32 %v745, %v1897
      %1899 = vmatpush1.msra.mxu0 %v1898
      %v1900 = vand.u32 %v651, 4294901760
      %v1901 = vsub.f32 %v651, %v1900
      %1902 = vmatprep.mubr.f32.mxu0 %v1901
      %v1903 = vand.u32 %v650, 4294901760
      %v1904 = vsub.f32 %v650, %v1903
      %1905 = vmatmul.mubr.f32.gmra.mrb[0].mxu0 %v1904
      %v1906 = vpop.f32.mrb[0].mxu0
      %v1907 = vadd.f32 %v1552, %v1906
      %v1908 = vpop.f32.mrb[0].mxu0
      %v1909 = vand.u32 %v653, 4294901760
      %v1910 = vsub.f32 %v653, %v1909
      %1911 = vmatprep.mubr.f32.mxu0 %v1910
      %v1912 = vand.u32 %v652, 4294901760
      %v1913 = vsub.f32 %v652, %v1912
      %1914 = vmatmul.mubr.f32.gmra.mrb[0].mxu0 %v1913
      %v1915 = vpop.f32.mrb[0].mxu0
      %v1916 = vadd.f32 %v1559, %v1915
      %v1917 = vpop.f32.mrb[0].mxu0
      %v1918 = vand.u32 %v655, 4294901760
      %v1919 = vsub.f32 %v655, %v1918
      %1920 = vmatprep.mubr.f32.mxu0 %v1919
      %v1921 = vand.u32 %v654, 4294901760
      %v1922 = vsub.f32 %v654, %v1921
      %1923 = vmatmul.mubr.f32.gmra.mrb[0].mxu0 %v1922
      %v1924 = vpop.f32.mrb[0].mxu0
      %v1925 = vadd.f32 %v1566, %v1924
      %v1926 = vpop.f32.mrb[0].mxu0
      %v1927 = vand.u32 %v657, 4294901760
      %v1928 = vsub.f32 %v657, %v1927
      %1929 = vmatprep.mubr.f32.mxu0 %v1928
      %v1930 = vand.u32 %v656, 4294901760
      %v1931 = vsub.f32 %v656, %v1930
      %1932 = vmatmul.mubr.f32.gmra.mrb[0].mxu0 %v1931
      %v1933 = vpop.f32.mrb[0].mxu0
      %v1934 = vadd.f32 %v1573, %v1933
      %v1935 = vpop.f32.mrb[0].mxu0
      %v1936 = vand.u32 %v659, 4294901760
      %v1937 = vsub.f32 %v659, %v1936
      %1938 = vmatprep.mubr.f32.mxu0 %v1937
      %v1939 = vand.u32 %v658, 4294901760
      %v1940 = vsub.f32 %v658, %v1939
      %1941 = vmatmul.mubr.f32.gmra.mrb[0].mxu0 %v1940
      %v1942 = vpop.f32.mrb[0].mxu0
      %v1943 = vadd.f32 %v1580, %v1942
      %v1944 = vpop.f32.mrb[0].mxu0
      %v1945 = vand.u32 %v661, 4294901760
      %v1946 = vsub.f32 %v661, %v1945
      %1947 = vmatprep.mubr.f32.mxu0 %v1946
      %v1948 = vand.u32 %v660, 4294901760
      %v1949 = vsub.f32 %v660, %v1948
      %1950 = vmatmul.mubr.f32.gmra.mrb[0].mxu0 %v1949
      %v1951 = vpop.f32.mrb[0].mxu0
      %v1952 = vadd.f32 %v1587, %v1951
      %v1953 = vpop.f32.mrb[0].mxu0
      %v1954 = vand.u32 %v663, 4294901760
      %v1955 = vsub.f32 %v663, %v1954
      %1956 = vmatprep.mubr.f32.mxu0 %v1955
      %v1957 = vand.u32 %v662, 4294901760
      %v1958 = vsub.f32 %v662, %v1957
      %1959 = vmatmul.mubr.f32.gmra.mrb[0].mxu0 %v1958
      %v1960 = vpop.f32.mrb[0].mxu0
      %v1961 = vadd.f32 %v1594, %v1960
      %v1962 = vpop.f32.mrb[0].mxu0
      %v1963 = vand.u32 %v665, 4294901760
      %v1964 = vsub.f32 %v665, %v1963
      %1965 = vmatprep.mubr.f32.mxu0 %v1964
      %v1966 = vand.u32 %v664, 4294901760
      %v1967 = vsub.f32 %v664, %v1966
      %1968 = vmatmul.mubr.f32.gmra.mrb[0].mxu0 %v1967
      %v1969 = vpop.f32.mrb[0].mxu0
      %v1970 = vadd.f32 %v1601, %v1969
      %v1971 = vpop.f32.mrb[0].mxu0
      %v1972 = vand.u32 %v667, 4294901760
      %v1973 = vsub.f32 %v667, %v1972
      %1974 = vmatprep.mubr.f32.mxu0 %v1973
      %v1975 = vand.u32 %v666, 4294901760
      %v1976 = vsub.f32 %v666, %v1975
      %1977 = vmatmul.mubr.f32.gmra.mrb[0].mxu0 %v1976
      %v1978 = vpop.f32.mrb[0].mxu0
      %v1979 = vadd.f32 %v1608, %v1978
      %v1980 = vpop.f32.mrb[0].mxu0
      %v1981 = vand.u32 %v669, 4294901760
      %v1982 = vsub.f32 %v669, %v1981
      %1983 = vmatprep.mubr.f32.mxu0 %v1982
      %v1984 = vand.u32 %v668, 4294901760
      %v1985 = vsub.f32 %v668, %v1984
      %1986 = vmatmul.mubr.f32.gmra.mrb[0].mxu0 %v1985
      %v1987 = vpop.f32.mrb[0].mxu0
      %v1988 = vadd.f32 %v1615, %v1987
      %v1989 = vpop.f32.mrb[0].mxu0
      %v1990 = vand.u32 %v671, 4294901760
      %v1991 = vsub.f32 %v671, %v1990
      %1992 = vmatprep.mubr.f32.mxu0 %v1991
      %v1993 = vand.u32 %v670, 4294901760
      %v1994 = vsub.f32 %v670, %v1993
      %1995 = vmatmul.mubr.f32.gmra.mrb[0].mxu0 %v1994
      %v1996 = vpop.f32.mrb[0].mxu0
      %v1997 = vadd.f32 %v1622, %v1996
      %v1998 = vpop.f32.mrb[0].mxu0
      %v1999 = vand.u32 %v673, 4294901760
      %v2000 = vsub.f32 %v673, %v1999
      %2001 = vmatprep.mubr.f32.mxu0 %v2000
      %v2002 = vand.u32 %v672, 4294901760
      %v2003 = vsub.f32 %v672, %v2002
      %2004 = vmatmul.mubr.f32.gmra.mrb[0].mxu0 %v2003
      %v2005 = vpop.f32.mrb[0].mxu0
      %v2006 = vadd.f32 %v1629, %v2005
      %v2007 = vpop.f32.mrb[0].mxu0
      %v2008 = vand.u32 %v675, 4294901760
      %v2009 = vsub.f32 %v675, %v2008
      %2010 = vmatprep.mubr.f32.mxu0 %v2009
      %v2011 = vand.u32 %v674, 4294901760
      %v2012 = vsub.f32 %v674, %v2011
      %2013 = vmatmul.mubr.f32.gmra.mrb[0].mxu0 %v2012
      %v2014 = vpop.f32.mrb[0].mxu0
      %v2015 = vadd.f32 %v1636, %v2014
      %v2016 = vpop.f32.mrb[0].mxu0
      %v2017 = vand.u32 %v677, 4294901760
      %v2018 = vsub.f32 %v677, %v2017
      %2019 = vmatprep.mubr.f32.mxu0 %v2018
      %v2020 = vand.u32 %v676, 4294901760
      %v2021 = vsub.f32 %v676, %v2020
      %2022 = vmatmul.mubr.f32.gmra.mrb[0].mxu0 %v2021
      %v2023 = vpop.f32.mrb[0].mxu0
      %v2024 = vadd.f32 %v1643, %v2023
      %v2025 = vpop.f32.mrb[0].mxu0
      %v2026 = vand.u32 %v679, 4294901760
      %v2027 = vsub.f32 %v679, %v2026
      %2028 = vmatprep.mubr.f32.mxu0 %v2027
      %v2029 = vand.u32 %v678, 4294901760
      %v2030 = vsub.f32 %v678, %v2029
      %2031 = vmatmul.mubr.f32.gmra.mrb[0].mxu0 %v2030
      %v2032 = vpop.f32.mrb[0].mxu0
      %v2033 = vadd.f32 %v1650, %v2032
      %v2034 = vpop.f32.mrb[0].mxu0
      %v2035 = vand.u32 %v681, 4294901760
      %v2036 = vsub.f32 %v681, %v2035
      %2037 = vmatprep.mubr.f32.mxu0 %v2036
      %v2038 = vand.u32 %v680, 4294901760
      %v2039 = vsub.f32 %v680, %v2038
      %2040 = vmatmul.mubr.f32.gmra.mrb[0].mxu0 %v2039
      %v2041 = vpop.f32.mrb[0].mxu0
      %v2042 = vadd.f32 %v1657, %v2041
      %v2043 = vpop.f32.mrb[0].mxu0
      %v2044 = vand.u32 %v683, 4294901760
      %v2045 = vsub.f32 %v683, %v2044
      %2046 = vmatprep.mubr.f32.mxu0 %v2045
      %v2047 = vand.u32 %v682, 4294901760
      %v2048 = vsub.f32 %v682, %v2047
      %2049 = vmatmul.mubr.f32.gmra.mrb[0].mxu0 %v2048
      %v2050 = vpop.f32.mrb[0].mxu0
      %v2051 = vadd.f32 %v1664, %v2050
      %v2052 = vpop.f32.mrb[0].mxu0
      %v2053 = vand.u32 %v685, 4294901760
      %v2054 = vsub.f32 %v685, %v2053
      %2055 = vmatprep.mubr.f32.mxu0 %v2054
      %v2056 = vand.u32 %v684, 4294901760
      %v2057 = vsub.f32 %v684, %v2056
      %2058 = vmatmul.mubr.f32.gmra.mrb[0].mxu0 %v2057
      %v2059 = vpop.f32.mrb[0].mxu0
      %v2060 = vadd.f32 %v1671, %v2059
      %v2061 = vpop.f32.mrb[0].mxu0
      %v2062 = vand.u32 %v687, 4294901760
      %v2063 = vsub.f32 %v687, %v2062
      %2064 = vmatprep.mubr.f32.mxu0 %v2063
      %v2065 = vand.u32 %v686, 4294901760
      %v2066 = vsub.f32 %v686, %v2065
      %2067 = vmatmul.mubr.f32.gmra.mrb[0].mxu0 %v2066
      %v2068 = vpop.f32.mrb[0].mxu0
      %v2069 = vadd.f32 %v1678, %v2068
      %v2070 = vpop.f32.mrb[0].mxu0
      %v2071 = vand.u32 %v689, 4294901760
      %v2072 = vsub.f32 %v689, %v2071
      %2073 = vmatprep.mubr.f32.mxu0 %v2072
      %v2074 = vand.u32 %v688, 4294901760
      %v2075 = vsub.f32 %v688, %v2074
      %2076 = vmatmul.mubr.f32.gmra.mrb[0].mxu0 %v2075
      %v2077 = vpop.f32.mrb[0].mxu0
      %v2078 = vadd.f32 %v1685, %v2077
      %v2079 = vpop.f32.mrb[0].mxu0
      %v2080 = vand.u32 %v691, 4294901760
      %v2081 = vsub.f32 %v691, %v2080
      %2082 = vmatprep.mubr.f32.mxu0 %v2081
      %v2083 = vand.u32 %v690, 4294901760
      %v2084 = vsub.f32 %v690, %v2083
      %2085 = vmatmul.mubr.f32.gmra.mrb[0].mxu0 %v2084
      %v2086 = vpop.f32.mrb[0].mxu0
      %v2087 = vadd.f32 %v1692, %v2086
      %v2088 = vpop.f32.mrb[0].mxu0
      %v2089 = vand.u32 %v693, 4294901760
      %v2090 = vsub.f32 %v693, %v2089
      %2091 = vmatprep.mubr.f32.mxu0 %v2090
      %v2092 = vand.u32 %v692, 4294901760
      %v2093 = vsub.f32 %v692, %v2092
      %2094 = vmatmul.mubr.f32.gmra.mrb[0].mxu0 %v2093
      %v2095 = vpop.f32.mrb[0].mxu0
      %v2096 = vadd.f32 %v1699, %v2095
      %v2097 = vpop.f32.mrb[0].mxu0
      %v2098 = vand.u32 %v695, 4294901760
      %v2099 = vsub.f32 %v695, %v2098
      %2100 = vmatprep.mubr.f32.mxu0 %v2099
      %v2101 = vand.u32 %v694, 4294901760
      %v2102 = vsub.f32 %v694, %v2101
      %2103 = vmatmul.mubr.f32.gmra.mrb[0].mxu0 %v2102
      %v2104 = vpop.f32.mrb[0].mxu0
      %v2105 = vadd.f32 %v1706, %v2104
      %v2106 = vpop.f32.mrb[0].mxu0
      %v2107 = vand.u32 %v697, 4294901760
      %v2108 = vsub.f32 %v697, %v2107
      %2109 = vmatprep.mubr.f32.mxu0 %v2108
      %v2110 = vand.u32 %v696, 4294901760
      %v2111 = vsub.f32 %v696, %v2110
      %2112 = vmatmul.mubr.f32.gmra.mrb[0].mxu0 %v2111
      %v2113 = vpop.f32.mrb[0].mxu0
      %v2114 = vadd.f32 %v1713, %v2113
      %v2115 = vpop.f32.mrb[0].mxu0
      %v2116 = vand.u32 %v699, 4294901760
      %v2117 = vsub.f32 %v699, %v2116
      %2118 = vmatprep.mubr.f32.mxu0 %v2117
      %v2119 = vand.u32 %v698, 4294901760
      %v2120 = vsub.f32 %v698, %v2119
      %2121 = vmatmul.mubr.f32.gmra.mrb[0].mxu0 %v2120
      %v2122 = vpop.f32.mrb[0].mxu0
      %v2123 = vadd.f32 %v1720, %v2122
      %v2124 = vpop.f32.mrb[0].mxu0
      %v2125 = vand.u32 %v701, 4294901760
      %v2126 = vsub.f32 %v701, %v2125
      %2127 = vmatprep.mubr.f32.mxu0 %v2126
      %v2128 = vand.u32 %v700, 4294901760
      %v2129 = vsub.f32 %v700, %v2128
      %2130 = vmatmul.mubr.f32.gmra.mrb[0].mxu0 %v2129
      %v2131 = vpop.f32.mrb[0].mxu0
      %v2132 = vadd.f32 %v1727, %v2131
      %v2133 = vpop.f32.mrb[0].mxu0
      %v2134 = vand.u32 %v703, 4294901760
      %v2135 = vsub.f32 %v703, %v2134
      %2136 = vmatprep.mubr.f32.mxu0 %v2135
      %v2137 = vand.u32 %v702, 4294901760
      %v2138 = vsub.f32 %v702, %v2137
      %2139 = vmatmul.mubr.f32.gmra.mrb[0].mxu0 %v2138
      %v2140 = vpop.f32.mrb[0].mxu0
      %v2141 = vadd.f32 %v1734, %v2140
      %v2142 = vpop.f32.mrb[0].mxu0
      %v2143 = vand.u32 %v705, 4294901760
      %v2144 = vsub.f32 %v705, %v2143
      %2145 = vmatprep.mubr.f32.mxu0 %v2144
      %v2146 = vand.u32 %v704, 4294901760
      %v2147 = vsub.f32 %v704, %v2146
      %2148 = vmatmul.mubr.f32.gmra.mrb[0].mxu0 %v2147
      %v2149 = vpop.f32.mrb[0].mxu0
      %v2150 = vadd.f32 %v1741, %v2149
      %v2151 = vpop.f32.mrb[0].mxu0
      %v2152 = vand.u32 %v707, 4294901760
      %v2153 = vsub.f32 %v707, %v2152
      %2154 = vmatprep.mubr.f32.mxu0 %v2153
      %v2155 = vand.u32 %v706, 4294901760
      %v2156 = vsub.f32 %v706, %v2155
      %2157 = vmatmul.mubr.f32.gmra.mrb[0].mxu0 %v2156
      %v2158 = vpop.f32.mrb[0].mxu0
      %v2159 = vadd.f32 %v1748, %v2158
      %v2160 = vpop.f32.mrb[0].mxu0
      %v2161 = vand.u32 %v709, 4294901760
      %v2162 = vsub.f32 %v709, %v2161
      %2163 = vmatprep.mubr.f32.mxu0 %v2162
      %v2164 = vand.u32 %v708, 4294901760
      %v2165 = vsub.f32 %v708, %v2164
      %2166 = vmatmul.mubr.f32.gmra.mrb[0].mxu0 %v2165
      %v2167 = vpop.f32.mrb[0].mxu0
      %v2168 = vadd.f32 %v1755, %v2167
      %v2169 = vpop.f32.mrb[0].mxu0
      %v2170 = vand.u32 %v711, 4294901760
      %v2171 = vsub.f32 %v711, %v2170
      %2172 = vmatprep.mubr.f32.mxu0 %v2171
      %v2173 = vand.u32 %v710, 4294901760
      %v2174 = vsub.f32 %v710, %v2173
      %2175 = vmatmul.mubr.f32.gmra.mrb[0].mxu0 %v2174
      %v2176 = vpop.f32.mrb[0].mxu0
      %v2177 = vadd.f32 %v1762, %v2176
      %v2178 = vpop.f32.mrb[0].mxu0
      %v2179 = vand.u32 %v713, 4294901760
      %v2180 = vsub.f32 %v713, %v2179
      %2181 = vmatprep.mubr.f32.mxu0 %v2180
      %v2182 = vand.u32 %v712, 4294901760
      %v2183 = vsub.f32 %v712, %v2182
      %2184 = vmatmul.mubr.f32.gmra.mrb[0].mxu0 %v2183
      %v2185 = vpop.f32.mrb[0].mxu0
      %v2186 = vadd.f32 %v1769, %v2185
      %v2187 = vpop.f32.mrb[0].mxu0
      %2188 = vdwg.mxu0
      %2189 = vmatprep.subr.mxu0 0.0
      %v2190 = vand.u32 %v714, 4294901760
      %2191 = vmatpush1.msra.mxu0 %v2190
      %2192 = vmatprep.subr.mxu0 0.0
      %v2193 = vand.u32 %v715, 4294901760
      %2194 = vmatpush1.msra.mxu0 %v2193
      %2195 = vmatprep.subr.mxu0 0.0
      %v2196 = vand.u32 %v716, 4294901760
      %2197 = vmatpush1.msra.mxu0 %v2196
      %2198 = vmatprep.subr.mxu0 0.0
      %v2199 = vand.u32 %v717, 4294901760
      %2200 = vmatpush1.msra.mxu0 %v2199
      %2201 = vmatprep.subr.mxu0 0.0
      %v2202 = vand.u32 %v718, 4294901760
      %2203 = vmatpush1.msra.mxu0 %v2202
      %2204 = vmatprep.subr.mxu0 0.0
      %v2205 = vand.u32 %v719, 4294901760
      %2206 = vmatpush1.msra.mxu0 %v2205
      %2207 = vmatprep.subr.mxu0 0.0
      %v2208 = vand.u32 %v720, 4294901760
      %2209 = vmatpush1.msra.mxu0 %v2208
      %2210 = vmatprep.subr.mxu0 0.0
      %v2211 = vand.u32 %v721, 4294901760
      %2212 = vmatpush1.msra.mxu0 %v2211
      %2213 = vmatprep.subr.mxu0 0.0
      %v2214 = vand.u32 %v722, 4294901760
      %2215 = vmatpush1.msra.mxu0 %v2214
      %2216 = vmatprep.subr.mxu0 0.0
      %v2217 = vand.u32 %v723, 4294901760
      %2218 = vmatpush1.msra.mxu0 %v2217
      %2219 = vmatprep.subr.mxu0 0.0
      %v2220 = vand.u32 %v724, 4294901760
      %2221 = vmatpush1.msra.mxu0 %v2220
      %2222 = vmatprep.subr.mxu0 0.0
      %v2223 = vand.u32 %v725, 4294901760
      %2224 = vmatpush1.msra.mxu0 %v2223
      %2225 = vmatprep.subr.mxu0 0.0
      %v2226 = vand.u32 %v726, 4294901760
      %2227 = vmatpush1.msra.mxu0 %v2226
      %2228 = vmatprep.subr.mxu0 0.0
      %v2229 = vand.u32 %v727, 4294901760
      %2230 = vmatpush1.msra.mxu0 %v2229
      %2231 = vmatprep.subr.mxu0 0.0
      %v2232 = vand.u32 %v728, 4294901760
      %2233 = vmatpush1.msra.mxu0 %v2232
      %2234 = vmatprep.subr.mxu0 0.0
      %v2235 = vand.u32 %v729, 4294901760
      %2236 = vmatpush1.msra.mxu0 %v2235
      %2237 = vmatprep.subr.mxu0 0.0
      %v2238 = vand.u32 %v730, 4294901760
      %2239 = vmatpush1.msra.mxu0 %v2238
      %2240 = vmatprep.subr.mxu0 0.0
      %v2241 = vand.u32 %v731, 4294901760
      %2242 = vmatpush1.msra.mxu0 %v2241
      %2243 = vmatprep.subr.mxu0 0.0
      %v2244 = vand.u32 %v732, 4294901760
      %2245 = vmatpush1.msra.mxu0 %v2244
      %2246 = vmatprep.subr.mxu0 0.0
      %v2247 = vand.u32 %v733, 4294901760
      %2248 = vmatpush1.msra.mxu0 %v2247
      %2249 = vmatprep.subr.mxu0 0.0
      %v2250 = vand.u32 %v734, 4294901760
      %2251 = vmatpush1.msra.mxu0 %v2250
      %2252 = vmatprep.subr.mxu0 0.0
      %v2253 = vand.u32 %v735, 4294901760
      %2254 = vmatpush1.msra.mxu0 %v2253
      %2255 = vmatprep.subr.mxu0 0.0
      %v2256 = vand.u32 %v736, 4294901760
      %2257 = vmatpush1.msra.mxu0 %v2256
      %2258 = vmatprep.subr.mxu0 0.0
      %v2259 = vand.u32 %v737, 4294901760
      %2260 = vmatpush1.msra.mxu0 %v2259
      %2261 = vmatprep.subr.mxu0 0.0
      %v2262 = vand.u32 %v738, 4294901760
      %2263 = vmatpush1.msra.mxu0 %v2262
      %2264 = vmatprep.subr.mxu0 0.0
      %v2265 = vand.u32 %v739, 4294901760
      %2266 = vmatpush1.msra.mxu0 %v2265
      %2267 = vmatprep.subr.mxu0 0.0
      %v2268 = vand.u32 %v740, 4294901760
      %2269 = vmatpush1.msra.mxu0 %v2268
      %2270 = vmatprep.subr.mxu0 0.0
      %v2271 = vand.u32 %v741, 4294901760
      %2272 = vmatpush1.msra.mxu0 %v2271
      %2273 = vmatprep.subr.mxu0 0.0
      %v2274 = vand.u32 %v742, 4294901760
      %2275 = vmatpush1.msra.mxu0 %v2274
      %2276 = vmatprep.subr.mxu0 0.0
      %v2277 = vand.u32 %v743, 4294901760
      %2278 = vmatpush1.msra.mxu0 %v2277
      %2279 = vmatprep.subr.mxu0 0.0
      %v2280 = vand.u32 %v744, 4294901760
      %2281 = vmatpush1.msra.mxu0 %v2280
      %2282 = vmatprep.subr.mxu0 0.0
      %v2283 = vand.u32 %v745, 4294901760
      %2284 = vmatpush1.msra.mxu0 %v2283
      %v2285 = vand.u32 %v651, 4294901760
      %v2286 = vsub.f32 %v651, %v2285
      %v2287 = vand.u32 %v2286, 4294901760
      %2288 = vmatprep.mubr.f32.mxu0 %v2287
      %v2289 = vand.u32 %v650, 4294901760
      %v2290 = vsub.f32 %v650, %v2289
      %v2291 = vand.u32 %v2290, 4294901760
      %2292 = vmatmul.mubr.f32.gmra.mrb[0].mxu0 %v2291
      %v2293 = vpop.f32.mrb[0].mxu0
      %v2294 = vadd.f32 %v1907, %v2293
      %v2295 = vpop.f32.mrb[0].mxu0
      %v2296 = vand.u32 %v653, 4294901760
      %v2297 = vsub.f32 %v653, %v2296
      %v2298 = vand.u32 %v2297, 4294901760
      %2299 = vmatprep.mubr.f32.mxu0 %v2298
      %v2300 = vand.u32 %v652, 4294901760
      %v2301 = vsub.f32 %v652, %v2300
      %v2302 = vand.u32 %v2301, 4294901760
      %2303 = vmatmul.mubr.f32.gmra.mrb[0].mxu0 %v2302
      %v2304 = vpop.f32.mrb[0].mxu0
      %v2305 = vadd.f32 %v1916, %v2304
      %v2306 = vpop.f32.mrb[0].mxu0
      %v2307 = vand.u32 %v655, 4294901760
      %v2308 = vsub.f32 %v655, %v2307
      %v2309 = vand.u32 %v2308, 4294901760
      %2310 = vmatprep.mubr.f32.mxu0 %v2309
      %v2311 = vand.u32 %v654, 4294901760
      %v2312 = vsub.f32 %v654, %v2311
      %v2313 = vand.u32 %v2312, 4294901760
      %2314 = vmatmul.mubr.f32.gmra.mrb[0].mxu0 %v2313
      %v2315 = vpop.f32.mrb[0].mxu0
      %v2316 = vadd.f32 %v1925, %v2315
      %v2317 = vpop.f32.mrb[0].mxu0
      %v2318 = vand.u32 %v657, 4294901760
      %v2319 = vsub.f32 %v657, %v2318
      %v2320 = vand.u32 %v2319, 4294901760
      %2321 = vmatprep.mubr.f32.mxu0 %v2320
      %v2322 = vand.u32 %v656, 4294901760
      %v2323 = vsub.f32 %v656, %v2322
      %v2324 = vand.u32 %v2323, 4294901760
      %2325 = vmatmul.mubr.f32.gmra.mrb[0].mxu0 %v2324
      %v2326 = vpop.f32.mrb[0].mxu0
      %v2327 = vadd.f32 %v1934, %v2326
      %v2328 = vpop.f32.mrb[0].mxu0
      %v2329 = vand.u32 %v659, 4294901760
      %v2330 = vsub.f32 %v659, %v2329
      %v2331 = vand.u32 %v2330, 4294901760
      %2332 = vmatprep.mubr.f32.mxu0 %v2331
      %v2333 = vand.u32 %v658, 4294901760
      %v2334 = vsub.f32 %v658, %v2333
      %v2335 = vand.u32 %v2334, 4294901760
      %2336 = vmatmul.mubr.f32.gmra.mrb[0].mxu0 %v2335
      %v2337 = vpop.f32.mrb[0].mxu0
      %v2338 = vadd.f32 %v1943, %v2337
      %v2339 = vpop.f32.mrb[0].mxu0
      %v2340 = vand.u32 %v661, 4294901760
      %v2341 = vsub.f32 %v661, %v2340
      %v2342 = vand.u32 %v2341, 4294901760
      %2343 = vmatprep.mubr.f32.mxu0 %v2342
      %v2344 = vand.u32 %v660, 4294901760
      %v2345 = vsub.f32 %v660, %v2344
      %v2346 = vand.u32 %v2345, 4294901760
      %2347 = vmatmul.mubr.f32.gmra.mrb[0].mxu0 %v2346
      %v2348 = vpop.f32.mrb[0].mxu0
      %v2349 = vadd.f32 %v1952, %v2348
      %v2350 = vpop.f32.mrb[0].mxu0
      %v2351 = vand.u32 %v663, 4294901760
      %v2352 = vsub.f32 %v663, %v2351
      %v2353 = vand.u32 %v2352, 4294901760
      %2354 = vmatprep.mubr.f32.mxu0 %v2353
      %v2355 = vand.u32 %v662, 4294901760
      %v2356 = vsub.f32 %v662, %v2355
      %v2357 = vand.u32 %v2356, 4294901760
      %2358 = vmatmul.mubr.f32.gmra.mrb[0].mxu0 %v2357
      %v2359 = vpop.f32.mrb[0].mxu0
      %v2360 = vadd.f32 %v1961, %v2359
      %v2361 = vpop.f32.mrb[0].mxu0
      %v2362 = vand.u32 %v665, 4294901760
      %v2363 = vsub.f32 %v665, %v2362
      %v2364 = vand.u32 %v2363, 4294901760
      %2365 = vmatprep.mubr.f32.mxu0 %v2364
      %v2366 = vand.u32 %v664, 4294901760
      %v2367 = vsub.f32 %v664, %v2366
      %v2368 = vand.u32 %v2367, 4294901760
      %2369 = vmatmul.mubr.f32.gmra.mrb[0].mxu0 %v2368
      %v2370 = vpop.f32.mrb[0].mxu0
      %v2371 = vadd.f32 %v1970, %v2370
      %v2372 = vpop.f32.mrb[0].mxu0
      %v2373 = vand.u32 %v667, 4294901760
      %v2374 = vsub.f32 %v667, %v2373
      %v2375 = vand.u32 %v2374, 4294901760
      %2376 = vmatprep.mubr.f32.mxu0 %v2375
      %v2377 = vand.u32 %v666, 4294901760
      %v2378 = vsub.f32 %v666, %v2377
      %v2379 = vand.u32 %v2378, 4294901760
      %2380 = vmatmul.mubr.f32.gmra.mrb[0].mxu0 %v2379
      %v2381 = vpop.f32.mrb[0].mxu0
      %v2382 = vadd.f32 %v1979, %v2381
      %v2383 = vpop.f32.mrb[0].mxu0
      %v2384 = vand.u32 %v669, 4294901760
      %v2385 = vsub.f32 %v669, %v2384
      %v2386 = vand.u32 %v2385, 4294901760
      %2387 = vmatprep.mubr.f32.mxu0 %v2386
      %v2388 = vand.u32 %v668, 4294901760
      %v2389 = vsub.f32 %v668, %v2388
      %v2390 = vand.u32 %v2389, 4294901760
      %2391 = vmatmul.mubr.f32.gmra.mrb[0].mxu0 %v2390
      %v2392 = vpop.f32.mrb[0].mxu0
      %v2393 = vadd.f32 %v1988, %v2392
      %v2394 = vpop.f32.mrb[0].mxu0
      %v2395 = vand.u32 %v671, 4294901760
      %v2396 = vsub.f32 %v671, %v2395
      %v2397 = vand.u32 %v2396, 4294901760
      %2398 = vmatprep.mubr.f32.mxu0 %v2397
      %v2399 = vand.u32 %v670, 4294901760
      %v2400 = vsub.f32 %v670, %v2399
      %v2401 = vand.u32 %v2400, 4294901760
      %2402 = vmatmul.mubr.f32.gmra.mrb[0].mxu0 %v2401
      %v2403 = vpop.f32.mrb[0].mxu0
      %v2404 = vadd.f32 %v1997, %v2403
      %v2405 = vpop.f32.mrb[0].mxu0
      %v2406 = vand.u32 %v673, 4294901760
      %v2407 = vsub.f32 %v673, %v2406
      %v2408 = vand.u32 %v2407, 4294901760
      %2409 = vmatprep.mubr.f32.mxu0 %v2408
      %v2410 = vand.u32 %v672, 4294901760
      %v2411 = vsub.f32 %v672, %v2410
      %v2412 = vand.u32 %v2411, 4294901760
      %2413 = vmatmul.mubr.f32.gmra.mrb[0].mxu0 %v2412
      %v2414 = vpop.f32.mrb[0].mxu0
      %v2415 = vadd.f32 %v2006, %v2414
      %v2416 = vpop.f32.mrb[0].mxu0
      %v2417 = vand.u32 %v675, 4294901760
      %v2418 = vsub.f32 %v675, %v2417
      %v2419 = vand.u32 %v2418, 4294901760
      %2420 = vmatprep.mubr.f32.mxu0 %v2419
      %v2421 = vand.u32 %v674, 4294901760
      %v2422 = vsub.f32 %v674, %v2421
      %v2423 = vand.u32 %v2422, 4294901760
      %2424 = vmatmul.mubr.f32.gmra.mrb[0].mxu0 %v2423
      %v2425 = vpop.f32.mrb[0].mxu0
      %v2426 = vadd.f32 %v2015, %v2425
      %v2427 = vpop.f32.mrb[0].mxu0
      %v2428 = vand.u32 %v677, 4294901760
      %v2429 = vsub.f32 %v677, %v2428
      %v2430 = vand.u32 %v2429, 4294901760
      %2431 = vmatprep.mubr.f32.mxu0 %v2430
      %v2432 = vand.u32 %v676, 4294901760
      %v2433 = vsub.f32 %v676, %v2432
      %v2434 = vand.u32 %v2433, 4294901760
      %2435 = vmatmul.mubr.f32.gmra.mrb[0].mxu0 %v2434
      %v2436 = vpop.f32.mrb[0].mxu0
      %v2437 = vadd.f32 %v2024, %v2436
      %v2438 = vpop.f32.mrb[0].mxu0
      %v2439 = vand.u32 %v679, 4294901760
      %v2440 = vsub.f32 %v679, %v2439
      %v2441 = vand.u32 %v2440, 4294901760
      %2442 = vmatprep.mubr.f32.mxu0 %v2441
      %v2443 = vand.u32 %v678, 4294901760
      %v2444 = vsub.f32 %v678, %v2443
      %v2445 = vand.u32 %v2444, 4294901760
      %2446 = vmatmul.mubr.f32.gmra.mrb[0].mxu0 %v2445
      %v2447 = vpop.f32.mrb[0].mxu0
      %v2448 = vadd.f32 %v2033, %v2447
      %v2449 = vpop.f32.mrb[0].mxu0
      %v2450 = vand.u32 %v681, 4294901760
      %v2451 = vsub.f32 %v681, %v2450
      %v2452 = vand.u32 %v2451, 4294901760
      %2453 = vmatprep.mubr.f32.mxu0 %v2452
      %v2454 = vand.u32 %v680, 4294901760
      %v2455 = vsub.f32 %v680, %v2454
      %v2456 = vand.u32 %v2455, 4294901760
      %2457 = vmatmul.mubr.f32.gmra.mrb[0].mxu0 %v2456
      %v2458 = vpop.f32.mrb[0].mxu0
      %v2459 = vadd.f32 %v2042, %v2458
      %v2460 = vpop.f32.mrb[0].mxu0
      %v2461 = vand.u32 %v683, 4294901760
      %v2462 = vsub.f32 %v683, %v2461
      %v2463 = vand.u32 %v2462, 4294901760
      %2464 = vmatprep.mubr.f32.mxu0 %v2463
      %v2465 = vand.u32 %v682, 4294901760
      %v2466 = vsub.f32 %v682, %v2465
      %v2467 = vand.u32 %v2466, 4294901760
      %2468 = vmatmul.mubr.f32.gmra.mrb[0].mxu0 %v2467
      %v2469 = vpop.f32.mrb[0].mxu0
      %v2470 = vadd.f32 %v2051, %v2469
      %v2471 = vpop.f32.mrb[0].mxu0
      %v2472 = vand.u32 %v685, 4294901760
      %v2473 = vsub.f32 %v685, %v2472
      %v2474 = vand.u32 %v2473, 4294901760
      %2475 = vmatprep.mubr.f32.mxu0 %v2474
      %v2476 = vand.u32 %v684, 4294901760
      %v2477 = vsub.f32 %v684, %v2476
      %v2478 = vand.u32 %v2477, 4294901760
      %2479 = vmatmul.mubr.f32.gmra.mrb[0].mxu0 %v2478
      %v2480 = vpop.f32.mrb[0].mxu0
      %v2481 = vadd.f32 %v2060, %v2480
      %v2482 = vpop.f32.mrb[0].mxu0
      %v2483 = vand.u32 %v687, 4294901760
      %v2484 = vsub.f32 %v687, %v2483
      %v2485 = vand.u32 %v2484, 4294901760
      %2486 = vmatprep.mubr.f32.mxu0 %v2485
      %v2487 = vand.u32 %v686, 4294901760
      %v2488 = vsub.f32 %v686, %v2487
      %v2489 = vand.u32 %v2488, 4294901760
      %2490 = vmatmul.mubr.f32.gmra.mrb[0].mxu0 %v2489
      %v2491 = vpop.f32.mrb[0].mxu0
      %v2492 = vadd.f32 %v2069, %v2491
      %v2493 = vpop.f32.mrb[0].mxu0
      %v2494 = vand.u32 %v689, 4294901760
      %v2495 = vsub.f32 %v689, %v2494
      %v2496 = vand.u32 %v2495, 4294901760
      %2497 = vmatprep.mubr.f32.mxu0 %v2496
      %v2498 = vand.u32 %v688, 4294901760
      %v2499 = vsub.f32 %v688, %v2498
      %v2500 = vand.u32 %v2499, 4294901760
      %2501 = vmatmul.mubr.f32.gmra.mrb[0].mxu0 %v2500
      %v2502 = vpop.f32.mrb[0].mxu0
      %v2503 = vadd.f32 %v2078, %v2502
      %v2504 = vpop.f32.mrb[0].mxu0
      %v2505 = vand.u32 %v691, 4294901760
      %v2506 = vsub.f32 %v691, %v2505
      %v2507 = vand.u32 %v2506, 4294901760
      %2508 = vmatprep.mubr.f32.mxu0 %v2507
      %v2509 = vand.u32 %v690, 4294901760
      %v2510 = vsub.f32 %v690, %v2509
      %v2511 = vand.u32 %v2510, 4294901760
      %2512 = vmatmul.mubr.f32.gmra.mrb[0].mxu0 %v2511
      %v2513 = vpop.f32.mrb[0].mxu0
      %v2514 = vadd.f32 %v2087, %v2513
      %v2515 = vpop.f32.mrb[0].mxu0
      %v2516 = vand.u32 %v693, 4294901760
      %v2517 = vsub.f32 %v693, %v2516
      %v2518 = vand.u32 %v2517, 4294901760
      %2519 = vmatprep.mubr.f32.mxu0 %v2518
      %v2520 = vand.u32 %v692, 4294901760
      %v2521 = vsub.f32 %v692, %v2520
      %v2522 = vand.u32 %v2521, 4294901760
      %2523 = vmatmul.mubr.f32.gmra.mrb[0].mxu0 %v2522
      %v2524 = vpop.f32.mrb[0].mxu0
      %v2525 = vadd.f32 %v2096, %v2524
      %v2526 = vpop.f32.mrb[0].mxu0
      %v2527 = vand.u32 %v695, 4294901760
      %v2528 = vsub.f32 %v695, %v2527
      %v2529 = vand.u32 %v2528, 4294901760
      %2530 = vmatprep.mubr.f32.mxu0 %v2529
      %v2531 = vand.u32 %v694, 4294901760
      %v2532 = vsub.f32 %v694, %v2531
      %v2533 = vand.u32 %v2532, 4294901760
      %2534 = vmatmul.mubr.f32.gmra.mrb[0].mxu0 %v2533
      %v2535 = vpop.f32.mrb[0].mxu0
      %v2536 = vadd.f32 %v2105, %v2535
      %v2537 = vpop.f32.mrb[0].mxu0
      %v2538 = vand.u32 %v697, 4294901760
      %v2539 = vsub.f32 %v697, %v2538
      %v2540 = vand.u32 %v2539, 4294901760
      %2541 = vmatprep.mubr.f32.mxu0 %v2540
      %v2542 = vand.u32 %v696, 4294901760
      %v2543 = vsub.f32 %v696, %v2542
      %v2544 = vand.u32 %v2543, 4294901760
      %2545 = vmatmul.mubr.f32.gmra.mrb[0].mxu0 %v2544
      %v2546 = vpop.f32.mrb[0].mxu0
      %v2547 = vadd.f32 %v2114, %v2546
      %v2548 = vpop.f32.mrb[0].mxu0
      %v2549 = vand.u32 %v699, 4294901760
      %v2550 = vsub.f32 %v699, %v2549
      %v2551 = vand.u32 %v2550, 4294901760
      %2552 = vmatprep.mubr.f32.mxu0 %v2551
      %v2553 = vand.u32 %v698, 4294901760
      %v2554 = vsub.f32 %v698, %v2553
      %v2555 = vand.u32 %v2554, 4294901760
      %2556 = vmatmul.mubr.f32.gmra.mrb[0].mxu0 %v2555
      %v2557 = vpop.f32.mrb[0].mxu0
      %v2558 = vadd.f32 %v2123, %v2557
      %v2559 = vpop.f32.mrb[0].mxu0
      %v2560 = vand.u32 %v701, 4294901760
      %v2561 = vsub.f32 %v701, %v2560
      %v2562 = vand.u32 %v2561, 4294901760
      %2563 = vmatprep.mubr.f32.mxu0 %v2562
      %v2564 = vand.u32 %v700, 4294901760
      %v2565 = vsub.f32 %v700, %v2564
      %v2566 = vand.u32 %v2565, 4294901760
      %2567 = vmatmul.mubr.f32.gmra.mrb[0].mxu0 %v2566
      %v2568 = vpop.f32.mrb[0].mxu0
      %v2569 = vadd.f32 %v2132, %v2568
      %v2570 = vpop.f32.mrb[0].mxu0
      %v2571 = vand.u32 %v703, 4294901760
      %v2572 = vsub.f32 %v703, %v2571
      %v2573 = vand.u32 %v2572, 4294901760
      %2574 = vmatprep.mubr.f32.mxu0 %v2573
      %v2575 = vand.u32 %v702, 4294901760
      %v2576 = vsub.f32 %v702, %v2575
      %v2577 = vand.u32 %v2576, 4294901760
      %2578 = vmatmul.mubr.f32.gmra.mrb[0].mxu0 %v2577
      %v2579 = vpop.f32.mrb[0].mxu0
      %v2580 = vadd.f32 %v2141, %v2579
      %v2581 = vpop.f32.mrb[0].mxu0
      %v2582 = vand.u32 %v705, 4294901760
      %v2583 = vsub.f32 %v705, %v2582
      %v2584 = vand.u32 %v2583, 4294901760
      %2585 = vmatprep.mubr.f32.mxu0 %v2584
      %v2586 = vand.u32 %v704, 4294901760
      %v2587 = vsub.f32 %v704, %v2586
      %v2588 = vand.u32 %v2587, 4294901760
      %2589 = vmatmul.mubr.f32.gmra.mrb[0].mxu0 %v2588
      %v2590 = vpop.f32.mrb[0].mxu0
      %v2591 = vadd.f32 %v2150, %v2590
      %v2592 = vpop.f32.mrb[0].mxu0
      %v2593 = vand.u32 %v707, 4294901760
      %v2594 = vsub.f32 %v707, %v2593
      %v2595 = vand.u32 %v2594, 4294901760
      %2596 = vmatprep.mubr.f32.mxu0 %v2595
      %v2597 = vand.u32 %v706, 4294901760
      %v2598 = vsub.f32 %v706, %v2597
      %v2599 = vand.u32 %v2598, 4294901760
      %2600 = vmatmul.mubr.f32.gmra.mrb[0].mxu0 %v2599
      %v2601 = vpop.f32.mrb[0].mxu0
      %v2602 = vadd.f32 %v2159, %v2601
      %v2603 = vpop.f32.mrb[0].mxu0
      %v2604 = vand.u32 %v709, 4294901760
      %v2605 = vsub.f32 %v709, %v2604
      %v2606 = vand.u32 %v2605, 4294901760
      %2607 = vmatprep.mubr.f32.mxu0 %v2606
      %v2608 = vand.u32 %v708, 4294901760
      %v2609 = vsub.f32 %v708, %v2608
      %v2610 = vand.u32 %v2609, 4294901760
      %2611 = vmatmul.mubr.f32.gmra.mrb[0].mxu0 %v2610
      %v2612 = vpop.f32.mrb[0].mxu0
      %v2613 = vadd.f32 %v2168, %v2612
      %v2614 = vpop.f32.mrb[0].mxu0
      %v2615 = vand.u32 %v711, 4294901760
      %v2616 = vsub.f32 %v711, %v2615
      %v2617 = vand.u32 %v2616, 4294901760
      %2618 = vmatprep.mubr.f32.mxu0 %v2617
      %v2619 = vand.u32 %v710, 4294901760
      %v2620 = vsub.f32 %v710, %v2619
      %v2621 = vand.u32 %v2620, 4294901760
      %2622 = vmatmul.mubr.f32.gmra.mrb[0].mxu0 %v2621
      %v2623 = vpop.f32.mrb[0].mxu0
      %v2624 = vadd.f32 %v2177, %v2623
      %v2625 = vpop.f32.mrb[0].mxu0
      %v2626 = vand.u32 %v713, 4294901760
      %v2627 = vsub.f32 %v713, %v2626
      %v2628 = vand.u32 %v2627, 4294901760
      %2629 = vmatprep.mubr.f32.mxu0 %v2628
      %v2630 = vand.u32 %v712, 4294901760
      %v2631 = vsub.f32 %v712, %v2630
      %v2632 = vand.u32 %v2631, 4294901760
      %2633 = vmatmul.mubr.f32.gmra.mrb[0].mxu0 %v2632
      %v2634 = vpop.f32.mrb[0].mxu0
      %v2635 = vadd.f32 %v2186, %v2634
      %v2636 = vpop.f32.mrb[0].mxu0
      %2637 = vdwg.mxu0
      %2638 = vmatprep.subr.mxu0 0.0
      %v2639 = vand.u32 %v714, 4294901760
      %v2640 = vsub.f32 %v714, %v2639
      %v2641 = vand.u32 %v2640, 4294901760
      %2642 = vmatpush1.msra.mxu0 %v2641
      %2643 = vmatprep.subr.mxu0 0.0
      %v2644 = vand.u32 %v715, 4294901760
      %v2645 = vsub.f32 %v715, %v2644
      %v2646 = vand.u32 %v2645, 4294901760
      %2647 = vmatpush1.msra.mxu0 %v2646
      %2648 = vmatprep.subr.mxu0 0.0
      %v2649 = vand.u32 %v716, 4294901760
      %v2650 = vsub.f32 %v716, %v2649
      %v2651 = vand.u32 %v2650, 4294901760
      %2652 = vmatpush1.msra.mxu0 %v2651
      %2653 = vmatprep.subr.mxu0 0.0
      %v2654 = vand.u32 %v717, 4294901760
      %v2655 = vsub.f32 %v717, %v2654
      %v2656 = vand.u32 %v2655, 4294901760
      %2657 = vmatpush1.msra.mxu0 %v2656
      %2658 = vmatprep.subr.mxu0 0.0
      %v2659 = vand.u32 %v718, 4294901760
      %v2660 = vsub.f32 %v718, %v2659
      %v2661 = vand.u32 %v2660, 4294901760
      %2662 = vmatpush1.msra.mxu0 %v2661
      %2663 = vmatprep.subr.mxu0 0.0
      %v2664 = vand.u32 %v719, 4294901760
      %v2665 = vsub.f32 %v719, %v2664
      %v2666 = vand.u32 %v2665, 4294901760
      %2667 = vmatpush1.msra.mxu0 %v2666
      %2668 = vmatprep.subr.mxu0 0.0
      %v2669 = vand.u32 %v720, 4294901760
      %v2670 = vsub.f32 %v720, %v2669
      %v2671 = vand.u32 %v2670, 4294901760
      %2672 = vmatpush1.msra.mxu0 %v2671
      %2673 = vmatprep.subr.mxu0 0.0
      %v2674 = vand.u32 %v721, 4294901760
      %v2675 = vsub.f32 %v721, %v2674
      %v2676 = vand.u32 %v2675, 4294901760
      %2677 = vmatpush1.msra.mxu0 %v2676
      %2678 = vmatprep.subr.mxu0 0.0
      %v2679 = vand.u32 %v722, 4294901760
      %v2680 = vsub.f32 %v722, %v2679
      %v2681 = vand.u32 %v2680, 4294901760
      %2682 = vmatpush1.msra.mxu0 %v2681
      %2683 = vmatprep.subr.mxu0 0.0
      %v2684 = vand.u32 %v723, 4294901760
      %v2685 = vsub.f32 %v723, %v2684
      %v2686 = vand.u32 %v2685, 4294901760
      %2687 = vmatpush1.msra.mxu0 %v2686
      %2688 = vmatprep.subr.mxu0 0.0
      %v2689 = vand.u32 %v724, 4294901760
      %v2690 = vsub.f32 %v724, %v2689
      %v2691 = vand.u32 %v2690, 4294901760
      %2692 = vmatpush1.msra.mxu0 %v2691
      %2693 = vmatprep.subr.mxu0 0.0
      %v2694 = vand.u32 %v725, 4294901760
      %v2695 = vsub.f32 %v725, %v2694
      %v2696 = vand.u32 %v2695, 4294901760
      %2697 = vmatpush1.msra.mxu0 %v2696
      %2698 = vmatprep.subr.mxu0 0.0
      %v2699 = vand.u32 %v726, 4294901760
      %v2700 = vsub.f32 %v726, %v2699
      %v2701 = vand.u32 %v2700, 4294901760
      %2702 = vmatpush1.msra.mxu0 %v2701
      %2703 = vmatprep.subr.mxu0 0.0
      %v2704 = vand.u32 %v727, 4294901760
      %v2705 = vsub.f32 %v727, %v2704
      %v2706 = vand.u32 %v2705, 4294901760
      %2707 = vmatpush1.msra.mxu0 %v2706
      %2708 = vmatprep.subr.mxu0 0.0
      %v2709 = vand.u32 %v728, 4294901760
      %v2710 = vsub.f32 %v728, %v2709
      %v2711 = vand.u32 %v2710, 4294901760
      %2712 = vmatpush1.msra.mxu0 %v2711
      %2713 = vmatprep.subr.mxu0 0.0
      %v2714 = vand.u32 %v729, 4294901760
      %v2715 = vsub.f32 %v729, %v2714
      %v2716 = vand.u32 %v2715, 4294901760
      %2717 = vmatpush1.msra.mxu0 %v2716
      %2718 = vmatprep.subr.mxu0 0.0
      %v2719 = vand.u32 %v730, 4294901760
      %v2720 = vsub.f32 %v730, %v2719
      %v2721 = vand.u32 %v2720, 4294901760
      %2722 = vmatpush1.msra.mxu0 %v2721
      %2723 = vmatprep.subr.mxu0 0.0
      %v2724 = vand.u32 %v731, 4294901760
      %v2725 = vsub.f32 %v731, %v2724
      %v2726 = vand.u32 %v2725, 4294901760
      %2727 = vmatpush1.msra.mxu0 %v2726
      %2728 = vmatprep.subr.mxu0 0.0
      %v2729 = vand.u32 %v732, 4294901760
      %v2730 = vsub.f32 %v732, %v2729
      %v2731 = vand.u32 %v2730, 4294901760
      %2732 = vmatpush1.msra.mxu0 %v2731
      %2733 = vmatprep.subr.mxu0 0.0
      %v2734 = vand.u32 %v733, 4294901760
      %v2735 = vsub.f32 %v733, %v2734
      %v2736 = vand.u32 %v2735, 4294901760
      %2737 = vmatpush1.msra.mxu0 %v2736
      %2738 = vmatprep.subr.mxu0 0.0
      %v2739 = vand.u32 %v734, 4294901760
      %v2740 = vsub.f32 %v734, %v2739
      %v2741 = vand.u32 %v2740, 4294901760
      %2742 = vmatpush1.msra.mxu0 %v2741
      %2743 = vmatprep.subr.mxu0 0.0
      %v2744 = vand.u32 %v735, 4294901760
      %v2745 = vsub.f32 %v735, %v2744
      %v2746 = vand.u32 %v2745, 4294901760
      %2747 = vmatpush1.msra.mxu0 %v2746
      %2748 = vmatprep.subr.mxu0 0.0
      %v2749 = vand.u32 %v736, 4294901760
      %v2750 = vsub.f32 %v736, %v2749
      %v2751 = vand.u32 %v2750, 4294901760
      %2752 = vmatpush1.msra.mxu0 %v2751
      %2753 = vmatprep.subr.mxu0 0.0
      %v2754 = vand.u32 %v737, 4294901760
      %v2755 = vsub.f32 %v737, %v2754
      %v2756 = vand.u32 %v2755, 4294901760
      %2757 = vmatpush1.msra.mxu0 %v2756
      %2758 = vmatprep.subr.mxu0 0.0
      %v2759 = vand.u32 %v738, 4294901760
      %v2760 = vsub.f32 %v738, %v2759
      %v2761 = vand.u32 %v2760, 4294901760
      %2762 = vmatpush1.msra.mxu0 %v2761
      %2763 = vmatprep.subr.mxu0 0.0
      %v2764 = vand.u32 %v739, 4294901760
      %v2765 = vsub.f32 %v739, %v2764
      %v2766 = vand.u32 %v2765, 4294901760
      %2767 = vmatpush1.msra.mxu0 %v2766
      %2768 = vmatprep.subr.mxu0 0.0
      %v2769 = vand.u32 %v740, 4294901760
      %v2770 = vsub.f32 %v740, %v2769
      %v2771 = vand.u32 %v2770, 4294901760
      %2772 = vmatpush1.msra.mxu0 %v2771
      %2773 = vmatprep.subr.mxu0 0.0
      %v2774 = vand.u32 %v741, 4294901760
      %v2775 = vsub.f32 %v741, %v2774
      %v2776 = vand.u32 %v2775, 4294901760
      %2777 = vmatpush1.msra.mxu0 %v2776
      %2778 = vmatprep.subr.mxu0 0.0
      %v2779 = vand.u32 %v742, 4294901760
      %v2780 = vsub.f32 %v742, %v2779
      %v2781 = vand.u32 %v2780, 4294901760
      %2782 = vmatpush1.msra.mxu0 %v2781
      %2783 = vmatprep.subr.mxu0 0.0
      %v2784 = vand.u32 %v743, 4294901760
      %v2785 = vsub.f32 %v743, %v2784
      %v2786 = vand.u32 %v2785, 4294901760
      %2787 = vmatpush1.msra.mxu0 %v2786
      %2788 = vmatprep.subr.mxu0 0.0
      %v2789 = vand.u32 %v744, 4294901760
      %v2790 = vsub.f32 %v744, %v2789
      %v2791 = vand.u32 %v2790, 4294901760
      %2792 = vmatpush1.msra.mxu0 %v2791
      %2793 = vmatprep.subr.mxu0 0.0
      %v2794 = vand.u32 %v745, 4294901760
      %v2795 = vsub.f32 %v745, %v2794
      %v2796 = vand.u32 %v2795, 4294901760
      %2797 = vmatpush1.msra.mxu0 %v2796
      %v2798 = vand.u32 %v651, 4294901760
      %2799 = vmatprep.mubr.f32.mxu0 %v2798
      %v2800 = vand.u32 %v650, 4294901760
      %2801 = vmatmul.mubr.f32.gmra.mrb[0].mxu0 %v2800
      %v2802 = vpop.f32.mrb[0].mxu0
      %v2803 = vadd.f32 %v2294, %v2802
      %v2804 = vpop.f32.mrb[0].mxu0
      %v2805 = vand.u32 %v653, 4294901760
      %2806 = vmatprep.mubr.f32.mxu0 %v2805
      %v2807 = vand.u32 %v652, 4294901760
      %2808 = vmatmul.mubr.f32.gmra.mrb[0].mxu0 %v2807
      %v2809 = vpop.f32.mrb[0].mxu0
      %v2810 = vadd.f32 %v2305, %v2809
      %v2811 = vpop.f32.mrb[0].mxu0
      %v2812 = vand.u32 %v655, 4294901760
      %2813 = vmatprep.mubr.f32.mxu0 %v2812
      %v2814 = vand.u32 %v654, 4294901760
      %2815 = vmatmul.mubr.f32.gmra.mrb[0].mxu0 %v2814
      %v2816 = vpop.f32.mrb[0].mxu0
      %v2817 = vadd.f32 %v2316, %v2816
      %v2818 = vpop.f32.mrb[0].mxu0
      %v2819 = vand.u32 %v657, 4294901760
      %2820 = vmatprep.mubr.f32.mxu0 %v2819
      %v2821 = vand.u32 %v656, 4294901760
      %2822 = vmatmul.mubr.f32.gmra.mrb[0].mxu0 %v2821
      %v2823 = vpop.f32.mrb[0].mxu0
      %v2824 = vadd.f32 %v2327, %v2823
      %v2825 = vpop.f32.mrb[0].mxu0
      %v2826 = vand.u32 %v659, 4294901760
      %2827 = vmatprep.mubr.f32.mxu0 %v2826
      %v2828 = vand.u32 %v658, 4294901760
      %2829 = vmatmul.mubr.f32.gmra.mrb[0].mxu0 %v2828
      %v2830 = vpop.f32.mrb[0].mxu0
      %v2831 = vadd.f32 %v2338, %v2830
      %v2832 = vpop.f32.mrb[0].mxu0
      %v2833 = vand.u32 %v661, 4294901760
      %2834 = vmatprep.mubr.f32.mxu0 %v2833
      %v2835 = vand.u32 %v660, 4294901760
      %2836 = vmatmul.mubr.f32.gmra.mrb[0].mxu0 %v2835
      %v2837 = vpop.f32.mrb[0].mxu0
      %v2838 = vadd.f32 %v2349, %v2837
      %v2839 = vpop.f32.mrb[0].mxu0
      %v2840 = vand.u32 %v663, 4294901760
      %2841 = vmatprep.mubr.f32.mxu0 %v2840
      %v2842 = vand.u32 %v662, 4294901760
      %2843 = vmatmul.mubr.f32.gmra.mrb[0].mxu0 %v2842
      %v2844 = vpop.f32.mrb[0].mxu0
      %v2845 = vadd.f32 %v2360, %v2844
      %v2846 = vpop.f32.mrb[0].mxu0
      %v2847 = vand.u32 %v665, 4294901760
      %2848 = vmatprep.mubr.f32.mxu0 %v2847
      %v2849 = vand.u32 %v664, 4294901760
      %2850 = vmatmul.mubr.f32.gmra.mrb[0].mxu0 %v2849
      %v2851 = vpop.f32.mrb[0].mxu0
      %v2852 = vadd.f32 %v2371, %v2851
      %v2853 = vpop.f32.mrb[0].mxu0
      %v2854 = vand.u32 %v667, 4294901760
      %2855 = vmatprep.mubr.f32.mxu0 %v2854
      %v2856 = vand.u32 %v666, 4294901760
      %2857 = vmatmul.mubr.f32.gmra.mrb[0].mxu0 %v2856
      %v2858 = vpop.f32.mrb[0].mxu0
      %v2859 = vadd.f32 %v2382, %v2858
      %v2860 = vpop.f32.mrb[0].mxu0
      %v2861 = vand.u32 %v669, 4294901760
      %2862 = vmatprep.mubr.f32.mxu0 %v2861
      %v2863 = vand.u32 %v668, 4294901760
      %2864 = vmatmul.mubr.f32.gmra.mrb[0].mxu0 %v2863
      %v2865 = vpop.f32.mrb[0].mxu0
      %v2866 = vadd.f32 %v2393, %v2865
      %v2867 = vpop.f32.mrb[0].mxu0
      %v2868 = vand.u32 %v671, 4294901760
      %2869 = vmatprep.mubr.f32.mxu0 %v2868
      %v2870 = vand.u32 %v670, 4294901760
      %2871 = vmatmul.mubr.f32.gmra.mrb[0].mxu0 %v2870
      %v2872 = vpop.f32.mrb[0].mxu0
      %v2873 = vadd.f32 %v2404, %v2872
      %v2874 = vpop.f32.mrb[0].mxu0
      %v2875 = vand.u32 %v673, 4294901760
      %2876 = vmatprep.mubr.f32.mxu0 %v2875
      %v2877 = vand.u32 %v672, 4294901760
      %2878 = vmatmul.mubr.f32.gmra.mrb[0].mxu0 %v2877
      %v2879 = vpop.f32.mrb[0].mxu0
      %v2880 = vadd.f32 %v2415, %v2879
      %v2881 = vpop.f32.mrb[0].mxu0
      %v2882 = vand.u32 %v675, 4294901760
      %2883 = vmatprep.mubr.f32.mxu0 %v2882
      %v2884 = vand.u32 %v674, 4294901760
      %2885 = vmatmul.mubr.f32.gmra.mrb[0].mxu0 %v2884
      %v2886 = vpop.f32.mrb[0].mxu0
      %v2887 = vadd.f32 %v2426, %v2886
      %v2888 = vpop.f32.mrb[0].mxu0
      %v2889 = vand.u32 %v677, 4294901760
      %2890 = vmatprep.mubr.f32.mxu0 %v2889
      %v2891 = vand.u32 %v676, 4294901760
      %2892 = vmatmul.mubr.f32.gmra.mrb[0].mxu0 %v2891
      %v2893 = vpop.f32.mrb[0].mxu0
      %v2894 = vadd.f32 %v2437, %v2893
      %v2895 = vpop.f32.mrb[0].mxu0
      %v2896 = vand.u32 %v679, 4294901760
      %2897 = vmatprep.mubr.f32.mxu0 %v2896
      %v2898 = vand.u32 %v678, 4294901760
      %2899 = vmatmul.mubr.f32.gmra.mrb[0].mxu0 %v2898
      %v2900 = vpop.f32.mrb[0].mxu0
      %v2901 = vadd.f32 %v2448, %v2900
      %v2902 = vpop.f32.mrb[0].mxu0
      %v2903 = vand.u32 %v681, 4294901760
      %2904 = vmatprep.mubr.f32.mxu0 %v2903
      %v2905 = vand.u32 %v680, 4294901760
      %2906 = vmatmul.mubr.f32.gmra.mrb[0].mxu0 %v2905
      %v2907 = vpop.f32.mrb[0].mxu0
      %v2908 = vadd.f32 %v2459, %v2907
      %v2909 = vpop.f32.mrb[0].mxu0
      %v2910 = vand.u32 %v683, 4294901760
      %2911 = vmatprep.mubr.f32.mxu0 %v2910
      %v2912 = vand.u32 %v682, 4294901760
      %2913 = vmatmul.mubr.f32.gmra.mrb[0].mxu0 %v2912
      %v2914 = vpop.f32.mrb[0].mxu0
      %v2915 = vadd.f32 %v2470, %v2914
      %v2916 = vpop.f32.mrb[0].mxu0
      %v2917 = vand.u32 %v685, 4294901760
      %2918 = vmatprep.mubr.f32.mxu0 %v2917
      %v2919 = vand.u32 %v684, 4294901760
      %2920 = vmatmul.mubr.f32.gmra.mrb[0].mxu0 %v2919
      %v2921 = vpop.f32.mrb[0].mxu0
      %v2922 = vadd.f32 %v2481, %v2921
      %v2923 = vpop.f32.mrb[0].mxu0
      %v2924 = vand.u32 %v687, 4294901760
      %2925 = vmatprep.mubr.f32.mxu0 %v2924
      %v2926 = vand.u32 %v686, 4294901760
      %2927 = vmatmul.mubr.f32.gmra.mrb[0].mxu0 %v2926
      %v2928 = vpop.f32.mrb[0].mxu0
      %v2929 = vadd.f32 %v2492, %v2928
      %v2930 = vpop.f32.mrb[0].mxu0
      %v2931 = vand.u32 %v689, 4294901760
      %2932 = vmatprep.mubr.f32.mxu0 %v2931
      %v2933 = vand.u32 %v688, 4294901760
      %2934 = vmatmul.mubr.f32.gmra.mrb[0].mxu0 %v2933
      %v2935 = vpop.f32.mrb[0].mxu0
      %v2936 = vadd.f32 %v2503, %v2935
      %v2937 = vpop.f32.mrb[0].mxu0
      %v2938 = vand.u32 %v691, 4294901760
      %2939 = vmatprep.mubr.f32.mxu0 %v2938
      %v2940 = vand.u32 %v690, 4294901760
      %2941 = vmatmul.mubr.f32.gmra.mrb[0].mxu0 %v2940
      %v2942 = vpop.f32.mrb[0].mxu0
      %v2943 = vadd.f32 %v2514, %v2942
      %v2944 = vpop.f32.mrb[0].mxu0
      %v2945 = vand.u32 %v693, 4294901760
      %2946 = vmatprep.mubr.f32.mxu0 %v2945
      %v2947 = vand.u32 %v692, 4294901760
      %2948 = vmatmul.mubr.f32.gmra.mrb[0].mxu0 %v2947
      %v2949 = vpop.f32.mrb[0].mxu0
      %v2950 = vadd.f32 %v2525, %v2949
      %v2951 = vpop.f32.mrb[0].mxu0
      %v2952 = vand.u32 %v695, 4294901760
      %2953 = vmatprep.mubr.f32.mxu0 %v2952
      %v2954 = vand.u32 %v694, 4294901760
      %2955 = vmatmul.mubr.f32.gmra.mrb[0].mxu0 %v2954
      %v2956 = vpop.f32.mrb[0].mxu0
      %v2957 = vadd.f32 %v2536, %v2956
      %v2958 = vpop.f32.mrb[0].mxu0
      %v2959 = vand.u32 %v697, 4294901760
      %2960 = vmatprep.mubr.f32.mxu0 %v2959
      %v2961 = vand.u32 %v696, 4294901760
      %2962 = vmatmul.mubr.f32.gmra.mrb[0].mxu0 %v2961
      %v2963 = vpop.f32.mrb[0].mxu0
      %v2964 = vadd.f32 %v2547, %v2963
      %v2965 = vpop.f32.mrb[0].mxu0
      %v2966 = vand.u32 %v699, 4294901760
      %2967 = vmatprep.mubr.f32.mxu0 %v2966
      %v2968 = vand.u32 %v698, 4294901760
      %2969 = vmatmul.mubr.f32.gmra.mrb[0].mxu0 %v2968
      %v2970 = vpop.f32.mrb[0].mxu0
      %v2971 = vadd.f32 %v2558, %v2970
      %v2972 = vpop.f32.mrb[0].mxu0
      %v2973 = vand.u32 %v701, 4294901760
      %2974 = vmatprep.mubr.f32.mxu0 %v2973
      %v2975 = vand.u32 %v700, 4294901760
      %2976 = vmatmul.mubr.f32.gmra.mrb[0].mxu0 %v2975
      %v2977 = vpop.f32.mrb[0].mxu0
      %v2978 = vadd.f32 %v2569, %v2977
      %v2979 = vpop.f32.mrb[0].mxu0
      %v2980 = vand.u32 %v703, 4294901760
      %2981 = vmatprep.mubr.f32.mxu0 %v2980
      %v2982 = vand.u32 %v702, 4294901760
      %2983 = vmatmul.mubr.f32.gmra.mrb[0].mxu0 %v2982
      %v2984 = vpop.f32.mrb[0].mxu0
      %v2985 = vadd.f32 %v2580, %v2984
      %v2986 = vpop.f32.mrb[0].mxu0
      %v2987 = vand.u32 %v705, 4294901760
      %2988 = vmatprep.mubr.f32.mxu0 %v2987
      %v2989 = vand.u32 %v704, 4294901760
      %2990 = vmatmul.mubr.f32.gmra.mrb[0].mxu0 %v2989
      %v2991 = vpop.f32.mrb[0].mxu0
      %v2992 = vadd.f32 %v2591, %v2991
      %v2993 = vpop.f32.mrb[0].mxu0
      %v2994 = vand.u32 %v707, 4294901760
      %2995 = vmatprep.mubr.f32.mxu0 %v2994
      %v2996 = vand.u32 %v706, 4294901760
      %2997 = vmatmul.mubr.f32.gmra.mrb[0].mxu0 %v2996
      %v2998 = vpop.f32.mrb[0].mxu0
      %v2999 = vadd.f32 %v2602, %v2998
      %v3000 = vpop.f32.mrb[0].mxu0
      %v3001 = vand.u32 %v709, 4294901760
      %3002 = vmatprep.mubr.f32.mxu0 %v3001
      %v3003 = vand.u32 %v708, 4294901760
      %3004 = vmatmul.mubr.f32.gmra.mrb[0].mxu0 %v3003
      %v3005 = vpop.f32.mrb[0].mxu0
      %v3006 = vadd.f32 %v2613, %v3005
      %v3007 = vpop.f32.mrb[0].mxu0
      %v3008 = vand.u32 %v711, 4294901760
      %3009 = vmatprep.mubr.f32.mxu0 %v3008
      %v3010 = vand.u32 %v710, 4294901760
      %3011 = vmatmul.mubr.f32.gmra.mrb[0].mxu0 %v3010
      %v3012 = vpop.f32.mrb[0].mxu0
      %v3013 = vadd.f32 %v2624, %v3012
      %v3014 = vpop.f32.mrb[0].mxu0
      %v3015 = vand.u32 %v713, 4294901760
      %3016 = vmatprep.mubr.f32.mxu0 %v3015
      %v3017 = vand.u32 %v712, 4294901760
      %3018 = vmatmul.mubr.f32.gmra.mrb[0].mxu0 %v3017
      %v3019 = vpop.f32.mrb[0].mxu0
      %v3020 = vadd.f32 %v2635, %v3019
      %v3021 = vpop.f32.mrb[0].mxu0
      %3022 = vdwg.mxu0
      %3023 = vmatprep.subr.mxu0 0.0
      %v3024 = vand.u32 %v714, 4294901760
      %3025 = vmatpush1.msra.mxu0 %v3024
      %3026 = vmatprep.subr.mxu0 0.0
      %v3027 = vand.u32 %v715, 4294901760
      %3028 = vmatpush1.msra.mxu0 %v3027
      %3029 = vmatprep.subr.mxu0 0.0
      %v3030 = vand.u32 %v716, 4294901760
      %3031 = vmatpush1.msra.mxu0 %v3030
      %3032 = vmatprep.subr.mxu0 0.0
      %v3033 = vand.u32 %v717, 4294901760
      %3034 = vmatpush1.msra.mxu0 %v3033
      %3035 = vmatprep.subr.mxu0 0.0
      %v3036 = vand.u32 %v718, 4294901760
      %3037 = vmatpush1.msra.mxu0 %v3036
      %3038 = vmatprep.subr.mxu0 0.0
      %v3039 = vand.u32 %v719, 4294901760
      %3040 = vmatpush1.msra.mxu0 %v3039
      %3041 = vmatprep.subr.mxu0 0.0
      %v3042 = vand.u32 %v720, 4294901760
      %3043 = vmatpush1.msra.mxu0 %v3042
      %3044 = vmatprep.subr.mxu0 0.0
      %v3045 = vand.u32 %v721, 4294901760
      %3046 = vmatpush1.msra.mxu0 %v3045
      %3047 = vmatprep.subr.mxu0 0.0
      %v3048 = vand.u32 %v722, 4294901760
      %3049 = vmatpush1.msra.mxu0 %v3048
      %3050 = vmatprep.subr.mxu0 0.0
      %v3051 = vand.u32 %v723, 4294901760
      %3052 = vmatpush1.msra.mxu0 %v3051
      %3053 = vmatprep.subr.mxu0 0.0
      %v3054 = vand.u32 %v724, 4294901760
      %3055 = vmatpush1.msra.mxu0 %v3054
      %3056 = vmatprep.subr.mxu0 0.0
      %v3057 = vand.u32 %v725, 4294901760
      %3058 = vmatpush1.msra.mxu0 %v3057
      %3059 = vmatprep.subr.mxu0 0.0
      %v3060 = vand.u32 %v726, 4294901760
      %3061 = vmatpush1.msra.mxu0 %v3060
      %3062 = vmatprep.subr.mxu0 0.0
      %v3063 = vand.u32 %v727, 4294901760
      %3064 = vmatpush1.msra.mxu0 %v3063
      %3065 = vmatprep.subr.mxu0 0.0
      %v3066 = vand.u32 %v728, 4294901760
      %3067 = vmatpush1.msra.mxu0 %v3066
      %3068 = vmatprep.subr.mxu0 0.0
      %v3069 = vand.u32 %v729, 4294901760
      %3070 = vmatpush1.msra.mxu0 %v3069
      %3071 = vmatprep.subr.mxu0 0.0
      %v3072 = vand.u32 %v730, 4294901760
      %3073 = vmatpush1.msra.mxu0 %v3072
      %3074 = vmatprep.subr.mxu0 0.0
      %v3075 = vand.u32 %v731, 4294901760
      %3076 = vmatpush1.msra.mxu0 %v3075
      %3077 = vmatprep.subr.mxu0 0.0
      %v3078 = vand.u32 %v732, 4294901760
      %3079 = vmatpush1.msra.mxu0 %v3078
      %3080 = vmatprep.subr.mxu0 0.0
      %v3081 = vand.u32 %v733, 4294901760
      %3082 = vmatpush1.msra.mxu0 %v3081
      %3083 = vmatprep.subr.mxu0 0.0
      %v3084 = vand.u32 %v734, 4294901760
      %3085 = vmatpush1.msra.mxu0 %v3084
      %3086 = vmatprep.subr.mxu0 0.0
      %v3087 = vand.u32 %v735, 4294901760
      %3088 = vmatpush1.msra.mxu0 %v3087
      %3089 = vmatprep.subr.mxu0 0.0
      %v3090 = vand.u32 %v736, 4294901760
      %3091 = vmatpush1.msra.mxu0 %v3090
      %3092 = vmatprep.subr.mxu0 0.0
      %v3093 = vand.u32 %v737, 4294901760
      %3094 = vmatpush1.msra.mxu0 %v3093
      %3095 = vmatprep.subr.mxu0 0.0
      %v3096 = vand.u32 %v738, 4294901760
      %3097 = vmatpush1.msra.mxu0 %v3096
      %3098 = vmatprep.subr.mxu0 0.0
      %v3099 = vand.u32 %v739, 4294901760
      %3100 = vmatpush1.msra.mxu0 %v3099
      %3101 = vmatprep.subr.mxu0 0.0
      %v3102 = vand.u32 %v740, 4294901760
      %3103 = vmatpush1.msra.mxu0 %v3102
      %3104 = vmatprep.subr.mxu0 0.0
      %v3105 = vand.u32 %v741, 4294901760
      %3106 = vmatpush1.msra.mxu0 %v3105
      %3107 = vmatprep.subr.mxu0 0.0
      %v3108 = vand.u32 %v742, 4294901760
      %3109 = vmatpush1.msra.mxu0 %v3108
      %3110 = vmatprep.subr.mxu0 0.0
      %v3111 = vand.u32 %v743, 4294901760
      %3112 = vmatpush1.msra.mxu0 %v3111
      %3113 = vmatprep.subr.mxu0 0.0
      %v3114 = vand.u32 %v744, 4294901760
      %3115 = vmatpush1.msra.mxu0 %v3114
      %3116 = vmatprep.subr.mxu0 0.0
      %v3117 = vand.u32 %v745, 4294901760
      %3118 = vmatpush1.msra.mxu0 %v3117
      %v3119 = vand.u32 %v651, 4294901760
      %3120 = vmatprep.mubr.f32.mxu0 %v3119
      %v3121 = vand.u32 %v650, 4294901760
      %3122 = vmatmul.mubr.f32.gmra.mrb[0].mxu0 %v3121
      %v3123 = vpop.f32.mrb[0].mxu0
      %v3124 = vadd.f32 %v2803, %v3123
      %v3125 = vpop.f32.mrb[0].mxu0
      %v3126 = vand.u32 %v653, 4294901760
      %3127 = vmatprep.mubr.f32.mxu0 %v3126
      %v3128 = vand.u32 %v652, 4294901760
      %3129 = vmatmul.mubr.f32.gmra.mrb[0].mxu0 %v3128
      %v3130 = vpop.f32.mrb[0].mxu0
      %v3131 = vadd.f32 %v2810, %v3130
      %v3132 = vpop.f32.mrb[0].mxu0
      %v3133 = vand.u32 %v655, 4294901760
      %3134 = vmatprep.mubr.f32.mxu0 %v3133
      %v3135 = vand.u32 %v654, 4294901760
      %3136 = vmatmul.mubr.f32.gmra.mrb[0].mxu0 %v3135
      %v3137 = vpop.f32.mrb[0].mxu0
      %v3138 = vadd.f32 %v2817, %v3137
      %v3139 = vpop.f32.mrb[0].mxu0
      %v3140 = vand.u32 %v657, 4294901760
      %3141 = vmatprep.mubr.f32.mxu0 %v3140
      %v3142 = vand.u32 %v656, 4294901760
      %3143 = vmatmul.mubr.f32.gmra.mrb[0].mxu0 %v3142
      %v3144 = vpop.f32.mrb[0].mxu0
      %v3145 = vadd.f32 %v2824, %v3144
      %v3146 = vpop.f32.mrb[0].mxu0
      %v3147 = vand.u32 %v659, 4294901760
      %3148 = vmatprep.mubr.f32.mxu0 %v3147
      %v3149 = vand.u32 %v658, 4294901760
      %3150 = vmatmul.mubr.f32.gmra.mrb[0].mxu0 %v3149
      %v3151 = vpop.f32.mrb[0].mxu0
      %v3152 = vadd.f32 %v2831, %v3151
      %v3153 = vpop.f32.mrb[0].mxu0
      %v3154 = vand.u32 %v661, 4294901760
      %3155 = vmatprep.mubr.f32.mxu0 %v3154
      %v3156 = vand.u32 %v660, 4294901760
      %3157 = vmatmul.mubr.f32.gmra.mrb[0].mxu0 %v3156
      %v3158 = vpop.f32.mrb[0].mxu0
      %v3159 = vadd.f32 %v2838, %v3158
      %v3160 = vpop.f32.mrb[0].mxu0
      %v3161 = vand.u32 %v663, 4294901760
      %3162 = vmatprep.mubr.f32.mxu0 %v3161
      %v3163 = vand.u32 %v662, 4294901760
      %3164 = vmatmul.mubr.f32.gmra.mrb[0].mxu0 %v3163
      %v3165 = vpop.f32.mrb[0].mxu0
      %v3166 = vadd.f32 %v2845, %v3165
      %v3167 = vpop.f32.mrb[0].mxu0
      %v3168 = vand.u32 %v665, 4294901760
      %3169 = vmatprep.mubr.f32.mxu0 %v3168
      %v3170 = vand.u32 %v664, 4294901760
      %3171 = vmatmul.mubr.f32.gmra.mrb[0].mxu0 %v3170
      %v3172 = vpop.f32.mrb[0].mxu0
      %v3173 = vadd.f32 %v2852, %v3172
      %v3174 = vpop.f32.mrb[0].mxu0
      %v3175 = vand.u32 %v667, 4294901760
      %3176 = vmatprep.mubr.f32.mxu0 %v3175
      %v3177 = vand.u32 %v666, 4294901760
      %3178 = vmatmul.mubr.f32.gmra.mrb[0].mxu0 %v3177
      %v3179 = vpop.f32.mrb[0].mxu0
      %v3180 = vadd.f32 %v2859, %v3179
      %v3181 = vpop.f32.mrb[0].mxu0
      %v3182 = vand.u32 %v669, 4294901760
      %3183 = vmatprep.mubr.f32.mxu0 %v3182
      %v3184 = vand.u32 %v668, 4294901760
      %3185 = vmatmul.mubr.f32.gmra.mrb[0].mxu0 %v3184
      %v3186 = vpop.f32.mrb[0].mxu0
      %v3187 = vadd.f32 %v2866, %v3186
      %v3188 = vpop.f32.mrb[0].mxu0
      %v3189 = vand.u32 %v671, 4294901760
      %3190 = vmatprep.mubr.f32.mxu0 %v3189
      %v3191 = vand.u32 %v670, 4294901760
      %3192 = vmatmul.mubr.f32.gmra.mrb[0].mxu0 %v3191
      %v3193 = vpop.f32.mrb[0].mxu0
      %v3194 = vadd.f32 %v2873, %v3193
      %v3195 = vpop.f32.mrb[0].mxu0
      %v3196 = vand.u32 %v673, 4294901760
      %3197 = vmatprep.mubr.f32.mxu0 %v3196
      %v3198 = vand.u32 %v672, 4294901760
      %3199 = vmatmul.mubr.f32.gmra.mrb[0].mxu0 %v3198
      %v3200 = vpop.f32.mrb[0].mxu0
      %v3201 = vadd.f32 %v2880, %v3200
      %v3202 = vpop.f32.mrb[0].mxu0
      %v3203 = vand.u32 %v675, 4294901760
      %3204 = vmatprep.mubr.f32.mxu0 %v3203
      %v3205 = vand.u32 %v674, 4294901760
      %3206 = vmatmul.mubr.f32.gmra.mrb[0].mxu0 %v3205
      %v3207 = vpop.f32.mrb[0].mxu0
      %v3208 = vadd.f32 %v2887, %v3207
      %v3209 = vpop.f32.mrb[0].mxu0
      %v3210 = vand.u32 %v677, 4294901760
      %3211 = vmatprep.mubr.f32.mxu0 %v3210
      %v3212 = vand.u32 %v676, 4294901760
      %3213 = vmatmul.mubr.f32.gmra.mrb[0].mxu0 %v3212
      %v3214 = vpop.f32.mrb[0].mxu0
      %v3215 = vadd.f32 %v2894, %v3214
      %v3216 = vpop.f32.mrb[0].mxu0
      %v3217 = vand.u32 %v679, 4294901760
      %3218 = vmatprep.mubr.f32.mxu0 %v3217
      %v3219 = vand.u32 %v678, 4294901760
      %3220 = vmatmul.mubr.f32.gmra.mrb[0].mxu0 %v3219
      %v3221 = vpop.f32.mrb[0].mxu0
      %v3222 = vadd.f32 %v2901, %v3221
      %v3223 = vpop.f32.mrb[0].mxu0
      %v3224 = vand.u32 %v681, 4294901760
      %3225 = vmatprep.mubr.f32.mxu0 %v3224
      %v3226 = vand.u32 %v680, 4294901760
      %3227 = vmatmul.mubr.f32.gmra.mrb[0].mxu0 %v3226
      %v3228 = vpop.f32.mrb[0].mxu0
      %v3229 = vadd.f32 %v2908, %v3228
      %v3230 = vpop.f32.mrb[0].mxu0
      %v3231 = vand.u32 %v683, 4294901760
      %3232 = vmatprep.mubr.f32.mxu0 %v3231
      %v3233 = vand.u32 %v682, 4294901760
      %3234 = vmatmul.mubr.f32.gmra.mrb[0].mxu0 %v3233
      %v3235 = vpop.f32.mrb[0].mxu0
      %v3236 = vadd.f32 %v2915, %v3235
      %v3237 = vpop.f32.mrb[0].mxu0
      %v3238 = vand.u32 %v685, 4294901760
      %3239 = vmatprep.mubr.f32.mxu0 %v3238
      %v3240 = vand.u32 %v684, 4294901760
      %3241 = vmatmul.mubr.f32.gmra.mrb[0].mxu0 %v3240
      %v3242 = vpop.f32.mrb[0].mxu0
      %v3243 = vadd.f32 %v2922, %v3242
      %v3244 = vpop.f32.mrb[0].mxu0
      %v3245 = vand.u32 %v687, 4294901760
      %3246 = vmatprep.mubr.f32.mxu0 %v3245
      %v3247 = vand.u32 %v686, 4294901760
      %3248 = vmatmul.mubr.f32.gmra.mrb[0].mxu0 %v3247
      %v3249 = vpop.f32.mrb[0].mxu0
      %v3250 = vadd.f32 %v2929, %v3249
      %v3251 = vpop.f32.mrb[0].mxu0
      %v3252 = vand.u32 %v689, 4294901760
      %3253 = vmatprep.mubr.f32.mxu0 %v3252
      %v3254 = vand.u32 %v688, 4294901760
      %3255 = vmatmul.mubr.f32.gmra.mrb[0].mxu0 %v3254
      %v3256 = vpop.f32.mrb[0].mxu0
      %v3257 = vadd.f32 %v2936, %v3256
      %v3258 = vpop.f32.mrb[0].mxu0
      %v3259 = vand.u32 %v691, 4294901760
      %3260 = vmatprep.mubr.f32.mxu0 %v3259
      %v3261 = vand.u32 %v690, 4294901760
      %3262 = vmatmul.mubr.f32.gmra.mrb[0].mxu0 %v3261
      %v3263 = vpop.f32.mrb[0].mxu0
      %v3264 = vadd.f32 %v2943, %v3263
      %v3265 = vpop.f32.mrb[0].mxu0
      %v3266 = vand.u32 %v693, 4294901760
      %3267 = vmatprep.mubr.f32.mxu0 %v3266
      %v3268 = vand.u32 %v692, 4294901760
      %3269 = vmatmul.mubr.f32.gmra.mrb[0].mxu0 %v3268
      %v3270 = vpop.f32.mrb[0].mxu0
      %v3271 = vadd.f32 %v2950, %v3270
      %v3272 = vpop.f32.mrb[0].mxu0
      %v3273 = vand.u32 %v695, 4294901760
      %3274 = vmatprep.mubr.f32.mxu0 %v3273
      %v3275 = vand.u32 %v694, 4294901760
      %3276 = vmatmul.mubr.f32.gmra.mrb[0].mxu0 %v3275
      %v3277 = vpop.f32.mrb[0].mxu0
      %v3278 = vadd.f32 %v2957, %v3277
      %v3279 = vpop.f32.mrb[0].mxu0
      %v3280 = vand.u32 %v697, 4294901760
      %3281 = vmatprep.mubr.f32.mxu0 %v3280
      %v3282 = vand.u32 %v696, 4294901760
      %3283 = vmatmul.mubr.f32.gmra.mrb[0].mxu0 %v3282
      %v3284 = vpop.f32.mrb[0].mxu0
      %v3285 = vadd.f32 %v2964, %v3284
      %v3286 = vpop.f32.mrb[0].mxu0
      %v3287 = vand.u32 %v699, 4294901760
      %3288 = vmatprep.mubr.f32.mxu0 %v3287
      %v3289 = vand.u32 %v698, 4294901760
      %3290 = vmatmul.mubr.f32.gmra.mrb[0].mxu0 %v3289
      %v3291 = vpop.f32.mrb[0].mxu0
      %v3292 = vadd.f32 %v2971, %v3291
      %v3293 = vpop.f32.mrb[0].mxu0
      %v3294 = vand.u32 %v701, 4294901760
      %3295 = vmatprep.mubr.f32.mxu0 %v3294
      %v3296 = vand.u32 %v700, 4294901760
      %3297 = vmatmul.mubr.f32.gmra.mrb[0].mxu0 %v3296
      %v3298 = vpop.f32.mrb[0].mxu0
      %v3299 = vadd.f32 %v2978, %v3298
      %v3300 = vpop.f32.mrb[0].mxu0
      %v3301 = vand.u32 %v703, 4294901760
      %3302 = vmatprep.mubr.f32.mxu0 %v3301
      %v3303 = vand.u32 %v702, 4294901760
      %3304 = vmatmul.mubr.f32.gmra.mrb[0].mxu0 %v3303
      %v3305 = vpop.f32.mrb[0].mxu0
      %v3306 = vadd.f32 %v2985, %v3305
      %v3307 = vpop.f32.mrb[0].mxu0
      %v3308 = vand.u32 %v705, 4294901760
      %3309 = vmatprep.mubr.f32.mxu0 %v3308
      %v3310 = vand.u32 %v704, 4294901760
      %3311 = vmatmul.mubr.f32.gmra.mrb[0].mxu0 %v3310
      %v3312 = vpop.f32.mrb[0].mxu0
      %v3313 = vadd.f32 %v2992, %v3312
      %v3314 = vpop.f32.mrb[0].mxu0
      %v3315 = vand.u32 %v707, 4294901760
      %3316 = vmatprep.mubr.f32.mxu0 %v3315
      %v3317 = vand.u32 %v706, 4294901760
      %3318 = vmatmul.mubr.f32.gmra.mrb[0].mxu0 %v3317
      %v3319 = vpop.f32.mrb[0].mxu0
      %v3320 = vadd.f32 %v2999, %v3319
      %v3321 = vpop.f32.mrb[0].mxu0
      %v3322 = vand.u32 %v709, 4294901760
      %3323 = vmatprep.mubr.f32.mxu0 %v3322
      %v3324 = vand.u32 %v708, 4294901760
      %3325 = vmatmul.mubr.f32.gmra.mrb[0].mxu0 %v3324
      %v3326 = vpop.f32.mrb[0].mxu0
      %v3327 = vadd.f32 %v3006, %v3326
      %v3328 = vpop.f32.mrb[0].mxu0
      %v3329 = vand.u32 %v711, 4294901760
      %3330 = vmatprep.mubr.f32.mxu0 %v3329
      %v3331 = vand.u32 %v710, 4294901760
      %3332 = vmatmul.mubr.f32.gmra.mrb[0].mxu0 %v3331
      %v3333 = vpop.f32.mrb[0].mxu0
      %v3334 = vadd.f32 %v3013, %v3333
      %v3335 = vpop.f32.mrb[0].mxu0
      %v3336 = vand.u32 %v713, 4294901760
      %3337 = vmatprep.mubr.f32.mxu0 %v3336
      %v3338 = vand.u32 %v712, 4294901760
      %3339 = vmatmul.mubr.f32.gmra.mrb[0].mxu0 %v3338
      %v3340 = vpop.f32.mrb[0].mxu0
      %v3341 = vadd.f32 %v3020, %v3340
      %v3342 = vpop.f32.mrb[0].mxu0
      %3343 = vdwg.mxu0
      %v3344 = vadd.f32 %v554, %v3124
      %v3345 = vadd.f32 %v555, %v3131
      %v3346 = vadd.f32 %v556, %v3138
      %v3347 = vadd.f32 %v557, %v3145
      %v3348 = vadd.f32 %v558, %v3152
      %v3349 = vadd.f32 %v559, %v3159
      %v3350 = vadd.f32 %v560, %v3166
      %v3351 = vadd.f32 %v561, %v3173
      %v3352 = vadd.f32 %v562, %v3180
      %v3353 = vadd.f32 %v563, %v3187
      %v3354 = vadd.f32 %v564, %v3194
      %v3355 = vadd.f32 %v565, %v3201
      %v3356 = vadd.f32 %v566, %v3208
      %v3357 = vadd.f32 %v567, %v3215
      %v3358 = vadd.f32 %v568, %v3222
      %v3359 = vadd.f32 %v569, %v3229
      %v3360 = vadd.f32 %v570, %v3236
      %v3361 = vadd.f32 %v571, %v3243
      %v3362 = vadd.f32 %v572, %v3250
      %v3363 = vadd.f32 %v573, %v3257
      %v3364 = vadd.f32 %v574, %v3264
      %v3365 = vadd.f32 %v575, %v3271
      %v3366 = vadd.f32 %v576, %v3278
      %v3367 = vadd.f32 %v577, %v3285
      %v3368 = vadd.f32 %v578, %v3292
      %v3369 = vadd.f32 %v579, %v3299
      %v3370 = vadd.f32 %v580, %v3306
      %v3371 = vadd.f32 %v581, %v3313
      %v3372 = vadd.f32 %v582, %v3320
      %v3373 = vadd.f32 %v583, %v3327
      %v3374 = vadd.f32 %v584, %v3334
      %v3375 = vadd.f32 %v585, %v3341
      %3376 = vst [vmem:[#allocation2] sm:$0xff] %v3344
      %3377 = vst [vmem:[#allocation2 + $0x8] sm:$0xff] %v3345
      %3378 = vst [vmem:[#allocation2 + $0x10] sm:$0xff] %v3346
      %3379 = vst [vmem:[#allocation2 + $0x18] sm:$0xff] %v3347
      %3380 = vst [vmem:[#allocation2 + $0x20] sm:$0xff] %v3348
      %3381 = vst [vmem:[#allocation2 + $0x28] sm:$0xff] %v3349
      %3382 = vst [vmem:[#allocation2 + $0x30] sm:$0xff] %v3350
      %3383 = vst [vmem:[#allocation2 + $0x38] sm:$0xff] %v3351
      %3384 = vst [vmem:[#allocation2 + $0x40] sm:$0xff] %v3352
      %3385 = vst [vmem:[#allocation2 + $0x48] sm:$0xff] %v3353
      %3386 = vst [vmem:[#allocation2 + $0x50] sm:$0xff] %v3354
      %3387 = vst [vmem:[#allocation2 + $0x58] sm:$0xff] %v3355
      %3388 = vst [vmem:[#allocation2 + $0x60] sm:$0xff] %v3356
      %3389 = vst [vmem:[#allocation2 + $0x68] sm:$0xff] %v3357
      %3390 = vst [vmem:[#allocation2 + $0x70] sm:$0xff] %v3358
      %3391 = vst [vmem:[#allocation2 + $0x78] sm:$0xff] %v3359
      %3392 = vst [vmem:[#allocation2 + $0x80] sm:$0xff] %v3360
      %3393 = vst [vmem:[#allocation2 + $0x88] sm:$0xff] %v3361
      %3394 = vst [vmem:[#allocation2 + $0x90] sm:$0xff] %v3362
      %3395 = vst [vmem:[#allocation2 + $0x98] sm:$0xff] %v3363
      %3396 = vst [vmem:[#allocation2 + $0xa0] sm:$0xff] %v3364
      %3397 = vst [vmem:[#allocation2 + $0xa8] sm:$0xff] %v3365
      %3398 = vst [vmem:[#allocation2 + $0xb0] sm:$0xff] %v3366
      %3399 = vst [vmem:[#allocation2 + $0xb8] sm:$0xff] %v3367
      %3400 = vst [vmem:[#allocation2 + $0xc0] sm:$0xff] %v3368
      %3401 = vst [vmem:[#allocation2 + $0xc8] sm:$0xff] %v3369
      %3402 = vst [vmem:[#allocation2 + $0xd0] sm:$0xff] %v3370
      %3403 = vst [vmem:[#allocation2 + $0xd8] sm:$0xff] %v3371
      %3404 = vst [vmem:[#allocation2 + $0xe0] sm:$0xff] %v3372
      %3405 = vst [vmem:[#allocation2 + $0xe8] sm:$0xff] %v3373
      %3406 = vst [vmem:[#allocation2 + $0xf0] sm:$0xff] %v3374
      %3407 = vst [vmem:[#allocation2 + $0xf8] sm:$0xff] %v3375
    $region21: #{tpu_custom_call.1} parent=1 // pred_fallthru
      _
    // Predicated region
    $region22: #{tpu_custom_call.1} parent=1 // pred_check
      %p3408 = pneg %p56
    $region23: #{tpu_custom_call.1} parent=1 // pred_check_branch
      %3410 = sbr.rel (%p3408) target = $region25
    $region24: #{tpu_custom_call.1} parent=1 // pred_region
      %v3411 = vld [vmem:[#allocation2] sm:$0xff]
      %v3412 = vld [vmem:[#allocation2 + $0x8] sm:$0xff]
      %v3413 = vld [vmem:[#allocation2 + $0x10] sm:$0xff]
      %v3414 = vld [vmem:[#allocation2 + $0x18] sm:$0xff]
      %v3415 = vld [vmem:[#allocation2 + $0x20] sm:$0xff]
      %v3416 = vld [vmem:[#allocation2 + $0x28] sm:$0xff]
      %v3417 = vld [vmem:[#allocation2 + $0x30] sm:$0xff]
      %v3418 = vld [vmem:[#allocation2 + $0x38] sm:$0xff]
      %v3419 = vld [vmem:[#allocation2 + $0x40] sm:$0xff]
      %v3420 = vld [vmem:[#allocation2 + $0x48] sm:$0xff]
      %v3421 = vld [vmem:[#allocation2 + $0x50] sm:$0xff]
      %v3422 = vld [vmem:[#allocation2 + $0x58] sm:$0xff]
      %v3423 = vld [vmem:[#allocation2 + $0x60] sm:$0xff]
      %v3424 = vld [vmem:[#allocation2 + $0x68] sm:$0xff]
      %v3425 = vld [vmem:[#allocation2 + $0x70] sm:$0xff]
      %v3426 = vld [vmem:[#allocation2 + $0x78] sm:$0xff]
      %v3427 = vld [vmem:[#allocation2 + $0x80] sm:$0xff]
      %v3428 = vld [vmem:[#allocation2 + $0x88] sm:$0xff]
      %v3429 = vld [vmem:[#allocation2 + $0x90] sm:$0xff]
      %v3430 = vld [vmem:[#allocation2 + $0x98] sm:$0xff]
      %v3431 = vld [vmem:[#allocation2 + $0xa0] sm:$0xff]
      %v3432 = vld [vmem:[#allocation2 + $0xa8] sm:$0xff]
      %v3433 = vld [vmem:[#allocation2 + $0xb0] sm:$0xff]
      %v3434 = vld [vmem:[#allocation2 + $0xb8] sm:$0xff]
      %v3435 = vld [vmem:[#allocation2 + $0xc0] sm:$0xff]
      %v3436 = vld [vmem:[#allocation2 + $0xc8] sm:$0xff]
      %v3437 = vld [vmem:[#allocation2 + $0xd0] sm:$0xff]
      %v3438 = vld [vmem:[#allocation2 + $0xd8] sm:$0xff]
      %v3439 = vld [vmem:[#allocation2 + $0xe0] sm:$0xff]
      %v3440 = vld [vmem:[#allocation2 + $0xe8] sm:$0xff]
      %v3441 = vld [vmem:[#allocation2 + $0xf0] sm:$0xff]
      %v3442 = vld [vmem:[#allocation2 + $0xf8] sm:$0xff]
      %3443 = vst [vmem:[#allocation6] sm:$0xff] %v3411
      %3444 = vst [vmem:[#allocation6 + $0x8] sm:$0xff] %v3412
      %3445 = vst [vmem:[#allocation6 + $0x10] sm:$0xff] %v3413
      %3446 = vst [vmem:[#allocation6 + $0x18] sm:$0xff] %v3414
      %3447 = vst [vmem:[#allocation6 + $0x20] sm:$0xff] %v3415
      %3448 = vst [vmem:[#allocation6 + $0x28] sm:$0xff] %v3416
      %3449 = vst [vmem:[#allocation6 + $0x30] sm:$0xff] %v3417
      %3450 = vst [vmem:[#allocation6 + $0x38] sm:$0xff] %v3418
      %3451 = vst [vmem:[#allocation6 + $0x40] sm:$0xff] %v3419
      %3452 = vst [vmem:[#allocation6 + $0x48] sm:$0xff] %v3420
      %3453 = vst [vmem:[#allocation6 + $0x50] sm:$0xff] %v3421
      %3454 = vst [vmem:[#allocation6 + $0x58] sm:$0xff] %v3422
      %3455 = vst [vmem:[#allocation6 + $0x60] sm:$0xff] %v3423
      %3456 = vst [vmem:[#allocation6 + $0x68] sm:$0xff] %v3424
      %3457 = vst [vmem:[#allocation6 + $0x70] sm:$0xff] %v3425
      %3458 = vst [vmem:[#allocation6 + $0x78] sm:$0xff] %v3426
      %3459 = vst [vmem:[#allocation6 + $0x80] sm:$0xff] %v3427
      %3460 = vst [vmem:[#allocation6 + $0x88] sm:$0xff] %v3428
      %3461 = vst [vmem:[#allocation6 + $0x90] sm:$0xff] %v3429
      %3462 = vst [vmem:[#allocation6 + $0x98] sm:$0xff] %v3430
      %3463 = vst [vmem:[#allocation6 + $0xa0] sm:$0xff] %v3431
      %3464 = vst [vmem:[#allocation6 + $0xa8] sm:$0xff] %v3432
      %3465 = vst [vmem:[#allocation6 + $0xb0] sm:$0xff] %v3433
      %3466 = vst [vmem:[#allocation6 + $0xb8] sm:$0xff] %v3434
      %3467 = vst [vmem:[#allocation6 + $0xc0] sm:$0xff] %v3435
      %3468 = vst [vmem:[#allocation6 + $0xc8] sm:$0xff] %v3436
      %3469 = vst [vmem:[#allocation6 + $0xd0] sm:$0xff] %v3437
      %3470 = vst [vmem:[#allocation6 + $0xd8] sm:$0xff] %v3438
      %3471 = vst [vmem:[#allocation6 + $0xe0] sm:$0xff] %v3439
      %3472 = vst [vmem:[#allocation6 + $0xe8] sm:$0xff] %v3440
      %3473 = vst [vmem:[#allocation6 + $0xf0] sm:$0xff] %v3441
      %3474 = vst [vmem:[#allocation6 + $0xf8] sm:$0xff] %v3442
    $region25: #{tpu_custom_call.1} parent=1 // pred_fallthru
      _
    // Predicated region
    $region26: #{tpu_custom_call.1} parent=1 // pred_check
      _
    $region27: #{tpu_custom_call.1} parent=1 // pred_check_branch
      %3476 = sbr.rel (0) target = $region29
    $region28: #{tpu_custom_call.1} parent=1 // pred_region
      %s3478 = ssub.s32 4096, 4096
      %3479 = vsyncadd [#allocation7], %s3478
      %s3480 = sshll.u32 [#allocation6], 4
      %s3481 = int_to_ptr.vmem [resolvable:$true] %s3480
      %3486 = dma.vmem_to_hbm [thread:$0]  %s3481, 4096, %s5, [#allocation7], 128, 128, 8
    $region29: #{tpu_custom_call.1} parent=1 // pred_fallthru
      _
    // Predicated region
    $region30: #{tpu_custom_call.1} parent=1 // pred_check
      _
    $region31: #{tpu_custom_call.1} parent=1 // pred_check_branch
      %3488 = sbr.rel (0) target = $region33
    $region32: #{tpu_custom_call.1} parent=1 // pred_region
      %3489 = dma.done [#allocation7], 4096
    $region33: #{tpu_custom_call.1} parent=1 // pred_fallthru
      _
    %3490 = vsyncpa [#allocation7], 1

</llo_original>
